<compile_context>
chip_gen: v7x
topology: tpu7x:2x2x1
jax: 0.10.0
libtpu: 0.0.40
codegen_flags: <defaults>
</compile_context>

<pallas_src>
import functools

import jax
import jax.numpy as jnp
from jax import lax
from jax.experimental import pallas as pl
from jax.experimental.pallas import tpu as pltpu


def _round_up(x, m):
    return ((x + m - 1) // m) * m


def _pick_clip_tile(n, cap=128):
    """Clips (videos) per grid step: multiple of 8 (sublane-dense output block),
    capped, and split so there are >=2 clip blocks when possible (v7x's two
    TensorCores both get work on the 'parallel' leading grid axis)."""
    tb = min(cap, _round_up(n, 8))
    if _round_up(n, tb) // tb < 2 and tb > 8:
        tb = _round_up(tb // 2, 8)
    return tb


def _pick_s_tile(s, cap=2048):
    """T*H*W tile (lane axis). Must be a multiple of 128 unless it covers all of
    S (Mosaic (8,128) block constraint)."""
    if s <= cap:
        return s
    for d in range(cap - cap % 128, 0, -128):
        if s % d == 0:
            return d
    return s  # no 128-multiple divisor <= cap; fall back to the full axis


def tsn_fused_kernel(x_ref, wbt_ref, bb_ref, wc_ref, bc_ref, o_ref, pacc_ref,
                     *, inv_norm):
    """Fused TSN forward_test step: TB clips x 1 segment x 1 S-tile.

    x_ref  : (TB, C, S_TILE)   x block (segment dim squeezed), S = T*H*W
    wbt_ref: (HID, C)          backbone 1x1x1 conv weight (transposed)
    bb_ref : (HID, 1)          backbone bias
    wc_ref : (HID, NCP)        cls_head fc weight, classes padded to 128 lanes
    bc_ref : (1, NCP)          cls_head fc bias (-1e30 in padded columns)
    o_ref  : (TB, NCP)         per-video class scores (written at the last step)
    pacc_ref:(TB, 1, HID) VMEM running sum of ReLU(conv) over S and segments
    """
    seg, stile = pl.program_id(1), pl.program_id(2)

    @pl.when(jnp.logical_and(seg == 0, stile == 0))
    def _init():
        pacc_ref[...] = jnp.zeros_like(pacc_ref)

    tb = x_ref.shape[0]
    wbt = wbt_ref[...]                       # (HID, C)  loaded once, reused per clip
    bb = bb_ref[...]                         # (HID, 1)

    def clip_body(b, carry):
        xb = x_ref[b]                                                # (C, S_TILE)
        f = jnp.dot(wbt, xb, preferred_element_type=jnp.float32)     # (HID, S_TILE) MXU
        f = jnp.maximum(f + bb, 0.0)                                 # bias + ReLU (f32)
        part = jnp.sum(f, axis=-1).reshape(1, -1)                    # lane reduce -> (1, HID)
        pacc_ref[b] = pacc_ref[b] + part                             # fused global-avg-pool
        return carry

    lax.fori_loop(0, tb, clip_body, 0, unroll=min(tb, 8))

    # forward_test tail, fused and run ONCE per clip block: mean over (S, segments),
    # linear head, softmax over classes.
    @pl.when(jnp.logical_and(seg == pl.num_programs(1) - 1,
                             stile == pl.num_programs(2) - 1))
    def _finalize():
        pooled = pacc_ref[...][:, 0, :] * inv_norm                   # (TB, HID)
        logits = jnp.dot(pooled, wc_ref[...],
                         preferred_element_type=jnp.float32) + bc_ref[...]  # (TB, NCP)
        m = jnp.max(logits, axis=-1, keepdims=True)
        e = jnp.exp(logits - m)                                      # padded cols -> exp(-1e30)=0
        denom = jnp.sum(e, axis=-1, keepdims=True)
        o_ref[...] = e * pl.reciprocal(denom, approx=True)


def tsn_forward_test(imgs, params, *, clip_tile=128, s_tile_cap=2048,
                     stream_dtype=jnp.float32):
    """imgs: [N, M, C, T, H, W] (PyTorch axis convention).
    Returns class scores [N, num_class] (softmax of segment-averaged logits).
    stream_dtype=jnp.bfloat16 is recommended on v6e/v7x (halves HBM traffic;
    accumulation stays f32 via preferred_element_type)."""
    wb, bb, wc, bc = params
    N, M, C, T, H, W = imgs.shape
    S = T * H * W
    hid = wb.shape[1]
    nc = wc.shape[1]

    tb = _pick_clip_tile(N, clip_tile)       # clips per grid step (multiple of 8)
    n_pad = _round_up(N, tb)
    s_tile = _pick_s_tile(S, s_tile_cap)
    nc_pad = _round_up(nc, 128)              # lane-dense head result / output store

    # Pure view of imgs (S stays on the lane axis); pad clips up to the tile.
    # Padded rows produce garbage scores and are sliced off below.
    x = imgs.reshape(N, M, C, S).astype(stream_dtype)
    if n_pad > N:
        x = jnp.pad(x, ((0, n_pad - N), (0, 0), (0, 0), (0, 0)))

    wbt = wb.T.astype(stream_dtype)                     # (HID, C) tiny one-time transpose
    bbk = bb.reshape(hid, 1).astype(jnp.float32)        # (HID, 1) broadcasts over S_TILE
    # Padded class columns get a -1e30 bias so they vanish in the softmax.
    wc_p = jnp.zeros((hid, nc_pad), jnp.float32).at[:, :nc].set(wc.astype(jnp.float32))
    bc_p = jnp.full((1, nc_pad), -1e30, jnp.float32).at[:, :nc].set(
        bc.reshape(1, nc).astype(jnp.float32))

    grid = (n_pad // tb, M, S // s_tile)     # clips parallel; segments & S reduced

    # TODO(synk): at real backbone shapes set vmem_limit_bytes per generation
    # (v7x: keep the double-buffered x tile + weights under ~48 MiB of its 64 MiB
    # VMEM; v5e: raise the ~16 MiB scoped default) and pass stream_dtype=bfloat16
    # on v6e/v7x.
    out = pl.pallas_call(
        functools.partial(tsn_fused_kernel, inv_norm=1.0 / (S * M)),
        out_shape=jax.ShapeDtypeStruct((n_pad, nc_pad), jnp.float32),
        grid_spec=pltpu.PrefetchScalarGridSpec(
            num_scalar_prefetch=0,
            grid=grid,
            in_specs=[
                pl.BlockSpec((tb, pl.Squeezed(), C, s_tile),
                             lambda i, j, k: (i, j, 0, k)),
                pl.BlockSpec((hid, C), lambda i, j, k: (0, 0)),
                pl.BlockSpec((hid, 1), lambda i, j, k: (0, 0)),
                pl.BlockSpec((hid, nc_pad), lambda i, j, k: (0, 0)),
                pl.BlockSpec((1, nc_pad), lambda i, j, k: (0, 0)),
            ],
            out_specs=pl.BlockSpec((tb, nc_pad), lambda i, j, k: (i, 0)),
            scratch_shapes=[pltpu.VMEM((tb, 1, hid), jnp.float32)],
        ),
        compiler_params=pltpu.CompilerParams(
            dimension_semantics=("parallel", "arbitrary", "arbitrary")),
    )(x, wbt, bbk, wc_p, bc_p)

    return out[:N, :nc]


def tsn_forward_reference(imgs, params):
    """Pure-JAX reference of the same forward pass (for correctness check)."""
    wb, bb, wc, bc = params
    N, M, C, T, H, W = imgs.shape
    S = T * H * W
    x = imgs.reshape(N * M, C, S)                               # [NM, C, S]
    feats = jnp.maximum(jnp.einsum("ncs,ch->nsh", x, wb) + bb, 0.0)
    pooled = feats.mean(axis=1)                                 # [NM, HID]
    logits = pooled @ wc + bc                                   # [NM, NC]
    logits = logits.reshape(N, M, -1).mean(axis=1)              # [N, NC]
    return jax.nn.softmax(logits, axis=-1)


if __name__ == "__main__":
    # Small shapes consistent with [N, M, C, T, H, W]
    N, M, C, T, H, W = 2, 4, 4, 4, 8, 8
    HIDDEN, NUM_CLASS = 32, 8

    key = jax.random.PRNGKey(0)
    k_img, k_wb, k_bb, k_wc, k_bc = jax.random.split(key, 5)

    imgs = jax.random.normal(k_img, (N, M, C, T, H, W), dtype=jnp.float32)

    # Deterministic synthetic parameters (backbone conv, cls_head fc).
    # TODO(synk): the real backbone is a deep (2D/3D ResNet) built from a config
    # dict; it is represented here by a single pointwise conv + ReLU.
    wb = 0.1 * jax.random.normal(k_wb, (C, HIDDEN), dtype=jnp.float32)
    bb = 0.1 * jax.random.normal(k_bb, (1, HIDDEN), dtype=jnp.float32)
    wc = 0.1 * jax.random.normal(k_wc, (HIDDEN, NUM_CLASS), dtype=jnp.float32)
    bc = 0.1 * jax.random.normal(k_bc, (1, NUM_CLASS), dtype=jnp.float32)
    params = (wb, bb, wc, bc)

    out = tsn_forward_test(imgs, params)
    out = jax.block_until_ready(out)

    ref = tsn_forward_reference(imgs, params)
    assert out.shape == (N, NUM_CLASS)
    # approx-reciprocal softmax denominator (EUP vrcp) -> slightly looser tolerance
    assert jnp.allclose(out, ref, atol=2e-3, rtol=2e-3), "mismatch vs reference"

    print("KERNEL_OK")
</pallas_src>

<mosaic_0001>
module attributes {stable_mosaic.version = 11 : i64} {
  func.func @tsn_fused_kernel(%arg0: i32, %arg1: i32, %arg2: i32, %arg3: memref<8x1x4x256xf32, #tpu.memory_space<vmem>>, %arg4: memref<32x4xf32, #tpu.memory_space<vmem>>, %arg5: memref<32x1xf32, #tpu.memory_space<vmem>>, %arg6: memref<32x128xf32, #tpu.memory_space<vmem>>, %arg7: memref<1x128xf32, #tpu.memory_space<vmem>>, %arg8: memref<8x128xf32, #tpu.memory_space<vmem>>, %arg9: memref<8x1x32xf32, #tpu.memory_space<vmem>>) attributes {dimension_semantics = [#tpu.dimension_semantics<parallel>, #tpu.dimension_semantics<arbitrary>, #tpu.dimension_semantics<arbitrary>], iteration_bounds = array<i64: 1, 4, 1>, scalar_prefetch = 0 : i64, scratch_operands = 1 : i64, tpu.core_type = #tpu.core_type<tc>, window_params = [{transform_indices = @transform_0, window_bounds = array<i64: 8, 1, 4, 256>}, {pipeline_mode = #tpu.pipeline_mode<synchronous>, transform_indices = @transform_1, window_bounds = array<i64: 32, 4>}, {pipeline_mode = #tpu.pipeline_mode<synchronous>, transform_indices = @transform_2, window_bounds = array<i64: 32, 1>}, {pipeline_mode = #tpu.pipeline_mode<synchronous>, transform_indices = @transform_3, window_bounds = array<i64: 32, 128>}, {pipeline_mode = #tpu.pipeline_mode<synchronous>, transform_indices = @transform_4, window_bounds = array<i64: 1, 128>}, {transform_indices = @transform_5, window_bounds = array<i64: 8, 128>}]} {
    %c0_i32 = arith.constant 0 : i32
    %0 = arith.cmpi eq, %arg1, %c0_i32 : i32
    %c0_i32_0 = arith.constant 0 : i32
    %1 = arith.cmpi eq, %arg2, %c0_i32_0 : i32
    %2 = arith.andi %0, %1 : i1
    %3 = arith.extui %2 : i1 to i32
    %c0_i32_1 = arith.constant 0 : i32
    %4 = arith.cmpi ne, %3, %c0_i32_1 : i32
    scf.if %4 {
      %cst_88 = arith.constant 0.000000e+00 : f32
      %156 = vector.broadcast %cst_88 : f32 to vector<8x1x32xf32>
      %c0_89 = arith.constant 0 : index
      %c0_90 = arith.constant 0 : index
      %c0_91 = arith.constant 0 : index
      %157 = vector.load %arg9[%c0_89, %c0_90, %c0_91] : memref<8x1x32xf32, #tpu.memory_space<vmem>>, vector<8x1x32xf32>
      tpu.vector_store %arg9[%c0_89, %c0_90, %c0_91], %156 {strides = array<i32>} : memref<8x1x32xf32, #tpu.memory_space<vmem>>, vector<8x1x32xf32>,
    } else {
    }
    %c0 = arith.constant 0 : index
    %c0_2 = arith.constant 0 : index
    %5 = vector.load %arg4[%c0, %c0_2] : memref<32x4xf32, #tpu.memory_space<vmem>>, vector<32x4xf32>
    %c0_3 = arith.constant 0 : index
    %c0_4 = arith.constant 0 : index
    %6 = vector.load %arg5[%c0_3, %c0_4] : memref<32x1xf32, #tpu.memory_space<vmem>>, vector<32x1xf32>
    %c0_i32_5 = arith.constant 0 : i32
    %7 = arith.index_cast %c0_i32_5 : i32 to index
    %c0_6 = arith.constant 0 : index
    %c0_7 = arith.constant 0 : index
    %c0_8 = arith.constant 0 : index
    %8 = vector.load %arg3[%7, %c0_6, %c0_7, %c0_8] : memref<8x1x4x256xf32, #tpu.memory_space<vmem>>, vector<1x1x4x256xf32>
    %9 = vector.shape_cast %8 : vector<1x1x4x256xf32> to vector<4x256xf32>
    %cst = arith.constant dense<0.000000e+00> : vector<32x256xf32>
    %10 = tpu.matmul %5, %9, %cst {dimension_numbers = #tpu.dot_dimension_numbers<[1], [0], [0], [1], [0, 0, 1, 1], [], []>} : vector<32x4xf32>, vector<4x256xf32>, vector<32x256xf32> -> vector<32x256xf32>
    %11 = vector.broadcast %6 : vector<32x1xf32> to vector<32x256xf32>
    %12 = arith.addf %10, %11 : vector<32x256xf32>
    %cst_9 = arith.constant 0.000000e+00 : f32
    %13 = vector.broadcast %cst_9 : f32 to vector<32x256xf32>
    %14 = arith.maximumf %12, %13 : vector<32x256xf32>
    %cst_10 = arith.constant dense<0.000000e+00> : vector<32xf32>
    %15 = vector.multi_reduction <add>, %14, %cst_10 [1] : vector<32x256xf32> to vector<32xf32>
    %16 = vector.shape_cast %15 : vector<32xf32> to vector<1x32xf32>
    %17 = arith.index_cast %c0_i32_5 : i32 to index
    %c0_11 = arith.constant 0 : index
    %c0_12 = arith.constant 0 : index
    %18 = vector.load %arg9[%17, %c0_11, %c0_12] : memref<8x1x32xf32, #tpu.memory_space<vmem>>, vector<1x1x32xf32>
    %19 = vector.shape_cast %18 : vector<1x1x32xf32> to vector<1x32xf32>
    %20 = arith.addf %19, %16 : vector<1x32xf32>
    %21 = arith.index_cast %c0_i32_5 : i32 to index
    %c0_13 = arith.constant 0 : index
    %c0_14 = arith.constant 0 : index
    %22 = vector.load %arg9[%21, %c0_13, %c0_14] : memref<8x1x32xf32, #tpu.memory_space<vmem>>, vector<1x1x32xf32>
    %23 = vector.shape_cast %22 : vector<1x1x32xf32> to vector<1x32xf32>
    %24 = vector.shape_cast %20 : vector<1x32xf32> to vector<1x1x32xf32>
    tpu.vector_store %arg9[%21, %c0_13, %c0_14], %24 {strides = array<i32>} : memref<8x1x32xf32, #tpu.memory_space<vmem>>, vector<1x1x32xf32>,
    %c1_i32 = arith.constant 1 : i32
    %25 = arith.index_cast %c1_i32 : i32 to index
    %c0_15 = arith.constant 0 : index
    %c0_16 = arith.constant 0 : index
    %c0_17 = arith.constant 0 : index
    %26 = vector.load %arg3[%25, %c0_15, %c0_16, %c0_17] : memref<8x1x4x256xf32, #tpu.memory_space<vmem>>, vector<1x1x4x256xf32>
    %27 = vector.shape_cast %26 : vector<1x1x4x256xf32> to vector<4x256xf32>
    %cst_18 = arith.constant dense<0.000000e+00> : vector<32x256xf32>
    %28 = tpu.matmul %5, %27, %cst_18 {dimension_numbers = #tpu.dot_dimension_numbers<[1], [0], [0], [1], [0, 0, 1, 1], [], []>} : vector<32x4xf32>, vector<4x256xf32>, vector<32x256xf32> -> vector<32x256xf32>
    %29 = vector.broadcast %6 : vector<32x1xf32> to vector<32x256xf32>
    %30 = arith.addf %28, %29 : vector<32x256xf32>
    %cst_19 = arith.constant 0.000000e+00 : f32
    %31 = vector.broadcast %cst_19 : f32 to vector<32x256xf32>
    %32 = arith.maximumf %30, %31 : vector<32x256xf32>
    %cst_20 = arith.constant dense<0.000000e+00> : vector<32xf32>
    %33 = vector.multi_reduction <add>, %32, %cst_20 [1] : vector<32x256xf32> to vector<32xf32>
    %34 = vector.shape_cast %33 : vector<32xf32> to vector<1x32xf32>
    %35 = arith.index_cast %c1_i32 : i32 to index
    %c0_21 = arith.constant 0 : index
    %c0_22 = arith.constant 0 : index
    %36 = vector.load %arg9[%35, %c0_21, %c0_22] : memref<8x1x32xf32, #tpu.memory_space<vmem>>, vector<1x1x32xf32>
    %37 = vector.shape_cast %36 : vector<1x1x32xf32> to vector<1x32xf32>
    %38 = arith.addf %37, %34 : vector<1x32xf32>
    %39 = arith.index_cast %c1_i32 : i32 to index
    %c0_23 = arith.constant 0 : index
    %c0_24 = arith.constant 0 : index
    %40 = vector.load %arg9[%39, %c0_23, %c0_24] : memref<8x1x32xf32, #tpu.memory_space<vmem>>, vector<1x1x32xf32>
    %41 = vector.shape_cast %40 : vector<1x1x32xf32> to vector<1x32xf32>
    %42 = vector.shape_cast %38 : vector<1x32xf32> to vector<1x1x32xf32>
    tpu.vector_store %arg9[%39, %c0_23, %c0_24], %42 {strides = array<i32>} : memref<8x1x32xf32, #tpu.memory_space<vmem>>, vector<1x1x32xf32>,
    %c2_i32 = arith.constant 2 : i32
    %43 = arith.index_cast %c2_i32 : i32 to index
    %c0_25 = arith.constant 0 : index
    %c0_26 = arith.constant 0 : index
    %c0_27 = arith.constant 0 : index
    %44 = vector.load %arg3[%43, %c0_25, %c0_26, %c0_27] : memref<8x1x4x256xf32, #tpu.memory_space<vmem>>, vector<1x1x4x256xf32>
    %45 = vector.shape_cast %44 : vector<1x1x4x256xf32> to vector<4x256xf32>
    %cst_28 = arith.constant dense<0.000000e+00> : vector<32x256xf32>
    %46 = tpu.matmul %5, %45, %cst_28 {dimension_numbers = #tpu.dot_dimension_numbers<[1], [0], [0], [1], [0, 0, 1, 1], [], []>} : vector<32x4xf32>, vector<4x256xf32>, vector<32x256xf32> -> vector<32x256xf32>
    %47 = vector.broadcast %6 : vector<32x1xf32> to vector<32x256xf32>
    %48 = arith.addf %46, %47 : vector<32x256xf32>
    %cst_29 = arith.constant 0.000000e+00 : f32
    %49 = vector.broadcast %cst_29 : f32 to vector<32x256xf32>
    %50 = arith.maximumf %48, %49 : vector<32x256xf32>
    %cst_30 = arith.constant dense<0.000000e+00> : vector<32xf32>
    %51 = vector.multi_reduction <add>, %50, %cst_30 [1] : vector<32x256xf32> to vector<32xf32>
    %52 = vector.shape_cast %51 : vector<32xf32> to vector<1x32xf32>
    %53 = arith.index_cast %c2_i32 : i32 to index
    %c0_31 = arith.constant 0 : index
    %c0_32 = arith.constant 0 : index
    %54 = vector.load %arg9[%53, %c0_31, %c0_32] : memref<8x1x32xf32, #tpu.memory_space<vmem>>, vector<1x1x32xf32>
    %55 = vector.shape_cast %54 : vector<1x1x32xf32> to vector<1x32xf32>
    %56 = arith.addf %55, %52 : vector<1x32xf32>
    %57 = arith.index_cast %c2_i32 : i32 to index
    %c0_33 = arith.constant 0 : index
    %c0_34 = arith.constant 0 : index
    %58 = vector.load %arg9[%57, %c0_33, %c0_34] : memref<8x1x32xf32, #tpu.memory_space<vmem>>, vector<1x1x32xf32>
    %59 = vector.shape_cast %58 : vector<1x1x32xf32> to vector<1x32xf32>
    %60 = vector.shape_cast %56 : vector<1x32xf32> to vector<1x1x32xf32>
    tpu.vector_store %arg9[%57, %c0_33, %c0_34], %60 {strides = array<i32>} : memref<8x1x32xf32, #tpu.memory_space<vmem>>, vector<1x1x32xf32>,
    %c3_i32 = arith.constant 3 : i32
    %61 = arith.index_cast %c3_i32 : i32 to index
    %c0_35 = arith.constant 0 : index
    %c0_36 = arith.constant 0 : index
    %c0_37 = arith.constant 0 : index
    %62 = vector.load %arg3[%61, %c0_35, %c0_36, %c0_37] : memref<8x1x4x256xf32, #tpu.memory_space<vmem>>, vector<1x1x4x256xf32>
    %63 = vector.shape_cast %62 : vector<1x1x4x256xf32> to vector<4x256xf32>
    %cst_38 = arith.constant dense<0.000000e+00> : vector<32x256xf32>
    %64 = tpu.matmul %5, %63, %cst_38 {dimension_numbers = #tpu.dot_dimension_numbers<[1], [0], [0], [1], [0, 0, 1, 1], [], []>} : vector<32x4xf32>, vector<4x256xf32>, vector<32x256xf32> -> vector<32x256xf32>
    %65 = vector.broadcast %6 : vector<32x1xf32> to vector<32x256xf32>
    %66 = arith.addf %64, %65 : vector<32x256xf32>
    %cst_39 = arith.constant 0.000000e+00 : f32
    %67 = vector.broadcast %cst_39 : f32 to vector<32x256xf32>
    %68 = arith.maximumf %66, %67 : vector<32x256xf32>
    %cst_40 = arith.constant dense<0.000000e+00> : vector<32xf32>
    %69 = vector.multi_reduction <add>, %68, %cst_40 [1] : vector<32x256xf32> to vector<32xf32>
    %70 = vector.shape_cast %69 : vector<32xf32> to vector<1x32xf32>
    %71 = arith.index_cast %c3_i32 : i32 to index
    %c0_41 = arith.constant 0 : index
    %c0_42 = arith.constant 0 : index
    %72 = vector.load %arg9[%71, %c0_41, %c0_42] : memref<8x1x32xf32, #tpu.memory_space<vmem>>, vector<1x1x32xf32>
    %73 = vector.shape_cast %72 : vector<1x1x32xf32> to vector<1x32xf32>
    %74 = arith.addf %73, %70 : vector<1x32xf32>
    %75 = arith.index_cast %c3_i32 : i32 to index
    %c0_43 = arith.constant 0 : index
    %c0_44 = arith.constant 0 : index
    %76 = vector.load %arg9[%75, %c0_43, %c0_44] : memref<8x1x32xf32, #tpu.memory_space<vmem>>, vector<1x1x32xf32>
    %77 = vector.shape_cast %76 : vector<1x1x32xf32> to vector<1x32xf32>
    %78 = vector.shape_cast %74 : vector<1x32xf32> to vector<1x1x32xf32>
    tpu.vector_store %arg9[%75, %c0_43, %c0_44], %78 {strides = array<i32>} : memref<8x1x32xf32, #tpu.memory_space<vmem>>, vector<1x1x32xf32>,
    %c4_i32 = arith.constant 4 : i32
    %79 = arith.index_cast %c4_i32 : i32 to index
    %c0_45 = arith.constant 0 : index
    %c0_46 = arith.constant 0 : index
    %c0_47 = arith.constant 0 : index
    %80 = vector.load %arg3[%79, %c0_45, %c0_46, %c0_47] : memref<8x1x4x256xf32, #tpu.memory_space<vmem>>, vector<1x1x4x256xf32>
    %81 = vector.shape_cast %80 : vector<1x1x4x256xf32> to vector<4x256xf32>
    %cst_48 = arith.constant dense<0.000000e+00> : vector<32x256xf32>
    %82 = tpu.matmul %5, %81, %cst_48 {dimension_numbers = #tpu.dot_dimension_numbers<[1], [0], [0], [1], [0, 0, 1, 1], [], []>} : vector<32x4xf32>, vector<4x256xf32>, vector<32x256xf32> -> vector<32x256xf32>
    %83 = vector.broadcast %6 : vector<32x1xf32> to vector<32x256xf32>
    %84 = arith.addf %82, %83 : vector<32x256xf32>
    %cst_49 = arith.constant 0.000000e+00 : f32
    %85 = vector.broadcast %cst_49 : f32 to vector<32x256xf32>
    %86 = arith.maximumf %84, %85 : vector<32x256xf32>
    %cst_50 = arith.constant dense<0.000000e+00> : vector<32xf32>
    %87 = vector.multi_reduction <add>, %86, %cst_50 [1] : vector<32x256xf32> to vector<32xf32>
    %88 = vector.shape_cast %87 : vector<32xf32> to vector<1x32xf32>
    %89 = arith.index_cast %c4_i32 : i32 to index
    %c0_51 = arith.constant 0 : index
    %c0_52 = arith.constant 0 : index
    %90 = vector.load %arg9[%89, %c0_51, %c0_52] : memref<8x1x32xf32, #tpu.memory_space<vmem>>, vector<1x1x32xf32>
    %91 = vector.shape_cast %90 : vector<1x1x32xf32> to vector<1x32xf32>
    %92 = arith.addf %91, %88 : vector<1x32xf32>
    %93 = arith.index_cast %c4_i32 : i32 to index
    %c0_53 = arith.constant 0 : index
    %c0_54 = arith.constant 0 : index
    %94 = vector.load %arg9[%93, %c0_53, %c0_54] : memref<8x1x32xf32, #tpu.memory_space<vmem>>, vector<1x1x32xf32>
    %95 = vector.shape_cast %94 : vector<1x1x32xf32> to vector<1x32xf32>
    %96 = vector.shape_cast %92 : vector<1x32xf32> to vector<1x1x32xf32>
    tpu.vector_store %arg9[%93, %c0_53, %c0_54], %96 {strides = array<i32>} : memref<8x1x32xf32, #tpu.memory_space<vmem>>, vector<1x1x32xf32>,
    %c5_i32 = arith.constant 5 : i32
    %97 = arith.index_cast %c5_i32 : i32 to index
    %c0_55 = arith.constant 0 : index
    %c0_56 = arith.constant 0 : index
    %c0_57 = arith.constant 0 : index
    %98 = vector.load %arg3[%97, %c0_55, %c0_56, %c0_57] : memref<8x1x4x256xf32, #tpu.memory_space<vmem>>, vector<1x1x4x256xf32>
    %99 = vector.shape_cast %98 : vector<1x1x4x256xf32> to vector<4x256xf32>
    %cst_58 = arith.constant dense<0.000000e+00> : vector<32x256xf32>
    %100 = tpu.matmul %5, %99, %cst_58 {dimension_numbers = #tpu.dot_dimension_numbers<[1], [0], [0], [1], [0, 0, 1, 1], [], []>} : vector<32x4xf32>, vector<4x256xf32>, vector<32x256xf32> -> vector<32x256xf32>
    %101 = vector.broadcast %6 : vector<32x1xf32> to vector<32x256xf32>
    %102 = arith.addf %100, %101 : vector<32x256xf32>
    %cst_59 = arith.constant 0.000000e+00 : f32
    %103 = vector.broadcast %cst_59 : f32 to vector<32x256xf32>
    %104 = arith.maximumf %102, %103 : vector<32x256xf32>
    %cst_60 = arith.constant dense<0.000000e+00> : vector<32xf32>
    %105 = vector.multi_reduction <add>, %104, %cst_60 [1] : vector<32x256xf32> to vector<32xf32>
    %106 = vector.shape_cast %105 : vector<32xf32> to vector<1x32xf32>
    %107 = arith.index_cast %c5_i32 : i32 to index
    %c0_61 = arith.constant 0 : index
    %c0_62 = arith.constant 0 : index
    %108 = vector.load %arg9[%107, %c0_61, %c0_62] : memref<8x1x32xf32, #tpu.memory_space<vmem>>, vector<1x1x32xf32>
    %109 = vector.shape_cast %108 : vector<1x1x32xf32> to vector<1x32xf32>
    %110 = arith.addf %109, %106 : vector<1x32xf32>
    %111 = arith.index_cast %c5_i32 : i32 to index
    %c0_63 = arith.constant 0 : index
    %c0_64 = arith.constant 0 : index
    %112 = vector.load %arg9[%111, %c0_63, %c0_64] : memref<8x1x32xf32, #tpu.memory_space<vmem>>, vector<1x1x32xf32>
    %113 = vector.shape_cast %112 : vector<1x1x32xf32> to vector<1x32xf32>
    %114 = vector.shape_cast %110 : vector<1x32xf32> to vector<1x1x32xf32>
    tpu.vector_store %arg9[%111, %c0_63, %c0_64], %114 {strides = array<i32>} : memref<8x1x32xf32, #tpu.memory_space<vmem>>, vector<1x1x32xf32>,
    %c6_i32 = arith.constant 6 : i32
    %115 = arith.index_cast %c6_i32 : i32 to index
    %c0_65 = arith.constant 0 : index
    %c0_66 = arith.constant 0 : index
    %c0_67 = arith.constant 0 : index
    %116 = vector.load %arg3[%115, %c0_65, %c0_66, %c0_67] : memref<8x1x4x256xf32, #tpu.memory_space<vmem>>, vector<1x1x4x256xf32>
    %117 = vector.shape_cast %116 : vector<1x1x4x256xf32> to vector<4x256xf32>
    %cst_68 = arith.constant dense<0.000000e+00> : vector<32x256xf32>
    %118 = tpu.matmul %5, %117, %cst_68 {dimension_numbers = #tpu.dot_dimension_numbers<[1], [0], [0], [1], [0, 0, 1, 1], [], []>} : vector<32x4xf32>, vector<4x256xf32>, vector<32x256xf32> -> vector<32x256xf32>
    %119 = vector.broadcast %6 : vector<32x1xf32> to vector<32x256xf32>
    %120 = arith.addf %118, %119 : vector<32x256xf32>
    %cst_69 = arith.constant 0.000000e+00 : f32
    %121 = vector.broadcast %cst_69 : f32 to vector<32x256xf32>
    %122 = arith.maximumf %120, %121 : vector<32x256xf32>
    %cst_70 = arith.constant dense<0.000000e+00> : vector<32xf32>
    %123 = vector.multi_reduction <add>, %122, %cst_70 [1] : vector<32x256xf32> to vector<32xf32>
    %124 = vector.shape_cast %123 : vector<32xf32> to vector<1x32xf32>
    %125 = arith.index_cast %c6_i32 : i32 to index
    %c0_71 = arith.constant 0 : index
    %c0_72 = arith.constant 0 : index
    %126 = vector.load %arg9[%125, %c0_71, %c0_72] : memref<8x1x32xf32, #tpu.memory_space<vmem>>, vector<1x1x32xf32>
    %127 = vector.shape_cast %126 : vector<1x1x32xf32> to vector<1x32xf32>
    %128 = arith.addf %127, %124 : vector<1x32xf32>
    %129 = arith.index_cast %c6_i32 : i32 to index
    %c0_73 = arith.constant 0 : index
    %c0_74 = arith.constant 0 : index
    %130 = vector.load %arg9[%129, %c0_73, %c0_74] : memref<8x1x32xf32, #tpu.memory_space<vmem>>, vector<1x1x32xf32>
    %131 = vector.shape_cast %130 : vector<1x1x32xf32> to vector<1x32xf32>
    %132 = vector.shape_cast %128 : vector<1x32xf32> to vector<1x1x32xf32>
    tpu.vector_store %arg9[%129, %c0_73, %c0_74], %132 {strides = array<i32>} : memref<8x1x32xf32, #tpu.memory_space<vmem>>, vector<1x1x32xf32>,
    %c7_i32 = arith.constant 7 : i32
    %133 = arith.index_cast %c7_i32 : i32 to index
    %c0_75 = arith.constant 0 : index
    %c0_76 = arith.constant 0 : index
    %c0_77 = arith.constant 0 : index
    %134 = vector.load %arg3[%133, %c0_75, %c0_76, %c0_77] : memref<8x1x4x256xf32, #tpu.memory_space<vmem>>, vector<1x1x4x256xf32>
    %135 = vector.shape_cast %134 : vector<1x1x4x256xf32> to vector<4x256xf32>
    %cst_78 = arith.constant dense<0.000000e+00> : vector<32x256xf32>
    %136 = tpu.matmul %5, %135, %cst_78 {dimension_numbers = #tpu.dot_dimension_numbers<[1], [0], [0], [1], [0, 0, 1, 1], [], []>} : vector<32x4xf32>, vector<4x256xf32>, vector<32x256xf32> -> vector<32x256xf32>
    %137 = vector.broadcast %6 : vector<32x1xf32> to vector<32x256xf32>
    %138 = arith.addf %136, %137 : vector<32x256xf32>
    %cst_79 = arith.constant 0.000000e+00 : f32
    %139 = vector.broadcast %cst_79 : f32 to vector<32x256xf32>
    %140 = arith.maximumf %138, %139 : vector<32x256xf32>
    %cst_80 = arith.constant dense<0.000000e+00> : vector<32xf32>
    %141 = vector.multi_reduction <add>, %140, %cst_80 [1] : vector<32x256xf32> to vector<32xf32>
    %142 = vector.shape_cast %141 : vector<32xf32> to vector<1x32xf32>
    %143 = arith.index_cast %c7_i32 : i32 to index
    %c0_81 = arith.constant 0 : index
    %c0_82 = arith.constant 0 : index
    %144 = vector.load %arg9[%143, %c0_81, %c0_82] : memref<8x1x32xf32, #tpu.memory_space<vmem>>, vector<1x1x32xf32>
    %145 = vector.shape_cast %144 : vector<1x1x32xf32> to vector<1x32xf32>
    %146 = arith.addf %145, %142 : vector<1x32xf32>
    %147 = arith.index_cast %c7_i32 : i32 to index
    %c0_83 = arith.constant 0 : index
    %c0_84 = arith.constant 0 : index
    %148 = vector.load %arg9[%147, %c0_83, %c0_84] : memref<8x1x32xf32, #tpu.memory_space<vmem>>, vector<1x1x32xf32>
    %149 = vector.shape_cast %148 : vector<1x1x32xf32> to vector<1x32xf32>
    %150 = vector.shape_cast %146 : vector<1x32xf32> to vector<1x1x32xf32>
    tpu.vector_store %arg9[%147, %c0_83, %c0_84], %150 {strides = array<i32>} : memref<8x1x32xf32, #tpu.memory_space<vmem>>, vector<1x1x32xf32>,
    %c8_i32 = arith.constant 8 : i32
    %c3_i32_85 = arith.constant 3 : i32
    %151 = arith.cmpi eq, %arg1, %c3_i32_85 : i32
    %c0_i32_86 = arith.constant 0 : i32
    %152 = arith.cmpi eq, %arg2, %c0_i32_86 : i32
    %153 = arith.andi %151, %152 : i1
    %154 = arith.extui %153 : i1 to i32
    %c0_i32_87 = arith.constant 0 : i32
    %155 = arith.cmpi ne, %154, %c0_i32_87 : i32
    scf.if %155 {
      %c0_88 = arith.constant 0 : index
      %c0_89 = arith.constant 0 : index
      %c0_90 = arith.constant 0 : index
      %156 = vector.load %arg9[%c0_88, %c0_89, %c0_90] : memref<8x1x32xf32, #tpu.memory_space<vmem>>, vector<8x1x32xf32>
      %157 = vector.shape_cast %156 : vector<8x1x32xf32> to vector<8x32xf32>
      %cst_91 = arith.constant 9.765625E-4 : f32
      %158 = vector.broadcast %cst_91 : f32 to vector<8x32xf32>
      %159 = arith.mulf %157, %158 : vector<8x32xf32>
      %c0_92 = arith.constant 0 : index
      %c0_93 = arith.constant 0 : index
      %160 = vector.load %arg6[%c0_92, %c0_93] : memref<32x128xf32, #tpu.memory_space<vmem>>, vector<32x128xf32>
      %cst_94 = arith.constant dense<0.000000e+00> : vector<8x128xf32>
      %161 = tpu.matmul %159, %160, %cst_94 {dimension_numbers = #tpu.dot_dimension_numbers<[1], [0], [0], [1], [0, 0, 1, 1], [], []>} : vector<8x32xf32>, vector<32x128xf32>, vector<8x128xf32> -> vector<8x128xf32>
      %c0_95 = arith.constant 0 : index
      %c0_96 = arith.constant 0 : index
      %162 = vector.load %arg7[%c0_95, %c0_96] : memref<1x128xf32, #tpu.memory_space<vmem>>, vector<1x128xf32>
      %163 = vector.broadcast %162 : vector<1x128xf32> to vector<8x128xf32>
      %164 = arith.addf %161, %163 : vector<8x128xf32>
      %cst_97 = arith.constant dense<0xFF800000> : vector<8xf32>
      %165 = vector.multi_reduction <maximumf>, %164, %cst_97 [1] : vector<8x128xf32> to vector<8xf32>
      %166 = vector.shape_cast %165 : vector<8xf32> to vector<8x1xf32>
      %167 = vector.broadcast %166 : vector<8x1xf32> to vector<8x128xf32>
      %168 = arith.subf %164, %167 : vector<8x128xf32>
      %169 = math.exp %168 : vector<8x128xf32>
      %cst_98 = arith.constant dense<0.000000e+00> : vector<8xf32>
      %170 = vector.multi_reduction <add>, %169, %cst_98 [1] : vector<8x128xf32> to vector<8xf32>
      %171 = vector.shape_cast %170 : vector<8xf32> to vector<8x1xf32>
      %172 = tpu.reciprocal %171 {approx = true} : vector<8x1xf32> -> vector<8x1xf32>
      %173 = vector.broadcast %172 : vector<8x1xf32> to vector<8x128xf32>
      %174 = arith.mulf %169, %173 : vector<8x128xf32>
      %c0_99 = arith.constant 0 : index
      %c0_100 = arith.constant 0 : index
      %175 = vector.load %arg8[%c0_99, %c0_100] : memref<8x128xf32, #tpu.memory_space<vmem>>, vector<8x128xf32>
      tpu.vector_store %arg8[%c0_99, %c0_100], %174 {strides = array<i32>} : memref<8x128xf32, #tpu.memory_space<vmem>>, vector<8x128xf32>,
    } else {
    }
    return
  }
  func.func @transform_0(%arg0: i32, %arg1: i32, %arg2: i32) -> (i32, i32, i32, i32) {
    %c0_i32 = arith.constant 0 : i32
    %c0_i32_0 = arith.constant 0 : i32
    return %arg0, %arg1, %c0_i32, %arg2 : i32, i32, i32, i32
  }
  func.func @transform_1(%arg0: i32, %arg1: i32, %arg2: i32) -> (i32, i32) {
    %c0_i32 = arith.constant 0 : i32
    %c0_i32_0 = arith.constant 0 : i32
    %c0_i32_1 = arith.constant 0 : i32
    return %c0_i32, %c0_i32_0 : i32, i32
  }
  func.func @transform_2(%arg0: i32, %arg1: i32, %arg2: i32) -> (i32, i32) {
    %c0_i32 = arith.constant 0 : i32
    %c0_i32_0 = arith.constant 0 : i32
    %c0_i32_1 = arith.constant 0 : i32
    return %c0_i32, %c0_i32_0 : i32, i32
  }
  func.func @transform_3(%arg0: i32, %arg1: i32, %arg2: i32) -> (i32, i32) {
    %c0_i32 = arith.constant 0 : i32
    %c0_i32_0 = arith.constant 0 : i32
    %c0_i32_1 = arith.constant 0 : i32
    return %c0_i32, %c0_i32_0 : i32, i32
  }
  func.func @transform_4(%arg0: i32, %arg1: i32, %arg2: i32) -> (i32, i32) {
    %c0_i32 = arith.constant 0 : i32
    %c0_i32_0 = arith.constant 0 : i32
    %c0_i32_1 = arith.constant 0 : i32
    return %c0_i32, %c0_i32_0 : i32, i32
  }
  func.func @transform_5(%arg0: i32, %arg1: i32, %arg2: i32) -> (i32, i32) {
    %c0_i32 = arith.constant 0 : i32
    %c0_i32_0 = arith.constant 0 : i32
    return %arg0, %c0_i32 : i32, i32
  }
}

</mosaic_0001>

<llo_original>
// kernel: tpu_custom_call.1
$region0: #{tpu_custom_call.1}
  #allocation0 [shape = 'u32[]', space=smem, size = 0x4, offset = 0x4, fixed_abs, tag = 'smem constant byte address 0x4 - core index']
  #allocation1 [shape = 'u32[144,128]{1,0:T(1,128)}', space=vmem, size = 0x12000, scoped, tag = 'internal scratch']
  #allocation2 [shape = 'f32[8,1,32]{2,1,0:T(1,128)}', space=vmem, size = 0x1000, scoped, tag = 'scratch operand']
  %s0 = inlined_call_operand.hbm [shape: f32[8,4,4,256], index: 0, kind: input, shape index: {}]
  %s1 = inlined_call_operand.vmem [shape: f32[32,4], index: 1, kind: input, shape index: {}]
  %s2 = inlined_call_operand.vmem [shape: f32[32,1], index: 2, kind: input, shape index: {}]
  %s3 = inlined_call_operand.vmem [shape: f32[32,128], index: 3, kind: input, shape index: {}]
  %s4 = inlined_call_operand.vmem [shape: f32[1,128], index: 4, kind: input, shape index: {}]
  %s5 = inlined_call_operand.hbm [shape: f32[8,128], index: 5, kind: output, shape index: {}]
  %s6 = sld [smem:[#allocation0]]
  $region65: #{tpu_custom_call.1} parent=0
    _
  %s8 = ssub.s32 1, %s6
  %s9 = scalar_select 0, %s8, %s6
  $region1: #{tpu_custom_call.1} parent=0
    #allocation3 [shape = 'u8[65536]{0}', space=vmem, size = 0x10000, scoped, tag = 'input window, operand 0']
    #allocation4 [shape = 's32[2]{0}', space=sflag, size = 0x8, scoped, tag = 'scoped memory for tpu_custom_call.1']
    #allocation5 [shape = 's32[2]{0}', space=sflag, size = 0x8, scoped, tag = 'scoped memory for tpu_custom_call.1']
    #allocation6 [shape = 'u8[4096]{0}', space=vmem, size = 0x1000, scoped, tag = 'output window, operand 0, single buffered']
    %10 = vsyncpa [#allocation4], 0
    %s11 = scalar_lea.sflag [#allocation4], 1
    %12 = vsyncpa %s11, 0
    %13 = vsyncpa [#allocation5], 0
    loop: start=0, step=1, limit=6
    $region2: #{tpu_custom_call.1} parent=1 // loop_pre_header
      _
    $region3: #{tpu_custom_call.1} parent=1 // loop_header
      %s15 = sphi 0, %s19
      %p16 = scmp.ge.s32.totalorder %s15, 6
      %s22 = sphi 0, %s41
      %s23 = sphi 0, %s37
      %s24 = sphi 0, %s33
      %s25 = sphi 0, %s22
      %s26 = sphi 0, %s23
      %s27 = sphi 0, %s24
      %s28 = sphi 0, %s25
      %s29 = sphi 0, %s26
      %s30 = sphi 0, %s27
      %s48 = sphi 0, %s50
      %s51 = sphi 0, %s48
      %s52 = sphi 0, %s51
      %s68 = sphi 0, %s52
      %s72 = sphi 0, %s72
      %s74 = sphi 0, %s72
      %s75 = sphi 0, %s74
      %s89 = sphi 0, %s75
      %s93 = sphi 0, %s93
      %s95 = sphi 0, %s93
      %s96 = sphi 0, %s95
      %s110 = sphi 0, %s96
      %s114 = sphi 0, %s114
      %s116 = sphi 0, %s114
      %s117 = sphi 0, %s116
      %s131 = sphi 0, %s117
      %s135 = sphi 0, %s135
      %s137 = sphi 0, %s135
      %s138 = sphi 0, %s137
      %s152 = sphi 0, %s138
      %s158 = sphi 0, %s160
      %s161 = sphi 0, %s158
      %s162 = sphi 0, %s161
      %s178 = sphi 0, %s162
    $region4: #{tpu_custom_call.1} parent=1 // loop_header_branch
      %18 = sbr.rel (%p16) target = $region8
    $region5: #{tpu_custom_call.1} parent=1 // loop_body
      %s20 = ssub.s32 %s15, 1
      %s21 = ssub.s32 %s15, 2
      %s31 = sadd.s32 1, %s24
      %p32 = scmp.ge.s32.totalorder %s31, 1
      %s33 = scalar_select %p32, 0, %s31
      %s34 = sadd.s32 1, %s23
      %s35 = scalar_select %p32, %s34, %s23
      %p36 = scmp.ge.s32.totalorder %s35, 4
      %s37 = scalar_select %p36, 0, %s35
      %s38 = sadd.s32 1, %s22
      %s39 = scalar_select %p36, %s38, %s22
      %p40 = scmp.ge.s32.totalorder %s39, 1
      %s41 = scalar_select %p40, 0, %s39
      %s42 = ssub.s32 %s22, %s41
      %s43 = ssub.s32 %s23, %s37
      %s44 = sor.u32 %s42, %s43
      %s45 = ssub.s32 %s24, %s33
      %s46 = sor.u32 %s44, %s45
      %p47 = scmp.eq.s32.totalorder %s46, 0
      %s49 = sadd.s32 %s48, 1
      %s50 = scalar_select %p47, %s48, %s49
      %p53 = pneg %p47
      %p54 = scmp.eq.s32.totalorder %s15, 3
      %p55 = por %p53, %p54
      %p56 = scmp.ne.s32.totalorder %s48, %s51
      %p57 = scmp.eq.s32.totalorder %s15, 0
      %p58 = por %p56, %p57
      %p59 = scmp.ne.s32.totalorder %s48, %s51
      %p60 = scmp.eq.s32.totalorder %s20, 3
      %p61 = por %p59, %p60
      %p62 = scmp.ne.s32.totalorder %s51, %s52
      %p63 = scmp.eq.s32.totalorder %s20, 0
      %p64 = por %p62, %p63
      %p65 = scmp.ne.s32.totalorder %s51, %s52
      %p66 = scmp.eq.s32.totalorder %s21, 3
      %p67 = por %p65, %p66
      %p69 = scmp.ne.s32.totalorder %s52, %s68
      %p70 = scmp.eq.s32.totalorder %s21, 0
      %p71 = por %p69, %p70
      %s73 = sadd.s32 %s72, 1
      %p76 = scmp.eq.s32.totalorder %s15, 3
      %p77 = scmp.ne.s32.totalorder %s72, %s74
      %p78 = scmp.eq.s32.totalorder %s15, 0
      %p79 = por %p77, %p78
      %p80 = scmp.ne.s32.totalorder %s72, %s74
      %p81 = scmp.eq.s32.totalorder %s20, 3
      %p82 = por %p80, %p81
      %p83 = scmp.ne.s32.totalorder %s74, %s75
      %p84 = scmp.eq.s32.totalorder %s20, 0
      %p85 = por %p83, %p84
      %p86 = scmp.ne.s32.totalorder %s74, %s75
      %p87 = scmp.eq.s32.totalorder %s21, 3
      %p88 = por %p86, %p87
      %p90 = scmp.ne.s32.totalorder %s75, %s89
      %p91 = scmp.eq.s32.totalorder %s21, 0
      %p92 = por %p90, %p91
      %s94 = sadd.s32 %s93, 1
      %p97 = scmp.eq.s32.totalorder %s15, 3
      %p98 = scmp.ne.s32.totalorder %s93, %s95
      %p99 = scmp.eq.s32.totalorder %s15, 0
      %p100 = por %p98, %p99
      %p101 = scmp.ne.s32.totalorder %s93, %s95
      %p102 = scmp.eq.s32.totalorder %s20, 3
      %p103 = por %p101, %p102
      %p104 = scmp.ne.s32.totalorder %s95, %s96
      %p105 = scmp.eq.s32.totalorder %s20, 0
      %p106 = por %p104, %p105
      %p107 = scmp.ne.s32.totalorder %s95, %s96
      %p108 = scmp.eq.s32.totalorder %s21, 3
      %p109 = por %p107, %p108
      %p111 = scmp.ne.s32.totalorder %s96, %s110
      %p112 = scmp.eq.s32.totalorder %s21, 0
      %p113 = por %p111, %p112
      %s115 = sadd.s32 %s114, 1
      %p118 = scmp.eq.s32.totalorder %s15, 3
      %p119 = scmp.ne.s32.totalorder %s114, %s116
      %p120 = scmp.eq.s32.totalorder %s15, 0
      %p121 = por %p119, %p120
      %p122 = scmp.ne.s32.totalorder %s114, %s116
      %p123 = scmp.eq.s32.totalorder %s20, 3
      %p124 = por %p122, %p123
      %p125 = scmp.ne.s32.totalorder %s116, %s117
      %p126 = scmp.eq.s32.totalorder %s20, 0
      %p127 = por %p125, %p126
      %p128 = scmp.ne.s32.totalorder %s116, %s117
      %p129 = scmp.eq.s32.totalorder %s21, 3
      %p130 = por %p128, %p129
      %p132 = scmp.ne.s32.totalorder %s117, %s131
      %p133 = scmp.eq.s32.totalorder %s21, 0
      %p134 = por %p132, %p133
      %s136 = sadd.s32 %s135, 1
      %p139 = scmp.eq.s32.totalorder %s15, 3
      %p140 = scmp.ne.s32.totalorder %s135, %s137
      %p141 = scmp.eq.s32.totalorder %s15, 0
      %p142 = por %p140, %p141
      %p143 = scmp.ne.s32.totalorder %s135, %s137
      %p144 = scmp.eq.s32.totalorder %s20, 3
      %p145 = por %p143, %p144
      %p146 = scmp.ne.s32.totalorder %s137, %s138
      %p147 = scmp.eq.s32.totalorder %s20, 0
      %p148 = por %p146, %p147
      %p149 = scmp.ne.s32.totalorder %s137, %s138
      %p150 = scmp.eq.s32.totalorder %s21, 3
      %p151 = por %p149, %p150
      %p153 = scmp.ne.s32.totalorder %s138, %s152
      %p154 = scmp.eq.s32.totalorder %s21, 0
      %p155 = por %p153, %p154
      %s156 = ssub.s32 %s22, %s41
      %p157 = scmp.eq.s32.totalorder %s156, 0
      %s159 = sadd.s32 %s158, 1
      %s160 = scalar_select %p157, %s158, %s159
      %p163 = pneg %p157
      %p164 = scmp.eq.s32.totalorder %s15, 3
      %p165 = por %p163, %p164
      %p166 = scmp.ne.s32.totalorder %s158, %s161
      %p167 = scmp.eq.s32.totalorder %s15, 0
      %p168 = por %p166, %p167
      %p169 = scmp.ne.s32.totalorder %s158, %s161
      %p170 = scmp.eq.s32.totalorder %s20, 3
      %p171 = por %p169, %p170
      %p172 = scmp.ne.s32.totalorder %s161, %s162
      %p173 = scmp.eq.s32.totalorder %s20, 0
      %p174 = por %p172, %p173
      %p175 = scmp.ne.s32.totalorder %s161, %s162
      %p176 = scmp.eq.s32.totalorder %s21, 3
      %p177 = por %p175, %p176
      %p179 = scmp.ne.s32.totalorder %s162, %s178
      %p180 = scmp.eq.s32.totalorder %s21, 0
      %p181 = por %p179, %p180
      %p182 = scmp.le.s32.totalorder 1, %s15
      %p183 = scmp.lt.s32.totalorder %s15, 5
      %p184 = pnand %p182, %p183
      %p185 = pneg %p184
      // Predicated region
      $region9: #{tpu_custom_call.1} parent=5 // pred_check
        _
      $region10: #{tpu_custom_call.1} parent=5 // pred_check_branch
        %187 = sbr.rel (%p184) target = $region12
      $region11: #{tpu_custom_call.1} parent=5 // pred_region
        %s188 = ssub.s32 %s15, 1
        // Predicated region
        $region13: #{tpu_custom_call.1} parent=11 // pred_check
          %p189 = pneg %p85
        $region14: #{tpu_custom_call.1} parent=11 // pred_check_branch
          %191 = sbr.rel (%p189) target = $region16
        $region15: #{tpu_custom_call.1} parent=11 // pred_region
          _
        $region16: #{tpu_custom_call.1} parent=11 // pred_fallthru
          _
        // Predicated region
        $region17: #{tpu_custom_call.1} parent=11 // pred_check
          %p192 = pneg %p106
        $region18: #{tpu_custom_call.1} parent=11 // pred_check_branch
          %194 = sbr.rel (%p192) target = $region20
        $region19: #{tpu_custom_call.1} parent=11 // pred_region
          _
        $region20: #{tpu_custom_call.1} parent=11 // pred_fallthru
          _
        // Predicated region
        $region21: #{tpu_custom_call.1} parent=11 // pred_check
          %p195 = pneg %p127
        $region22: #{tpu_custom_call.1} parent=11 // pred_check_branch
          %197 = sbr.rel (%p195) target = $region24
        $region23: #{tpu_custom_call.1} parent=11 // pred_region
          _
        $region24: #{tpu_custom_call.1} parent=11 // pred_fallthru
          _
        // Predicated region
        $region25: #{tpu_custom_call.1} parent=11 // pred_check
          %p198 = pneg %p148
        $region26: #{tpu_custom_call.1} parent=11 // pred_check_branch
          %200 = sbr.rel (%p198) target = $region28
        $region27: #{tpu_custom_call.1} parent=11 // pred_region
          _
        $region28: #{tpu_custom_call.1} parent=11 // pred_fallthru
          _
      $region12: #{tpu_custom_call.1} parent=5 // pred_fallthru
        _
      %p201 = scmp.lt.s32.totalorder %s15, 4
      // Predicated region
      $region29: #{tpu_custom_call.1} parent=5 // pred_check
        %p202 = pneg %p201
      $region30: #{tpu_custom_call.1} parent=5 // pred_check_branch
        %204 = sbr.rel (%p202) target = $region32
      $region31: #{tpu_custom_call.1} parent=5 // pred_region
        // Predicated region
        $region33: #{tpu_custom_call.1} parent=31 // pred_check
          %p205 = pneg %p58
        $region34: #{tpu_custom_call.1} parent=31 // pred_check_branch
          %207 = sbr.rel (%p205) target = $region36
        $region35: #{tpu_custom_call.1} parent=31 // pred_region
          %s208 = sand.u32 %s48, 1
          %s209 = scalar_lea.sflag [#allocation4], %s208
          %s210 = sand.u32 %s48, 1
          %s211 = smul.addr %s210, 64
          %s212 = scalar_lea.vmem [#allocation3], %s211
          %s213 = smul.u32 8, %s22
          %s214 = smul.u32 2, %s24
          %s216 = ssub.s32 1024, 1024
          %217 = vsyncadd %s209, %s216
          %s218 = smul.addr %s23, 2
          %s219 = sadd.s32 %s214, %s218
          %s220 = smul.addr %s213, 8
          %s221 = sadd.s32 %s219, %s220
          %s222 = smul.addr %s221, 64
          %s223 = scalar_lea.hbm %s0, %s222
          %s224 = sshll.u32 %s212, 4
          %s225 = int_to_ptr.vmem [resolvable:$true] %s224
          %230 = dma.hbm_to_vmem [thread:$0]  %s223, 1024, %s225, %s209, 512, 128, 8
        $region36: #{tpu_custom_call.1} parent=31 // pred_fallthru
          _
      $region32: #{tpu_custom_call.1} parent=5 // pred_fallthru
        _
      %p231 = scmp.le.s32.totalorder 1, %s15
      %p232 = scmp.lt.s32.totalorder %s15, 5
      %p233 = pnand %p231, %p232
      %p234 = pneg %p233
      // Predicated region
      $region37: #{tpu_custom_call.1} parent=5 // pred_check
        _
      $region38: #{tpu_custom_call.1} parent=5 // pred_check_branch
        %236 = sbr.rel (%p233) target = $region40
      $region39: #{tpu_custom_call.1} parent=5 // pred_region
        %s237 = ssub.s32 %s15, 1
        %s238 = sand.u32 %s51, 1
        %s239 = scalar_lea.sflag [#allocation4], %s238
        %s240 = sand.u32 %s51, 1
        %s241 = smul.addr %s240, 64
        %s242 = scalar_lea.vmem [#allocation3], %s241
        // Predicated region
        $region41: #{tpu_custom_call.1} parent=39 // pred_check
          %p243 = pneg %p64
        $region42: #{tpu_custom_call.1} parent=39 // pred_check_branch
          %245 = sbr.rel (%p243) target = $region44
        $region43: #{tpu_custom_call.1} parent=39 // pred_region
          %246 = dma.done %s239, 1024
        $region44: #{tpu_custom_call.1} parent=39 // pred_fallthru
          _
        %s247 = sand.u32 %s51, 1
        %s248 = scalar_lea.sflag [#allocation4], %s247
        %s249 = sand.u32 %s51, 1
        %s250 = smul.addr %s249, 64
        %s251 = scalar_lea.vmem [#allocation3], %s250
        %p252 = pneg %p64
        %p253 = pneg %p61
        %p254 = pneg %p85
        %p255 = pneg %p82
        %p256 = pneg %p106
        %p257 = pneg %p103
        %p258 = pneg %p127
        %p259 = pneg %p124
        %p260 = pneg %p148
        %p261 = pneg %p145
        %p262 = pneg %p174
        %p263 = pneg %p171
        %s264 = smul.u32 8, %s25
        %s265 = smul.u32 2, %s27
        %p266 = scmp.eq.s32.totalorder %s26, 0
        %p267 = scmp.eq.s32.totalorder %s27, 0
        %p268 = pnand %p266, %p267
        %p269 = pneg %p268
        // Predicated region
        $region45: #{tpu_custom_call.1} parent=39 // pred_check
          _
        $region46: #{tpu_custom_call.1} parent=39 // pred_check_branch
          %271 = sbr.rel (%p268) target = $region48
        $region47: #{tpu_custom_call.1} parent=39 // pred_region
          %vm272 = vcmask 253952
          %273 = vst.msk [vmem:[#allocation2] sm:$0x1] %vm272, 0.0
          %274 = vst.msk [vmem:[#allocation2 + $0x1] sm:$0x1] %vm272, 0.0
          %275 = vst.msk [vmem:[#allocation2 + $0x2] sm:$0x1] %vm272, 0.0
          %276 = vst.msk [vmem:[#allocation2 + $0x3] sm:$0x1] %vm272, 0.0
          %277 = vst.msk [vmem:[#allocation2 + $0x4] sm:$0x1] %vm272, 0.0
          %278 = vst.msk [vmem:[#allocation2 + $0x5] sm:$0x1] %vm272, 0.0
          %279 = vst.msk [vmem:[#allocation2 + $0x6] sm:$0x1] %vm272, 0.0
          %280 = vst.msk [vmem:[#allocation2 + $0x7] sm:$0x1] %vm272, 0.0
        $region48: #{tpu_custom_call.1} parent=39 // pred_fallthru
          _
        %v281 = vld [vmem:[%s1] sm:$0xff]
        %v282 = vld [vmem:[%s1 + $0x8] sm:$0xff]
        %v283 = vld [vmem:[%s1 + $0x10] sm:$0xff]
        %v284 = vld [vmem:[%s1 + $0x18] sm:$0xff]
        %v285 = vld [vmem:[%s2] sm:$0xff]
        %v286 = vld [vmem:[%s2 + $0x8] sm:$0xff]
        %v287 = vld [vmem:[%s2 + $0x10] sm:$0xff]
        %v288 = vld [vmem:[%s2 + $0x18] sm:$0xff]
        %v289 = vld [vmem:[%s242] sm:$0xff]
        %291 = vset.pattern.permute.xlu0 0
        %292 = vperm.xlu0 %291, %v285
        %v293 = vpop.permute.xlu0 %292
        %296 = vset.pattern.permute.xlu0 0
        %297 = vperm.xlu0 %296, %v286
        %v298 = vpop.permute.xlu0 %297
        %301 = vset.pattern.permute.xlu0 0
        %302 = vperm.xlu0 %301, %v287
        %v303 = vpop.permute.xlu0 %302
        %306 = vset.pattern.permute.xlu0 0
        %307 = vperm.xlu0 %306, %v288
        %v308 = vpop.permute.xlu0 %307
        %v311 = vcombine.high %v289, %v289
        %vm312 = vcmask 31744
        %v314 = vsel %vm312, %v281, 0
        %v317 = vsel %vm312, %v282, 0
        %v320 = vsel %vm312, %v283, 0
        %v323 = vsel %vm312, %v284, 0
        %vm325 = vcmask 1043456
        %v326 = vsel %vm325, %v289, 0
        %v328 = vsel %vm325, %v311, 0
        %330 = vmatprep.subr.mxu0 %v328
        %331 = vmatpush1.msra.mxu0 %v326
        %332 = vmatprep.subr.mxu0 0.0
        %333 = vmatpush1.msra.mxu0 0.0
        %334 = vmatprep.subr.mxu0 0.0
        %335 = vmatpush1.msra.mxu0 0.0
        %336 = vmatprep.subr.mxu0 0.0
        %337 = vmatpush1.msra.mxu0 0.0
        %338 = vmatprep.subr.mxu0 0.0
        %339 = vmatpush1.msra.mxu0 0.0
        %340 = vmatprep.subr.mxu0 0.0
        %341 = vmatpush1.msra.mxu0 0.0
        %342 = vmatprep.subr.mxu0 0.0
        %343 = vmatpush1.msra.mxu0 0.0
        %344 = vmatprep.subr.mxu0 0.0
        %345 = vmatpush1.msra.mxu0 0.0
        %346 = vmatprep.subr.mxu0 0.0
        %347 = vmatpush1.msra.mxu0 0.0
        %348 = vmatprep.subr.mxu0 0.0
        %349 = vmatpush1.msra.mxu0 0.0
        %350 = vmatprep.subr.mxu0 0.0
        %351 = vmatpush1.msra.mxu0 0.0
        %352 = vmatprep.subr.mxu0 0.0
        %353 = vmatpush1.msra.mxu0 0.0
        %354 = vmatprep.subr.mxu0 0.0
        %355 = vmatpush1.msra.mxu0 0.0
        %356 = vmatprep.subr.mxu0 0.0
        %357 = vmatpush1.msra.mxu0 0.0
        %358 = vmatprep.subr.mxu0 0.0
        %359 = vmatpush1.msra.mxu0 0.0
        %360 = vmatprep.subr.mxu0 0.0
        %361 = vmatpush1.msra.mxu0 0.0
        %362 = vmatprep.subr.mxu0 0.0
        %363 = vmatpush1.msra.mxu0 0.0
        %364 = vmatprep.subr.mxu0 0.0
        %365 = vmatpush1.msra.mxu0 0.0
        %366 = vmatprep.subr.mxu0 0.0
        %367 = vmatpush1.msra.mxu0 0.0
        %368 = vmatprep.subr.mxu0 0.0
        %369 = vmatpush1.msra.mxu0 0.0
        %370 = vmatprep.subr.mxu0 0.0
        %371 = vmatpush1.msra.mxu0 0.0
        %372 = vmatprep.subr.mxu0 0.0
        %373 = vmatpush1.msra.mxu0 0.0
        %374 = vmatprep.subr.mxu0 0.0
        %375 = vmatpush1.msra.mxu0 0.0
        %376 = vmatprep.subr.mxu0 0.0
        %377 = vmatpush1.msra.mxu0 0.0
        %378 = vmatprep.subr.mxu0 0.0
        %379 = vmatpush1.msra.mxu0 0.0
        %380 = vmatprep.subr.mxu0 0.0
        %381 = vmatpush1.msra.mxu0 0.0
        %382 = vmatprep.subr.mxu0 0.0
        %383 = vmatpush1.msra.mxu0 0.0
        %384 = vmatprep.subr.mxu0 0.0
        %385 = vmatpush1.msra.mxu0 0.0
        %386 = vmatprep.subr.mxu0 0.0
        %387 = vmatpush1.msra.mxu0 0.0
        %388 = vmatprep.subr.mxu0 0.0
        %389 = vmatpush1.msra.mxu0 0.0
        %390 = vmatprep.subr.mxu0 0.0
        %391 = vmatpush1.msra.mxu0 0.0
        %392 = vmatprep.subr.mxu0 0.0
        %393 = vmatpush1.msra.mxu0 0.0
        %394 = vmatprep.mubr.f32.mxu0 0.0
        %395 = vmatmul.mubr.f32.gmra.mrb[0].mxu0 %v314
        %v396 = vpop.f32.mrb[0].mxu0
        %v397 = vadd.f32 %v293, %v396
        %v398 = vpop.f32.mrb[0].mxu0
        %v399 = vadd.f32 %v293, %v398
        %400 = vmatprep.mubr.f32.mxu0 0.0
        %401 = vmatmul.mubr.f32.gmra.mrb[0].mxu0 %v317
        %v402 = vpop.f32.mrb[0].mxu0
        %v403 = vadd.f32 %v298, %v402
        %v404 = vpop.f32.mrb[0].mxu0
        %v405 = vadd.f32 %v298, %v404
        %406 = vmatprep.mubr.f32.mxu0 0.0
        %407 = vmatmul.mubr.f32.gmra.mrb[0].mxu0 %v320
        %v408 = vpop.f32.mrb[0].mxu0
        %v409 = vadd.f32 %v303, %v408
        %v410 = vpop.f32.mrb[0].mxu0
        %v411 = vadd.f32 %v303, %v410
        %412 = vmatprep.mubr.f32.mxu0 0.0
        %413 = vmatmul.mubr.f32.gmra.mrb[0].mxu0 %v323
        %v414 = vpop.f32.mrb[0].mxu0
        %v415 = vadd.f32 %v308, %v414
        %v416 = vpop.f32.mrb[0].mxu0
        %v417 = vadd.f32 %v308, %v416
        %418 = vdwg.mxu0
        %v419 = vmax.f32 %v397, 0.0
        %v420 = vmax.f32 %v399, 0.0
        %v421 = vmax.f32 %v403, 0.0
        %v422 = vmax.f32 %v405, 0.0
        %v423 = vmax.f32 %v409, 0.0
        %v424 = vmax.f32 %v411, 0.0
        %v425 = vmax.f32 %v415, 0.0
        %v426 = vmax.f32 %v417, 0.0
        %v427 = vadd.f32 %v419, %v420
        %428 = vadd.xlane.f32.xlu0 %v427
        %v429 = vpop.xlane.xlu0 %428
        %v430 = vadd.f32 %v421, %v422
        %431 = vadd.xlane.f32.xlu0 %v430
        %v432 = vpop.xlane.xlu0 %431
        %v433 = vadd.f32 %v423, %v424
        %434 = vadd.xlane.f32.xlu0 %v433
        %v435 = vpop.xlane.xlu0 %434
        %v436 = vadd.f32 %v425, %v426
        %437 = vadd.xlane.f32.xlu0 %v436
        %v438 = vpop.xlane.xlu0 %437
        %v439 = vld [vmem:[#allocation2] sm:$0x1]
        %v444 = vlaneseq
        %v445 = vshrl.u32 %v444, 7
        %v446 = vsub.s32 0, %v445
        %v447 = vrot.slane %v429, %v446
        %v448 = vlaneseq
        %v449 = vshrl.u32 %v448, 7
        %v450 = vsub.s32 1, %v449
        %v451 = vrot.slane %v429, %v450
        %v452 = vlaneseq
        %v453 = vshrl.u32 %v452, 7
        %v454 = vsub.s32 2, %v453
        %v455 = vrot.slane %v429, %v454
        %v456 = vlaneseq
        %v457 = vshrl.u32 %v456, 7
        %v458 = vsub.s32 3, %v457
        %v459 = vrot.slane %v429, %v458
        %v460 = vlaneseq
        %v461 = vshrl.u32 %v460, 7
        %v462 = vsub.s32 4, %v461
        %v463 = vrot.slane %v429, %v462
        %v464 = vlaneseq
        %v465 = vshrl.u32 %v464, 7
        %v466 = vsub.s32 5, %v465
        %v467 = vrot.slane %v429, %v466
        %v468 = vlaneseq
        %v469 = vshrl.u32 %v468, 7
        %v470 = vsub.s32 6, %v469
        %v471 = vrot.slane %v429, %v470
        %v472 = vlaneseq
        %v473 = vshrl.u32 %v472, 7
        %v474 = vsub.s32 7, %v473
        %v475 = vrot.slane %v429, %v474
        %v476 = vlaneseq
        %v477 = vshrl.u32 %v476, 7
        %v478 = vsub.s32 0, %v477
        %v479 = vrot.slane %v432, %v478
        %v480 = vlaneseq
        %v481 = vshrl.u32 %v480, 7
        %v482 = vsub.s32 1, %v481
        %v483 = vrot.slane %v432, %v482
        %v484 = vlaneseq
        %v485 = vshrl.u32 %v484, 7
        %v486 = vsub.s32 2, %v485
        %v487 = vrot.slane %v432, %v486
        %v488 = vlaneseq
        %v489 = vshrl.u32 %v488, 7
        %v490 = vsub.s32 3, %v489
        %v491 = vrot.slane %v432, %v490
        %v492 = vlaneseq
        %v493 = vshrl.u32 %v492, 7
        %v494 = vsub.s32 4, %v493
        %v495 = vrot.slane %v432, %v494
        %v496 = vlaneseq
        %v497 = vshrl.u32 %v496, 7
        %v498 = vsub.s32 5, %v497
        %v499 = vrot.slane %v432, %v498
        %v500 = vlaneseq
        %v501 = vshrl.u32 %v500, 7
        %v502 = vsub.s32 6, %v501
        %v503 = vrot.slane %v432, %v502
        %v504 = vlaneseq
        %v505 = vshrl.u32 %v504, 7
        %v506 = vsub.s32 7, %v505
        %v507 = vrot.slane %v432, %v506
        %v508 = vlaneseq
        %v509 = vshrl.u32 %v508, 7
        %v510 = vsub.s32 0, %v509
        %v511 = vrot.slane %v435, %v510
        %v512 = vlaneseq
        %v513 = vshrl.u32 %v512, 7
        %v514 = vsub.s32 1, %v513
        %v515 = vrot.slane %v435, %v514
        %v516 = vlaneseq
        %v517 = vshrl.u32 %v516, 7
        %v518 = vsub.s32 2, %v517
        %v519 = vrot.slane %v435, %v518
        %v520 = vlaneseq
        %v521 = vshrl.u32 %v520, 7
        %v522 = vsub.s32 3, %v521
        %v523 = vrot.slane %v435, %v522
        %v524 = vlaneseq
        %v525 = vshrl.u32 %v524, 7
        %v526 = vsub.s32 4, %v525
        %v527 = vrot.slane %v435, %v526
        %v528 = vlaneseq
        %v529 = vshrl.u32 %v528, 7
        %v530 = vsub.s32 5, %v529
        %v531 = vrot.slane %v435, %v530
        %v532 = vlaneseq
        %v533 = vshrl.u32 %v532, 7
        %v534 = vsub.s32 6, %v533
        %v535 = vrot.slane %v435, %v534
        %v536 = vlaneseq
        %v537 = vshrl.u32 %v536, 7
        %v538 = vsub.s32 7, %v537
        %v539 = vrot.slane %v435, %v538
        %v540 = vlaneseq
        %v541 = vshrl.u32 %v540, 7
        %v542 = vsub.s32 0, %v541
        %v543 = vrot.slane %v438, %v542
        %v544 = vlaneseq
        %v545 = vshrl.u32 %v544, 7
        %v546 = vsub.s32 1, %v545
        %v547 = vrot.slane %v438, %v546
        %v548 = vlaneseq
        %v549 = vshrl.u32 %v548, 7
        %v550 = vsub.s32 2, %v549
        %v551 = vrot.slane %v438, %v550
        %v552 = vlaneseq
        %v553 = vshrl.u32 %v552, 7
        %v554 = vsub.s32 3, %v553
        %v555 = vrot.slane %v438, %v554
        %v556 = vlaneseq
        %v557 = vshrl.u32 %v556, 7
        %v558 = vsub.s32 4, %v557
        %v559 = vrot.slane %v438, %v558
        %v560 = vlaneseq
        %v561 = vshrl.u32 %v560, 7
        %v562 = vsub.s32 5, %v561
        %v563 = vrot.slane %v438, %v562
        %v564 = vlaneseq
        %v565 = vshrl.u32 %v564, 7
        %v566 = vsub.s32 6, %v565
        %v567 = vrot.slane %v438, %v566
        %v568 = vlaneseq
        %v569 = vshrl.u32 %v568, 7
        %v570 = vsub.s32 7, %v569
        %v571 = vrot.slane %v438, %v570
        %v572 = vcombine.low %v447, %v451
        %v573 = vcombine.low %v455, %v459
        %v574 = vcombine.low %v463, %v467
        %v575 = vcombine.low %v471, %v475
        %v577 = vunpack.c.l.s4 1966171168
        %v578 = vunpack.c.0.s8 %v577
        %v579 = vlaneseq
        %v580 = vshrl.u32 %v579, 7
        %v581 = vsub.s32 %v578, %v580
        %v582 = vrot.slane %v572, %v581
        %v584 = vunpack.c.l.s4 1966171168
        %v585 = vunpack.c.0.s8 %v584
        %v586 = vlaneseq
        %v587 = vshrl.u32 %v586, 7
        %v588 = vsub.s32 %v585, %v587
        %v589 = vrot.slane %v573, %v588
        %v591 = vunpack.c.l.s4 1966171168
        %v592 = vunpack.c.0.s8 %v591
        %v593 = vlaneseq
        %v594 = vshrl.u32 %v593, 7
        %v595 = vsub.s32 %v592, %v594
        %v596 = vrot.slane %v574, %v595
        %v598 = vunpack.c.l.s4 1966171168
        %v599 = vunpack.c.0.s8 %v598
        %v600 = vlaneseq
        %v601 = vshrl.u32 %v600, 7
        %v602 = vsub.s32 %v599, %v601
        %v603 = vrot.slane %v575, %v602
        %v604 = vcombine.low %v582, %v589
        %v605 = vcombine.low %v596, %v603
        %v607 = vunpack.c.l.s4 1966171168
        %v608 = vunpack.c.0.s8 %v607
        %v609 = vlaneseq
        %v610 = vshrl.u32 %v609, 7
        %v611 = vsub.s32 %v608, %v610
        %v612 = vrot.slane %v604, %v611
        %v614 = vunpack.c.l.s4 1966171168
        %v615 = vunpack.c.0.s8 %v614
        %v616 = vlaneseq
        %v617 = vshrl.u32 %v616, 7
        %v618 = vsub.s32 %v615, %v617
        %v619 = vrot.slane %v605, %v618
        %v620 = vcombine.low %v612, %v619
        %v621 = vcombine.low %v479, %v483
        %v622 = vcombine.low %v487, %v491
        %v623 = vcombine.low %v495, %v499
        %v624 = vcombine.low %v503, %v507
        %v626 = vunpack.c.l.s4 1966171168
        %v627 = vunpack.c.0.s8 %v626
        %v628 = vlaneseq
        %v629 = vshrl.u32 %v628, 7
        %v630 = vsub.s32 %v627, %v629
        %v631 = vrot.slane %v621, %v630
        %v633 = vunpack.c.l.s4 1966171168
        %v634 = vunpack.c.0.s8 %v633
        %v635 = vlaneseq
        %v636 = vshrl.u32 %v635, 7
        %v637 = vsub.s32 %v634, %v636
        %v638 = vrot.slane %v622, %v637
        %v640 = vunpack.c.l.s4 1966171168
        %v641 = vunpack.c.0.s8 %v640
        %v642 = vlaneseq
        %v643 = vshrl.u32 %v642, 7
        %v644 = vsub.s32 %v641, %v643
        %v645 = vrot.slane %v623, %v644
        %v647 = vunpack.c.l.s4 1966171168
        %v648 = vunpack.c.0.s8 %v647
        %v649 = vlaneseq
        %v650 = vshrl.u32 %v649, 7
        %v651 = vsub.s32 %v648, %v650
        %v652 = vrot.slane %v624, %v651
        %v653 = vcombine.low %v631, %v638
        %v654 = vcombine.low %v645, %v652
        %v656 = vunpack.c.l.s4 1966171168
        %v657 = vunpack.c.0.s8 %v656
        %v658 = vlaneseq
        %v659 = vshrl.u32 %v658, 7
        %v660 = vsub.s32 %v657, %v659
        %v661 = vrot.slane %v653, %v660
        %v663 = vunpack.c.l.s4 1966171168
        %v664 = vunpack.c.0.s8 %v663
        %v665 = vlaneseq
        %v666 = vshrl.u32 %v665, 7
        %v667 = vsub.s32 %v664, %v666
        %v668 = vrot.slane %v654, %v667
        %v669 = vcombine.low %v661, %v668
        %v670 = vcombine.low %v511, %v515
        %v671 = vcombine.low %v519, %v523
        %v672 = vcombine.low %v527, %v531
        %v673 = vcombine.low %v535, %v539
        %v675 = vunpack.c.l.s4 1966171168
        %v676 = vunpack.c.0.s8 %v675
        %v677 = vlaneseq
        %v678 = vshrl.u32 %v677, 7
        %v679 = vsub.s32 %v676, %v678
        %v680 = vrot.slane %v670, %v679
        %v682 = vunpack.c.l.s4 1966171168
        %v683 = vunpack.c.0.s8 %v682
        %v684 = vlaneseq
        %v685 = vshrl.u32 %v684, 7
        %v686 = vsub.s32 %v683, %v685
        %v687 = vrot.slane %v671, %v686
        %v689 = vunpack.c.l.s4 1966171168
        %v690 = vunpack.c.0.s8 %v689
        %v691 = vlaneseq
        %v692 = vshrl.u32 %v691, 7
        %v693 = vsub.s32 %v690, %v692
        %v694 = vrot.slane %v672, %v693
        %v696 = vunpack.c.l.s4 1966171168
        %v697 = vunpack.c.0.s8 %v696
        %v698 = vlaneseq
        %v699 = vshrl.u32 %v698, 7
        %v700 = vsub.s32 %v697, %v699
        %v701 = vrot.slane %v673, %v700
        %v702 = vcombine.low %v680, %v687
        %v703 = vcombine.low %v694, %v701
        %v705 = vunpack.c.l.s4 1966171168
        %v706 = vunpack.c.0.s8 %v705
        %v707 = vlaneseq
        %v708 = vshrl.u32 %v707, 7
        %v709 = vsub.s32 %v706, %v708
        %v710 = vrot.slane %v702, %v709
        %v712 = vunpack.c.l.s4 1966171168
        %v713 = vunpack.c.0.s8 %v712
        %v714 = vlaneseq
        %v715 = vshrl.u32 %v714, 7
        %v716 = vsub.s32 %v713, %v715
        %v717 = vrot.slane %v703, %v716
        %v718 = vcombine.low %v710, %v717
        %v719 = vcombine.low %v543, %v547
        %v720 = vcombine.low %v551, %v555
        %v721 = vcombine.low %v559, %v563
        %v722 = vcombine.low %v567, %v571
        %v724 = vunpack.c.l.s4 1966171168
        %v725 = vunpack.c.0.s8 %v724
        %v726 = vlaneseq
        %v727 = vshrl.u32 %v726, 7
        %v728 = vsub.s32 %v725, %v727
        %v729 = vrot.slane %v719, %v728
        %v731 = vunpack.c.l.s4 1966171168
        %v732 = vunpack.c.0.s8 %v731
        %v733 = vlaneseq
        %v734 = vshrl.u32 %v733, 7
        %v735 = vsub.s32 %v732, %v734
        %v736 = vrot.slane %v720, %v735
        %v738 = vunpack.c.l.s4 1966171168
        %v739 = vunpack.c.0.s8 %v738
        %v740 = vlaneseq
        %v741 = vshrl.u32 %v740, 7
        %v742 = vsub.s32 %v739, %v741
        %v743 = vrot.slane %v721, %v742
        %v745 = vunpack.c.l.s4 1966171168
        %v746 = vunpack.c.0.s8 %v745
        %v747 = vlaneseq
        %v748 = vshrl.u32 %v747, 7
        %v749 = vsub.s32 %v746, %v748
        %v750 = vrot.slane %v722, %v749
        %v751 = vcombine.low %v729, %v736
        %v752 = vcombine.low %v743, %v750
        %v754 = vunpack.c.l.s4 1966171168
        %v755 = vunpack.c.0.s8 %v754
        %v756 = vlaneseq
        %v757 = vshrl.u32 %v756, 7
        %v758 = vsub.s32 %v755, %v757
        %v759 = vrot.slane %v751, %v758
        %v761 = vunpack.c.l.s4 1966171168
        %v762 = vunpack.c.0.s8 %v761
        %v763 = vlaneseq
        %v764 = vshrl.u32 %v763, 7
        %v765 = vsub.s32 %v762, %v764
        %v766 = vrot.slane %v752, %v765
        %v767 = vcombine.low %v759, %v766
        %768 = vset.pattern.permute.xlu0 0
        %769 = vperm.xlu0 %768, %v620
        %v770 = vpop.permute.xlu0 %769
        %771 = vset.pattern.permute.xlu0 0
        %772 = vperm.xlu0 %771, %v669
        %v773 = vpop.permute.xlu0 %772
        %774 = vset.pattern.permute.xlu0 0
        %775 = vperm.xlu0 %774, %v718
        %v776 = vpop.permute.xlu0 %775
        %777 = vset.pattern.permute.xlu0 0
        %778 = vperm.xlu0 %777, %v767
        %v779 = vpop.permute.xlu0 %778
        %v780 = vlaneseq
        %v781 = vand.u32 %v780, 127
        %v782 = vlaneseq
        %v783 = vshrl.u32 %v782, 7
        %v784 = vsub.s32 %v781, %v783
        %v785 = vrot.slane %v770, %v784
        %v786 = vadd.s32 %v781, 4294967288
        %v787 = vlaneseq
        %v788 = vshrl.u32 %v787, 7
        %v789 = vsub.s32 %v786, %v788
        %v790 = vrot.slane %v773, %v789
        %vm791 = vcmask 130112
        %v792 = vsel %vm791, %v790, %v785
        %v793 = vadd.s32 %v781, 4294967280
        %v794 = vlaneseq
        %v795 = vshrl.u32 %v794, 7
        %v796 = vsub.s32 %v793, %v795
        %v797 = vrot.slane %v776, %v796
        %vm798 = vcmask 195712
        %v799 = vsel %vm798, %v797, %v792
        %v800 = vadd.s32 %v781, 4294967272
        %v801 = vlaneseq
        %v802 = vshrl.u32 %v801, 7
        %v803 = vsub.s32 %v800, %v802
        %v804 = vrot.slane %v779, %v803
        %vm805 = vcmask 261312
        %v806 = vsel %vm805, %v804, %v799
        %v808 = vunpack.c.l.s4 1966171168
        %v809 = vunpack.c.0.s8 %v808
        %v810 = vlaneseq
        %v811 = vshrl.u32 %v810, 7
        %v812 = vsub.s32 %v809, %v811
        %v813 = vrot.slane %v806, %v812
        %v815 = vunpack.c.l.s4 1966171168
        %v816 = vunpack.c.0.s8 %v815
        %v817 = vlaneseq
        %v818 = vshrl.u32 %v817, 7
        %v819 = vsub.s32 %v816, %v818
        %v820 = vrot.slane %v813, %v819
        %v822 = vadd.f32 %v439, %v820
        %vm823 = vcmask 253952
        %824 = vst.msk [vmem:[#allocation2] sm:$0x1] %vm823, %v822
        %s825 = scalar_lea.vmem %s242, 8 [#allocation3]
        %v826 = vld [vmem:[%s825] sm:$0xff]
        %v828 = vcombine.high %v826, %v826
        %v829 = vsel %vm325, %v826, 0
        %v831 = vsel %vm325, %v828, 0
        %833 = vmatprep.subr.mxu0 %v831
        %834 = vmatpush1.msra.mxu0 %v829
        %835 = vmatprep.subr.mxu0 0.0
        %836 = vmatpush1.msra.mxu0 0.0
        %837 = vmatprep.subr.mxu0 0.0
        %838 = vmatpush1.msra.mxu0 0.0
        %839 = vmatprep.subr.mxu0 0.0
        %840 = vmatpush1.msra.mxu0 0.0
        %841 = vmatprep.subr.mxu0 0.0
        %842 = vmatpush1.msra.mxu0 0.0
        %843 = vmatprep.subr.mxu0 0.0
        %844 = vmatpush1.msra.mxu0 0.0
        %845 = vmatprep.subr.mxu0 0.0
        %846 = vmatpush1.msra.mxu0 0.0
        %847 = vmatprep.subr.mxu0 0.0
        %848 = vmatpush1.msra.mxu0 0.0
        %849 = vmatprep.subr.mxu0 0.0
        %850 = vmatpush1.msra.mxu0 0.0
        %851 = vmatprep.subr.mxu0 0.0
        %852 = vmatpush1.msra.mxu0 0.0
        %853 = vmatprep.subr.mxu0 0.0
        %854 = vmatpush1.msra.mxu0 0.0
        %855 = vmatprep.subr.mxu0 0.0
        %856 = vmatpush1.msra.mxu0 0.0
        %857 = vmatprep.subr.mxu0 0.0
        %858 = vmatpush1.msra.mxu0 0.0
        %859 = vmatprep.subr.mxu0 0.0
        %860 = vmatpush1.msra.mxu0 0.0
        %861 = vmatprep.subr.mxu0 0.0
        %862 = vmatpush1.msra.mxu0 0.0
        %863 = vmatprep.subr.mxu0 0.0
        %864 = vmatpush1.msra.mxu0 0.0
        %865 = vmatprep.subr.mxu0 0.0
        %866 = vmatpush1.msra.mxu0 0.0
        %867 = vmatprep.subr.mxu0 0.0
        %868 = vmatpush1.msra.mxu0 0.0
        %869 = vmatprep.subr.mxu0 0.0
        %870 = vmatpush1.msra.mxu0 0.0
        %871 = vmatprep.subr.mxu0 0.0
        %872 = vmatpush1.msra.mxu0 0.0
        %873 = vmatprep.subr.mxu0 0.0
        %874 = vmatpush1.msra.mxu0 0.0
        %875 = vmatprep.subr.mxu0 0.0
        %876 = vmatpush1.msra.mxu0 0.0
        %877 = vmatprep.subr.mxu0 0.0
        %878 = vmatpush1.msra.mxu0 0.0
        %879 = vmatprep.subr.mxu0 0.0
        %880 = vmatpush1.msra.mxu0 0.0
        %881 = vmatprep.subr.mxu0 0.0
        %882 = vmatpush1.msra.mxu0 0.0
        %883 = vmatprep.subr.mxu0 0.0
        %884 = vmatpush1.msra.mxu0 0.0
        %885 = vmatprep.subr.mxu0 0.0
        %886 = vmatpush1.msra.mxu0 0.0
        %887 = vmatprep.subr.mxu0 0.0
        %888 = vmatpush1.msra.mxu0 0.0
        %889 = vmatprep.subr.mxu0 0.0
        %890 = vmatpush1.msra.mxu0 0.0
        %891 = vmatprep.subr.mxu0 0.0
        %892 = vmatpush1.msra.mxu0 0.0
        %893 = vmatprep.subr.mxu0 0.0
        %894 = vmatpush1.msra.mxu0 0.0
        %895 = vmatprep.subr.mxu0 0.0
        %896 = vmatpush1.msra.mxu0 0.0
        %897 = vmatprep.mubr.f32.mxu0 0.0
        %898 = vmatmul.mubr.f32.gmra.mrb[0].mxu0 %v314
        %v899 = vpop.f32.mrb[0].mxu0
        %v900 = vadd.f32 %v293, %v899
        %v901 = vpop.f32.mrb[0].mxu0
        %v902 = vadd.f32 %v293, %v901
        %903 = vmatprep.mubr.f32.mxu0 0.0
        %904 = vmatmul.mubr.f32.gmra.mrb[0].mxu0 %v317
        %v905 = vpop.f32.mrb[0].mxu0
        %v906 = vadd.f32 %v298, %v905
        %v907 = vpop.f32.mrb[0].mxu0
        %v908 = vadd.f32 %v298, %v907
        %909 = vmatprep.mubr.f32.mxu0 0.0
        %910 = vmatmul.mubr.f32.gmra.mrb[0].mxu0 %v320
        %v911 = vpop.f32.mrb[0].mxu0
        %v912 = vadd.f32 %v303, %v911
        %v913 = vpop.f32.mrb[0].mxu0
        %v914 = vadd.f32 %v303, %v913
        %915 = vmatprep.mubr.f32.mxu0 0.0
        %916 = vmatmul.mubr.f32.gmra.mrb[0].mxu0 %v323
        %v917 = vpop.f32.mrb[0].mxu0
        %v918 = vadd.f32 %v308, %v917
        %v919 = vpop.f32.mrb[0].mxu0
        %v920 = vadd.f32 %v308, %v919
        %921 = vdwg.mxu0
        %v922 = vmax.f32 %v900, 0.0
        %v923 = vmax.f32 %v902, 0.0
        %v924 = vmax.f32 %v906, 0.0
        %v925 = vmax.f32 %v908, 0.0
        %v926 = vmax.f32 %v912, 0.0
        %v927 = vmax.f32 %v914, 0.0
        %v928 = vmax.f32 %v918, 0.0
        %v929 = vmax.f32 %v920, 0.0
        %v930 = vadd.f32 %v922, %v923
        %931 = vadd.xlane.f32.xlu0 %v930
        %v932 = vpop.xlane.xlu0 %931
        %v933 = vadd.f32 %v924, %v925
        %934 = vadd.xlane.f32.xlu0 %v933
        %v935 = vpop.xlane.xlu0 %934
        %v936 = vadd.f32 %v926, %v927
        %937 = vadd.xlane.f32.xlu0 %v936
        %v938 = vpop.xlane.xlu0 %937
        %v939 = vadd.f32 %v928, %v929
        %940 = vadd.xlane.f32.xlu0 %v939
        %v941 = vpop.xlane.xlu0 %940
        %s942 = scalar_lea.vmem [#allocation2], 1
        %v943 = vld [vmem:[%s942] sm:$0x1]
        %v948 = vlaneseq
        %v949 = vshrl.u32 %v948, 7
        %v950 = vsub.s32 0, %v949
        %v951 = vrot.slane %v932, %v950
        %v952 = vlaneseq
        %v953 = vshrl.u32 %v952, 7
        %v954 = vsub.s32 1, %v953
        %v955 = vrot.slane %v932, %v954
        %v956 = vlaneseq
        %v957 = vshrl.u32 %v956, 7
        %v958 = vsub.s32 2, %v957
        %v959 = vrot.slane %v932, %v958
        %v960 = vlaneseq
        %v961 = vshrl.u32 %v960, 7
        %v962 = vsub.s32 3, %v961
        %v963 = vrot.slane %v932, %v962
        %v964 = vlaneseq
        %v965 = vshrl.u32 %v964, 7
        %v966 = vsub.s32 4, %v965
        %v967 = vrot.slane %v932, %v966
        %v968 = vlaneseq
        %v969 = vshrl.u32 %v968, 7
        %v970 = vsub.s32 5, %v969
        %v971 = vrot.slane %v932, %v970
        %v972 = vlaneseq
        %v973 = vshrl.u32 %v972, 7
        %v974 = vsub.s32 6, %v973
        %v975 = vrot.slane %v932, %v974
        %v976 = vlaneseq
        %v977 = vshrl.u32 %v976, 7
        %v978 = vsub.s32 7, %v977
        %v979 = vrot.slane %v932, %v978
        %v980 = vlaneseq
        %v981 = vshrl.u32 %v980, 7
        %v982 = vsub.s32 0, %v981
        %v983 = vrot.slane %v935, %v982
        %v984 = vlaneseq
        %v985 = vshrl.u32 %v984, 7
        %v986 = vsub.s32 1, %v985
        %v987 = vrot.slane %v935, %v986
        %v988 = vlaneseq
        %v989 = vshrl.u32 %v988, 7
        %v990 = vsub.s32 2, %v989
        %v991 = vrot.slane %v935, %v990
        %v992 = vlaneseq
        %v993 = vshrl.u32 %v992, 7
        %v994 = vsub.s32 3, %v993
        %v995 = vrot.slane %v935, %v994
        %v996 = vlaneseq
        %v997 = vshrl.u32 %v996, 7
        %v998 = vsub.s32 4, %v997
        %v999 = vrot.slane %v935, %v998
        %v1000 = vlaneseq
        %v1001 = vshrl.u32 %v1000, 7
        %v1002 = vsub.s32 5, %v1001
        %v1003 = vrot.slane %v935, %v1002
        %v1004 = vlaneseq
        %v1005 = vshrl.u32 %v1004, 7
        %v1006 = vsub.s32 6, %v1005
        %v1007 = vrot.slane %v935, %v1006
        %v1008 = vlaneseq
        %v1009 = vshrl.u32 %v1008, 7
        %v1010 = vsub.s32 7, %v1009
        %v1011 = vrot.slane %v935, %v1010
        %v1012 = vlaneseq
        %v1013 = vshrl.u32 %v1012, 7
        %v1014 = vsub.s32 0, %v1013
        %v1015 = vrot.slane %v938, %v1014
        %v1016 = vlaneseq
        %v1017 = vshrl.u32 %v1016, 7
        %v1018 = vsub.s32 1, %v1017
        %v1019 = vrot.slane %v938, %v1018
        %v1020 = vlaneseq
        %v1021 = vshrl.u32 %v1020, 7
        %v1022 = vsub.s32 2, %v1021
        %v1023 = vrot.slane %v938, %v1022
        %v1024 = vlaneseq
        %v1025 = vshrl.u32 %v1024, 7
        %v1026 = vsub.s32 3, %v1025
        %v1027 = vrot.slane %v938, %v1026
        %v1028 = vlaneseq
        %v1029 = vshrl.u32 %v1028, 7
        %v1030 = vsub.s32 4, %v1029
        %v1031 = vrot.slane %v938, %v1030
        %v1032 = vlaneseq
        %v1033 = vshrl.u32 %v1032, 7
        %v1034 = vsub.s32 5, %v1033
        %v1035 = vrot.slane %v938, %v1034
        %v1036 = vlaneseq
        %v1037 = vshrl.u32 %v1036, 7
        %v1038 = vsub.s32 6, %v1037
        %v1039 = vrot.slane %v938, %v1038
        %v1040 = vlaneseq
        %v1041 = vshrl.u32 %v1040, 7
        %v1042 = vsub.s32 7, %v1041
        %v1043 = vrot.slane %v938, %v1042
        %v1044 = vlaneseq
        %v1045 = vshrl.u32 %v1044, 7
        %v1046 = vsub.s32 0, %v1045
        %v1047 = vrot.slane %v941, %v1046
        %v1048 = vlaneseq
        %v1049 = vshrl.u32 %v1048, 7
        %v1050 = vsub.s32 1, %v1049
        %v1051 = vrot.slane %v941, %v1050
        %v1052 = vlaneseq
        %v1053 = vshrl.u32 %v1052, 7
        %v1054 = vsub.s32 2, %v1053
        %v1055 = vrot.slane %v941, %v1054
        %v1056 = vlaneseq
        %v1057 = vshrl.u32 %v1056, 7
        %v1058 = vsub.s32 3, %v1057
        %v1059 = vrot.slane %v941, %v1058
        %v1060 = vlaneseq
        %v1061 = vshrl.u32 %v1060, 7
        %v1062 = vsub.s32 4, %v1061
        %v1063 = vrot.slane %v941, %v1062
        %v1064 = vlaneseq
        %v1065 = vshrl.u32 %v1064, 7
        %v1066 = vsub.s32 5, %v1065
        %v1067 = vrot.slane %v941, %v1066
        %v1068 = vlaneseq
        %v1069 = vshrl.u32 %v1068, 7
        %v1070 = vsub.s32 6, %v1069
        %v1071 = vrot.slane %v941, %v1070
        %v1072 = vlaneseq
        %v1073 = vshrl.u32 %v1072, 7
        %v1074 = vsub.s32 7, %v1073
        %v1075 = vrot.slane %v941, %v1074
        %v1076 = vcombine.low %v951, %v955
        %v1077 = vcombine.low %v959, %v963
        %v1078 = vcombine.low %v967, %v971
        %v1079 = vcombine.low %v975, %v979
        %v1081 = vunpack.c.l.s4 1966171168
        %v1082 = vunpack.c.0.s8 %v1081
        %v1083 = vlaneseq
        %v1084 = vshrl.u32 %v1083, 7
        %v1085 = vsub.s32 %v1082, %v1084
        %v1086 = vrot.slane %v1076, %v1085
        %v1088 = vunpack.c.l.s4 1966171168
        %v1089 = vunpack.c.0.s8 %v1088
        %v1090 = vlaneseq
        %v1091 = vshrl.u32 %v1090, 7
        %v1092 = vsub.s32 %v1089, %v1091
        %v1093 = vrot.slane %v1077, %v1092
        %v1095 = vunpack.c.l.s4 1966171168
        %v1096 = vunpack.c.0.s8 %v1095
        %v1097 = vlaneseq
        %v1098 = vshrl.u32 %v1097, 7
        %v1099 = vsub.s32 %v1096, %v1098
        %v1100 = vrot.slane %v1078, %v1099
        %v1102 = vunpack.c.l.s4 1966171168
        %v1103 = vunpack.c.0.s8 %v1102
        %v1104 = vlaneseq
        %v1105 = vshrl.u32 %v1104, 7
        %v1106 = vsub.s32 %v1103, %v1105
        %v1107 = vrot.slane %v1079, %v1106
        %v1108 = vcombine.low %v1086, %v1093
        %v1109 = vcombine.low %v1100, %v1107
        %v1111 = vunpack.c.l.s4 1966171168
        %v1112 = vunpack.c.0.s8 %v1111
        %v1113 = vlaneseq
        %v1114 = vshrl.u32 %v1113, 7
        %v1115 = vsub.s32 %v1112, %v1114
        %v1116 = vrot.slane %v1108, %v1115
        %v1118 = vunpack.c.l.s4 1966171168
        %v1119 = vunpack.c.0.s8 %v1118
        %v1120 = vlaneseq
        %v1121 = vshrl.u32 %v1120, 7
        %v1122 = vsub.s32 %v1119, %v1121
        %v1123 = vrot.slane %v1109, %v1122
        %v1124 = vcombine.low %v1116, %v1123
        %v1125 = vcombine.low %v983, %v987
        %v1126 = vcombine.low %v991, %v995
        %v1127 = vcombine.low %v999, %v1003
        %v1128 = vcombine.low %v1007, %v1011
        %v1130 = vunpack.c.l.s4 1966171168
        %v1131 = vunpack.c.0.s8 %v1130
        %v1132 = vlaneseq
        %v1133 = vshrl.u32 %v1132, 7
        %v1134 = vsub.s32 %v1131, %v1133
        %v1135 = vrot.slane %v1125, %v1134
        %v1137 = vunpack.c.l.s4 1966171168
        %v1138 = vunpack.c.0.s8 %v1137
        %v1139 = vlaneseq
        %v1140 = vshrl.u32 %v1139, 7
        %v1141 = vsub.s32 %v1138, %v1140
        %v1142 = vrot.slane %v1126, %v1141
        %v1144 = vunpack.c.l.s4 1966171168
        %v1145 = vunpack.c.0.s8 %v1144
        %v1146 = vlaneseq
        %v1147 = vshrl.u32 %v1146, 7
        %v1148 = vsub.s32 %v1145, %v1147
        %v1149 = vrot.slane %v1127, %v1148
        %v1151 = vunpack.c.l.s4 1966171168
        %v1152 = vunpack.c.0.s8 %v1151
        %v1153 = vlaneseq
        %v1154 = vshrl.u32 %v1153, 7
        %v1155 = vsub.s32 %v1152, %v1154
        %v1156 = vrot.slane %v1128, %v1155
        %v1157 = vcombine.low %v1135, %v1142
        %v1158 = vcombine.low %v1149, %v1156
        %v1160 = vunpack.c.l.s4 1966171168
        %v1161 = vunpack.c.0.s8 %v1160
        %v1162 = vlaneseq
        %v1163 = vshrl.u32 %v1162, 7
        %v1164 = vsub.s32 %v1161, %v1163
        %v1165 = vrot.slane %v1157, %v1164
        %v1167 = vunpack.c.l.s4 1966171168
        %v1168 = vunpack.c.0.s8 %v1167
        %v1169 = vlaneseq
        %v1170 = vshrl.u32 %v1169, 7
        %v1171 = vsub.s32 %v1168, %v1170
        %v1172 = vrot.slane %v1158, %v1171
        %v1173 = vcombine.low %v1165, %v1172
        %v1174 = vcombine.low %v1015, %v1019
        %v1175 = vcombine.low %v1023, %v1027
        %v1176 = vcombine.low %v1031, %v1035
        %v1177 = vcombine.low %v1039, %v1043
        %v1179 = vunpack.c.l.s4 1966171168
        %v1180 = vunpack.c.0.s8 %v1179
        %v1181 = vlaneseq
        %v1182 = vshrl.u32 %v1181, 7
        %v1183 = vsub.s32 %v1180, %v1182
        %v1184 = vrot.slane %v1174, %v1183
        %v1186 = vunpack.c.l.s4 1966171168
        %v1187 = vunpack.c.0.s8 %v1186
        %v1188 = vlaneseq
        %v1189 = vshrl.u32 %v1188, 7
        %v1190 = vsub.s32 %v1187, %v1189
        %v1191 = vrot.slane %v1175, %v1190
        %v1193 = vunpack.c.l.s4 1966171168
        %v1194 = vunpack.c.0.s8 %v1193
        %v1195 = vlaneseq
        %v1196 = vshrl.u32 %v1195, 7
        %v1197 = vsub.s32 %v1194, %v1196
        %v1198 = vrot.slane %v1176, %v1197
        %v1200 = vunpack.c.l.s4 1966171168
        %v1201 = vunpack.c.0.s8 %v1200
        %v1202 = vlaneseq
        %v1203 = vshrl.u32 %v1202, 7
        %v1204 = vsub.s32 %v1201, %v1203
        %v1205 = vrot.slane %v1177, %v1204
        %v1206 = vcombine.low %v1184, %v1191
        %v1207 = vcombine.low %v1198, %v1205
        %v1209 = vunpack.c.l.s4 1966171168
        %v1210 = vunpack.c.0.s8 %v1209
        %v1211 = vlaneseq
        %v1212 = vshrl.u32 %v1211, 7
        %v1213 = vsub.s32 %v1210, %v1212
        %v1214 = vrot.slane %v1206, %v1213
        %v1216 = vunpack.c.l.s4 1966171168
        %v1217 = vunpack.c.0.s8 %v1216
        %v1218 = vlaneseq
        %v1219 = vshrl.u32 %v1218, 7
        %v1220 = vsub.s32 %v1217, %v1219
        %v1221 = vrot.slane %v1207, %v1220
        %v1222 = vcombine.low %v1214, %v1221
        %v1223 = vcombine.low %v1047, %v1051
        %v1224 = vcombine.low %v1055, %v1059
        %v1225 = vcombine.low %v1063, %v1067
        %v1226 = vcombine.low %v1071, %v1075
        %v1228 = vunpack.c.l.s4 1966171168
        %v1229 = vunpack.c.0.s8 %v1228
        %v1230 = vlaneseq
        %v1231 = vshrl.u32 %v1230, 7
        %v1232 = vsub.s32 %v1229, %v1231
        %v1233 = vrot.slane %v1223, %v1232
        %v1235 = vunpack.c.l.s4 1966171168
        %v1236 = vunpack.c.0.s8 %v1235
        %v1237 = vlaneseq
        %v1238 = vshrl.u32 %v1237, 7
        %v1239 = vsub.s32 %v1236, %v1238
        %v1240 = vrot.slane %v1224, %v1239
        %v1242 = vunpack.c.l.s4 1966171168
        %v1243 = vunpack.c.0.s8 %v1242
        %v1244 = vlaneseq
        %v1245 = vshrl.u32 %v1244, 7
        %v1246 = vsub.s32 %v1243, %v1245
        %v1247 = vrot.slane %v1225, %v1246
        %v1249 = vunpack.c.l.s4 1966171168
        %v1250 = vunpack.c.0.s8 %v1249
        %v1251 = vlaneseq
        %v1252 = vshrl.u32 %v1251, 7
        %v1253 = vsub.s32 %v1250, %v1252
        %v1254 = vrot.slane %v1226, %v1253
        %v1255 = vcombine.low %v1233, %v1240
        %v1256 = vcombine.low %v1247, %v1254
        %v1258 = vunpack.c.l.s4 1966171168
        %v1259 = vunpack.c.0.s8 %v1258
        %v1260 = vlaneseq
        %v1261 = vshrl.u32 %v1260, 7
        %v1262 = vsub.s32 %v1259, %v1261
        %v1263 = vrot.slane %v1255, %v1262
        %v1265 = vunpack.c.l.s4 1966171168
        %v1266 = vunpack.c.0.s8 %v1265
        %v1267 = vlaneseq
        %v1268 = vshrl.u32 %v1267, 7
        %v1269 = vsub.s32 %v1266, %v1268
        %v1270 = vrot.slane %v1256, %v1269
        %v1271 = vcombine.low %v1263, %v1270
        %1272 = vset.pattern.permute.xlu0 0
        %1273 = vperm.xlu0 %1272, %v1124
        %v1274 = vpop.permute.xlu0 %1273
        %1275 = vset.pattern.permute.xlu0 0
        %1276 = vperm.xlu0 %1275, %v1173
        %v1277 = vpop.permute.xlu0 %1276
        %1278 = vset.pattern.permute.xlu0 0
        %1279 = vperm.xlu0 %1278, %v1222
        %v1280 = vpop.permute.xlu0 %1279
        %1281 = vset.pattern.permute.xlu0 0
        %1282 = vperm.xlu0 %1281, %v1271
        %v1283 = vpop.permute.xlu0 %1282
        %v1284 = vlaneseq
        %v1285 = vshrl.u32 %v1284, 7
        %v1286 = vsub.s32 %v781, %v1285
        %v1287 = vrot.slane %v1274, %v1286
        %v1288 = vlaneseq
        %v1289 = vshrl.u32 %v1288, 7
        %v1290 = vsub.s32 %v786, %v1289
        %v1291 = vrot.slane %v1277, %v1290
        %v1292 = vsel %vm791, %v1291, %v1287
        %v1293 = vlaneseq
        %v1294 = vshrl.u32 %v1293, 7
        %v1295 = vsub.s32 %v793, %v1294
        %v1296 = vrot.slane %v1280, %v1295
        %v1297 = vsel %vm798, %v1296, %v1292
        %v1298 = vlaneseq
        %v1299 = vshrl.u32 %v1298, 7
        %v1300 = vsub.s32 %v800, %v1299
        %v1301 = vrot.slane %v1283, %v1300
        %v1302 = vsel %vm805, %v1301, %v1297
        %v1304 = vunpack.c.l.s4 1966171168
        %v1305 = vunpack.c.0.s8 %v1304
        %v1306 = vlaneseq
        %v1307 = vshrl.u32 %v1306, 7
        %v1308 = vsub.s32 %v1305, %v1307
        %v1309 = vrot.slane %v1302, %v1308
        %v1311 = vunpack.c.l.s4 1966171168
        %v1312 = vunpack.c.0.s8 %v1311
        %v1313 = vlaneseq
        %v1314 = vshrl.u32 %v1313, 7
        %v1315 = vsub.s32 %v1312, %v1314
        %v1316 = vrot.slane %v1309, %v1315
        %v1318 = vadd.f32 %v943, %v1316
        %1319 = vst.msk [vmem:[%s942] sm:$0x1] %vm823, %v1318
        %s1320 = scalar_lea.vmem %s242, 16 [#allocation3]
        %v1321 = vld [vmem:[%s1320] sm:$0xff]
        %v1323 = vcombine.high %v1321, %v1321
        %v1324 = vsel %vm325, %v1321, 0
        %v1326 = vsel %vm325, %v1323, 0
        %1328 = vmatprep.subr.mxu0 %v1326
        %1329 = vmatpush1.msra.mxu0 %v1324
        %1330 = vmatprep.subr.mxu0 0.0
        %1331 = vmatpush1.msra.mxu0 0.0
        %1332 = vmatprep.subr.mxu0 0.0
        %1333 = vmatpush1.msra.mxu0 0.0
        %1334 = vmatprep.subr.mxu0 0.0
        %1335 = vmatpush1.msra.mxu0 0.0
        %1336 = vmatprep.subr.mxu0 0.0
        %1337 = vmatpush1.msra.mxu0 0.0
        %1338 = vmatprep.subr.mxu0 0.0
        %1339 = vmatpush1.msra.mxu0 0.0
        %1340 = vmatprep.subr.mxu0 0.0
        %1341 = vmatpush1.msra.mxu0 0.0
        %1342 = vmatprep.subr.mxu0 0.0
        %1343 = vmatpush1.msra.mxu0 0.0
        %1344 = vmatprep.subr.mxu0 0.0
        %1345 = vmatpush1.msra.mxu0 0.0
        %1346 = vmatprep.subr.mxu0 0.0
        %1347 = vmatpush1.msra.mxu0 0.0
        %1348 = vmatprep.subr.mxu0 0.0
        %1349 = vmatpush1.msra.mxu0 0.0
        %1350 = vmatprep.subr.mxu0 0.0
        %1351 = vmatpush1.msra.mxu0 0.0
        %1352 = vmatprep.subr.mxu0 0.0
        %1353 = vmatpush1.msra.mxu0 0.0
        %1354 = vmatprep.subr.mxu0 0.0
        %1355 = vmatpush1.msra.mxu0 0.0
        %1356 = vmatprep.subr.mxu0 0.0
        %1357 = vmatpush1.msra.mxu0 0.0
        %1358 = vmatprep.subr.mxu0 0.0
        %1359 = vmatpush1.msra.mxu0 0.0
        %1360 = vmatprep.subr.mxu0 0.0
        %1361 = vmatpush1.msra.mxu0 0.0
        %1362 = vmatprep.subr.mxu0 0.0
        %1363 = vmatpush1.msra.mxu0 0.0
        %1364 = vmatprep.subr.mxu0 0.0
        %1365 = vmatpush1.msra.mxu0 0.0
        %1366 = vmatprep.subr.mxu0 0.0
        %1367 = vmatpush1.msra.mxu0 0.0
        %1368 = vmatprep.subr.mxu0 0.0
        %1369 = vmatpush1.msra.mxu0 0.0
        %1370 = vmatprep.subr.mxu0 0.0
        %1371 = vmatpush1.msra.mxu0 0.0
        %1372 = vmatprep.subr.mxu0 0.0
        %1373 = vmatpush1.msra.mxu0 0.0
        %1374 = vmatprep.subr.mxu0 0.0
        %1375 = vmatpush1.msra.mxu0 0.0
        %1376 = vmatprep.subr.mxu0 0.0
        %1377 = vmatpush1.msra.mxu0 0.0
        %1378 = vmatprep.subr.mxu0 0.0
        %1379 = vmatpush1.msra.mxu0 0.0
        %1380 = vmatprep.subr.mxu0 0.0
        %1381 = vmatpush1.msra.mxu0 0.0
        %1382 = vmatprep.subr.mxu0 0.0
        %1383 = vmatpush1.msra.mxu0 0.0
        %1384 = vmatprep.subr.mxu0 0.0
        %1385 = vmatpush1.msra.mxu0 0.0
        %1386 = vmatprep.subr.mxu0 0.0
        %1387 = vmatpush1.msra.mxu0 0.0
        %1388 = vmatprep.subr.mxu0 0.0
        %1389 = vmatpush1.msra.mxu0 0.0
        %1390 = vmatprep.subr.mxu0 0.0
        %1391 = vmatpush1.msra.mxu0 0.0
        %1392 = vmatprep.mubr.f32.mxu0 0.0
        %1393 = vmatmul.mubr.f32.gmra.mrb[0].mxu0 %v314
        %v1394 = vpop.f32.mrb[0].mxu0
        %v1395 = vadd.f32 %v293, %v1394
        %v1396 = vpop.f32.mrb[0].mxu0
        %v1397 = vadd.f32 %v293, %v1396
        %1398 = vmatprep.mubr.f32.mxu0 0.0
        %1399 = vmatmul.mubr.f32.gmra.mrb[0].mxu0 %v317
        %v1400 = vpop.f32.mrb[0].mxu0
        %v1401 = vadd.f32 %v298, %v1400
        %v1402 = vpop.f32.mrb[0].mxu0
        %v1403 = vadd.f32 %v298, %v1402
        %1404 = vmatprep.mubr.f32.mxu0 0.0
        %1405 = vmatmul.mubr.f32.gmra.mrb[0].mxu0 %v320
        %v1406 = vpop.f32.mrb[0].mxu0
        %v1407 = vadd.f32 %v303, %v1406
        %v1408 = vpop.f32.mrb[0].mxu0
        %v1409 = vadd.f32 %v303, %v1408
        %1410 = vmatprep.mubr.f32.mxu0 0.0
        %1411 = vmatmul.mubr.f32.gmra.mrb[0].mxu0 %v323
        %v1412 = vpop.f32.mrb[0].mxu0
        %v1413 = vadd.f32 %v308, %v1412
        %v1414 = vpop.f32.mrb[0].mxu0
        %v1415 = vadd.f32 %v308, %v1414
        %1416 = vdwg.mxu0
        %v1417 = vmax.f32 %v1395, 0.0
        %v1418 = vmax.f32 %v1397, 0.0
        %v1419 = vmax.f32 %v1401, 0.0
        %v1420 = vmax.f32 %v1403, 0.0
        %v1421 = vmax.f32 %v1407, 0.0
        %v1422 = vmax.f32 %v1409, 0.0
        %v1423 = vmax.f32 %v1413, 0.0
        %v1424 = vmax.f32 %v1415, 0.0
        %v1425 = vadd.f32 %v1417, %v1418
        %1426 = vadd.xlane.f32.xlu0 %v1425
        %v1427 = vpop.xlane.xlu0 %1426
        %v1428 = vadd.f32 %v1419, %v1420
        %1429 = vadd.xlane.f32.xlu0 %v1428
        %v1430 = vpop.xlane.xlu0 %1429
        %v1431 = vadd.f32 %v1421, %v1422
        %1432 = vadd.xlane.f32.xlu0 %v1431
        %v1433 = vpop.xlane.xlu0 %1432
        %v1434 = vadd.f32 %v1423, %v1424
        %1435 = vadd.xlane.f32.xlu0 %v1434
        %v1436 = vpop.xlane.xlu0 %1435
        %s1437 = scalar_lea.vmem [#allocation2], 2
        %v1438 = vld [vmem:[%s1437] sm:$0x1]
        %v1443 = vlaneseq
        %v1444 = vshrl.u32 %v1443, 7
        %v1445 = vsub.s32 0, %v1444
        %v1446 = vrot.slane %v1427, %v1445
        %v1447 = vlaneseq
        %v1448 = vshrl.u32 %v1447, 7
        %v1449 = vsub.s32 1, %v1448
        %v1450 = vrot.slane %v1427, %v1449
        %v1451 = vlaneseq
        %v1452 = vshrl.u32 %v1451, 7
        %v1453 = vsub.s32 2, %v1452
        %v1454 = vrot.slane %v1427, %v1453
        %v1455 = vlaneseq
        %v1456 = vshrl.u32 %v1455, 7
        %v1457 = vsub.s32 3, %v1456
        %v1458 = vrot.slane %v1427, %v1457
        %v1459 = vlaneseq
        %v1460 = vshrl.u32 %v1459, 7
        %v1461 = vsub.s32 4, %v1460
        %v1462 = vrot.slane %v1427, %v1461
        %v1463 = vlaneseq
        %v1464 = vshrl.u32 %v1463, 7
        %v1465 = vsub.s32 5, %v1464
        %v1466 = vrot.slane %v1427, %v1465
        %v1467 = vlaneseq
        %v1468 = vshrl.u32 %v1467, 7
        %v1469 = vsub.s32 6, %v1468
        %v1470 = vrot.slane %v1427, %v1469
        %v1471 = vlaneseq
        %v1472 = vshrl.u32 %v1471, 7
        %v1473 = vsub.s32 7, %v1472
        %v1474 = vrot.slane %v1427, %v1473
        %v1475 = vlaneseq
        %v1476 = vshrl.u32 %v1475, 7
        %v1477 = vsub.s32 0, %v1476
        %v1478 = vrot.slane %v1430, %v1477
        %v1479 = vlaneseq
        %v1480 = vshrl.u32 %v1479, 7
        %v1481 = vsub.s32 1, %v1480
        %v1482 = vrot.slane %v1430, %v1481
        %v1483 = vlaneseq
        %v1484 = vshrl.u32 %v1483, 7
        %v1485 = vsub.s32 2, %v1484
        %v1486 = vrot.slane %v1430, %v1485
        %v1487 = vlaneseq
        %v1488 = vshrl.u32 %v1487, 7
        %v1489 = vsub.s32 3, %v1488
        %v1490 = vrot.slane %v1430, %v1489
        %v1491 = vlaneseq
        %v1492 = vshrl.u32 %v1491, 7
        %v1493 = vsub.s32 4, %v1492
        %v1494 = vrot.slane %v1430, %v1493
        %v1495 = vlaneseq
        %v1496 = vshrl.u32 %v1495, 7
        %v1497 = vsub.s32 5, %v1496
        %v1498 = vrot.slane %v1430, %v1497
        %v1499 = vlaneseq
        %v1500 = vshrl.u32 %v1499, 7
        %v1501 = vsub.s32 6, %v1500
        %v1502 = vrot.slane %v1430, %v1501
        %v1503 = vlaneseq
        %v1504 = vshrl.u32 %v1503, 7
        %v1505 = vsub.s32 7, %v1504
        %v1506 = vrot.slane %v1430, %v1505
        %v1507 = vlaneseq
        %v1508 = vshrl.u32 %v1507, 7
        %v1509 = vsub.s32 0, %v1508
        %v1510 = vrot.slane %v1433, %v1509
        %v1511 = vlaneseq
        %v1512 = vshrl.u32 %v1511, 7
        %v1513 = vsub.s32 1, %v1512
        %v1514 = vrot.slane %v1433, %v1513
        %v1515 = vlaneseq
        %v1516 = vshrl.u32 %v1515, 7
        %v1517 = vsub.s32 2, %v1516
        %v1518 = vrot.slane %v1433, %v1517
        %v1519 = vlaneseq
        %v1520 = vshrl.u32 %v1519, 7
        %v1521 = vsub.s32 3, %v1520
        %v1522 = vrot.slane %v1433, %v1521
        %v1523 = vlaneseq
        %v1524 = vshrl.u32 %v1523, 7
        %v1525 = vsub.s32 4, %v1524
        %v1526 = vrot.slane %v1433, %v1525
        %v1527 = vlaneseq
        %v1528 = vshrl.u32 %v1527, 7
        %v1529 = vsub.s32 5, %v1528
        %v1530 = vrot.slane %v1433, %v1529
        %v1531 = vlaneseq
        %v1532 = vshrl.u32 %v1531, 7
        %v1533 = vsub.s32 6, %v1532
        %v1534 = vrot.slane %v1433, %v1533
        %v1535 = vlaneseq
        %v1536 = vshrl.u32 %v1535, 7
        %v1537 = vsub.s32 7, %v1536
        %v1538 = vrot.slane %v1433, %v1537
        %v1539 = vlaneseq
        %v1540 = vshrl.u32 %v1539, 7
        %v1541 = vsub.s32 0, %v1540
        %v1542 = vrot.slane %v1436, %v1541
        %v1543 = vlaneseq
        %v1544 = vshrl.u32 %v1543, 7
        %v1545 = vsub.s32 1, %v1544
        %v1546 = vrot.slane %v1436, %v1545
        %v1547 = vlaneseq
        %v1548 = vshrl.u32 %v1547, 7
        %v1549 = vsub.s32 2, %v1548
        %v1550 = vrot.slane %v1436, %v1549
        %v1551 = vlaneseq
        %v1552 = vshrl.u32 %v1551, 7
        %v1553 = vsub.s32 3, %v1552
        %v1554 = vrot.slane %v1436, %v1553
        %v1555 = vlaneseq
        %v1556 = vshrl.u32 %v1555, 7
        %v1557 = vsub.s32 4, %v1556
        %v1558 = vrot.slane %v1436, %v1557
        %v1559 = vlaneseq
        %v1560 = vshrl.u32 %v1559, 7
        %v1561 = vsub.s32 5, %v1560
        %v1562 = vrot.slane %v1436, %v1561
        %v1563 = vlaneseq
        %v1564 = vshrl.u32 %v1563, 7
        %v1565 = vsub.s32 6, %v1564
        %v1566 = vrot.slane %v1436, %v1565
        %v1567 = vlaneseq
        %v1568 = vshrl.u32 %v1567, 7
        %v1569 = vsub.s32 7, %v1568
        %v1570 = vrot.slane %v1436, %v1569
        %v1571 = vcombine.low %v1446, %v1450
        %v1572 = vcombine.low %v1454, %v1458
        %v1573 = vcombine.low %v1462, %v1466
        %v1574 = vcombine.low %v1470, %v1474
        %v1576 = vunpack.c.l.s4 1966171168
        %v1577 = vunpack.c.0.s8 %v1576
        %v1578 = vlaneseq
        %v1579 = vshrl.u32 %v1578, 7
        %v1580 = vsub.s32 %v1577, %v1579
        %v1581 = vrot.slane %v1571, %v1580
        %v1583 = vunpack.c.l.s4 1966171168
        %v1584 = vunpack.c.0.s8 %v1583
        %v1585 = vlaneseq
        %v1586 = vshrl.u32 %v1585, 7
        %v1587 = vsub.s32 %v1584, %v1586
        %v1588 = vrot.slane %v1572, %v1587
        %v1590 = vunpack.c.l.s4 1966171168
        %v1591 = vunpack.c.0.s8 %v1590
        %v1592 = vlaneseq
        %v1593 = vshrl.u32 %v1592, 7
        %v1594 = vsub.s32 %v1591, %v1593
        %v1595 = vrot.slane %v1573, %v1594
        %v1597 = vunpack.c.l.s4 1966171168
        %v1598 = vunpack.c.0.s8 %v1597
        %v1599 = vlaneseq
        %v1600 = vshrl.u32 %v1599, 7
        %v1601 = vsub.s32 %v1598, %v1600
        %v1602 = vrot.slane %v1574, %v1601
        %v1603 = vcombine.low %v1581, %v1588
        %v1604 = vcombine.low %v1595, %v1602
        %v1606 = vunpack.c.l.s4 1966171168
        %v1607 = vunpack.c.0.s8 %v1606
        %v1608 = vlaneseq
        %v1609 = vshrl.u32 %v1608, 7
        %v1610 = vsub.s32 %v1607, %v1609
        %v1611 = vrot.slane %v1603, %v1610
        %v1613 = vunpack.c.l.s4 1966171168
        %v1614 = vunpack.c.0.s8 %v1613
        %v1615 = vlaneseq
        %v1616 = vshrl.u32 %v1615, 7
        %v1617 = vsub.s32 %v1614, %v1616
        %v1618 = vrot.slane %v1604, %v1617
        %v1619 = vcombine.low %v1611, %v1618
        %v1620 = vcombine.low %v1478, %v1482
        %v1621 = vcombine.low %v1486, %v1490
        %v1622 = vcombine.low %v1494, %v1498
        %v1623 = vcombine.low %v1502, %v1506
        %v1625 = vunpack.c.l.s4 1966171168
        %v1626 = vunpack.c.0.s8 %v1625
        %v1627 = vlaneseq
        %v1628 = vshrl.u32 %v1627, 7
        %v1629 = vsub.s32 %v1626, %v1628
        %v1630 = vrot.slane %v1620, %v1629
        %v1632 = vunpack.c.l.s4 1966171168
        %v1633 = vunpack.c.0.s8 %v1632
        %v1634 = vlaneseq
        %v1635 = vshrl.u32 %v1634, 7
        %v1636 = vsub.s32 %v1633, %v1635
        %v1637 = vrot.slane %v1621, %v1636
        %v1639 = vunpack.c.l.s4 1966171168
        %v1640 = vunpack.c.0.s8 %v1639
        %v1641 = vlaneseq
        %v1642 = vshrl.u32 %v1641, 7
        %v1643 = vsub.s32 %v1640, %v1642
        %v1644 = vrot.slane %v1622, %v1643
        %v1646 = vunpack.c.l.s4 1966171168
        %v1647 = vunpack.c.0.s8 %v1646
        %v1648 = vlaneseq
        %v1649 = vshrl.u32 %v1648, 7
        %v1650 = vsub.s32 %v1647, %v1649
        %v1651 = vrot.slane %v1623, %v1650
        %v1652 = vcombine.low %v1630, %v1637
        %v1653 = vcombine.low %v1644, %v1651
        %v1655 = vunpack.c.l.s4 1966171168
        %v1656 = vunpack.c.0.s8 %v1655
        %v1657 = vlaneseq
        %v1658 = vshrl.u32 %v1657, 7
        %v1659 = vsub.s32 %v1656, %v1658
        %v1660 = vrot.slane %v1652, %v1659
        %v1662 = vunpack.c.l.s4 1966171168
        %v1663 = vunpack.c.0.s8 %v1662
        %v1664 = vlaneseq
        %v1665 = vshrl.u32 %v1664, 7
        %v1666 = vsub.s32 %v1663, %v1665
        %v1667 = vrot.slane %v1653, %v1666
        %v1668 = vcombine.low %v1660, %v1667
        %v1669 = vcombine.low %v1510, %v1514
        %v1670 = vcombine.low %v1518, %v1522
        %v1671 = vcombine.low %v1526, %v1530
        %v1672 = vcombine.low %v1534, %v1538
        %v1674 = vunpack.c.l.s4 1966171168
        %v1675 = vunpack.c.0.s8 %v1674
        %v1676 = vlaneseq
        %v1677 = vshrl.u32 %v1676, 7
        %v1678 = vsub.s32 %v1675, %v1677
        %v1679 = vrot.slane %v1669, %v1678
        %v1681 = vunpack.c.l.s4 1966171168
        %v1682 = vunpack.c.0.s8 %v1681
        %v1683 = vlaneseq
        %v1684 = vshrl.u32 %v1683, 7
        %v1685 = vsub.s32 %v1682, %v1684
        %v1686 = vrot.slane %v1670, %v1685
        %v1688 = vunpack.c.l.s4 1966171168
        %v1689 = vunpack.c.0.s8 %v1688
        %v1690 = vlaneseq
        %v1691 = vshrl.u32 %v1690, 7
        %v1692 = vsub.s32 %v1689, %v1691
        %v1693 = vrot.slane %v1671, %v1692
        %v1695 = vunpack.c.l.s4 1966171168
        %v1696 = vunpack.c.0.s8 %v1695
        %v1697 = vlaneseq
        %v1698 = vshrl.u32 %v1697, 7
        %v1699 = vsub.s32 %v1696, %v1698
        %v1700 = vrot.slane %v1672, %v1699
        %v1701 = vcombine.low %v1679, %v1686
        %v1702 = vcombine.low %v1693, %v1700
        %v1704 = vunpack.c.l.s4 1966171168
        %v1705 = vunpack.c.0.s8 %v1704
        %v1706 = vlaneseq
        %v1707 = vshrl.u32 %v1706, 7
        %v1708 = vsub.s32 %v1705, %v1707
        %v1709 = vrot.slane %v1701, %v1708
        %v1711 = vunpack.c.l.s4 1966171168
        %v1712 = vunpack.c.0.s8 %v1711
        %v1713 = vlaneseq
        %v1714 = vshrl.u32 %v1713, 7
        %v1715 = vsub.s32 %v1712, %v1714
        %v1716 = vrot.slane %v1702, %v1715
        %v1717 = vcombine.low %v1709, %v1716
        %v1718 = vcombine.low %v1542, %v1546
        %v1719 = vcombine.low %v1550, %v1554
        %v1720 = vcombine.low %v1558, %v1562
        %v1721 = vcombine.low %v1566, %v1570
        %v1723 = vunpack.c.l.s4 1966171168
        %v1724 = vunpack.c.0.s8 %v1723
        %v1725 = vlaneseq
        %v1726 = vshrl.u32 %v1725, 7
        %v1727 = vsub.s32 %v1724, %v1726
        %v1728 = vrot.slane %v1718, %v1727
        %v1730 = vunpack.c.l.s4 1966171168
        %v1731 = vunpack.c.0.s8 %v1730
        %v1732 = vlaneseq
        %v1733 = vshrl.u32 %v1732, 7
        %v1734 = vsub.s32 %v1731, %v1733
        %v1735 = vrot.slane %v1719, %v1734
        %v1737 = vunpack.c.l.s4 1966171168
        %v1738 = vunpack.c.0.s8 %v1737
        %v1739 = vlaneseq
        %v1740 = vshrl.u32 %v1739, 7
        %v1741 = vsub.s32 %v1738, %v1740
        %v1742 = vrot.slane %v1720, %v1741
        %v1744 = vunpack.c.l.s4 1966171168
        %v1745 = vunpack.c.0.s8 %v1744
        %v1746 = vlaneseq
        %v1747 = vshrl.u32 %v1746, 7
        %v1748 = vsub.s32 %v1745, %v1747
        %v1749 = vrot.slane %v1721, %v1748
        %v1750 = vcombine.low %v1728, %v1735
        %v1751 = vcombine.low %v1742, %v1749
        %v1753 = vunpack.c.l.s4 1966171168
        %v1754 = vunpack.c.0.s8 %v1753
        %v1755 = vlaneseq
        %v1756 = vshrl.u32 %v1755, 7
        %v1757 = vsub.s32 %v1754, %v1756
        %v1758 = vrot.slane %v1750, %v1757
        %v1760 = vunpack.c.l.s4 1966171168
        %v1761 = vunpack.c.0.s8 %v1760
        %v1762 = vlaneseq
        %v1763 = vshrl.u32 %v1762, 7
        %v1764 = vsub.s32 %v1761, %v1763
        %v1765 = vrot.slane %v1751, %v1764
        %v1766 = vcombine.low %v1758, %v1765
        %1767 = vset.pattern.permute.xlu0 0
        %1768 = vperm.xlu0 %1767, %v1619
        %v1769 = vpop.permute.xlu0 %1768
        %1770 = vset.pattern.permute.xlu0 0
        %1771 = vperm.xlu0 %1770, %v1668
        %v1772 = vpop.permute.xlu0 %1771
        %1773 = vset.pattern.permute.xlu0 0
        %1774 = vperm.xlu0 %1773, %v1717
        %v1775 = vpop.permute.xlu0 %1774
        %1776 = vset.pattern.permute.xlu0 0
        %1777 = vperm.xlu0 %1776, %v1766
        %v1778 = vpop.permute.xlu0 %1777
        %v1779 = vlaneseq
        %v1780 = vshrl.u32 %v1779, 7
        %v1781 = vsub.s32 %v781, %v1780
        %v1782 = vrot.slane %v1769, %v1781
        %v1783 = vlaneseq
        %v1784 = vshrl.u32 %v1783, 7
        %v1785 = vsub.s32 %v786, %v1784
        %v1786 = vrot.slane %v1772, %v1785
        %v1787 = vsel %vm791, %v1786, %v1782
        %v1788 = vlaneseq
        %v1789 = vshrl.u32 %v1788, 7
        %v1790 = vsub.s32 %v793, %v1789
        %v1791 = vrot.slane %v1775, %v1790
        %v1792 = vsel %vm798, %v1791, %v1787
        %v1793 = vlaneseq
        %v1794 = vshrl.u32 %v1793, 7
        %v1795 = vsub.s32 %v800, %v1794
        %v1796 = vrot.slane %v1778, %v1795
        %v1797 = vsel %vm805, %v1796, %v1792
        %v1799 = vunpack.c.l.s4 1966171168
        %v1800 = vunpack.c.0.s8 %v1799
        %v1801 = vlaneseq
        %v1802 = vshrl.u32 %v1801, 7
        %v1803 = vsub.s32 %v1800, %v1802
        %v1804 = vrot.slane %v1797, %v1803
        %v1806 = vunpack.c.l.s4 1966171168
        %v1807 = vunpack.c.0.s8 %v1806
        %v1808 = vlaneseq
        %v1809 = vshrl.u32 %v1808, 7
        %v1810 = vsub.s32 %v1807, %v1809
        %v1811 = vrot.slane %v1804, %v1810
        %v1813 = vadd.f32 %v1438, %v1811
        %1814 = vst.msk [vmem:[%s1437] sm:$0x1] %vm823, %v1813
        %s1815 = scalar_lea.vmem %s242, 24 [#allocation3]
        %v1816 = vld [vmem:[%s1815] sm:$0xff]
        %v1818 = vcombine.high %v1816, %v1816
        %v1819 = vsel %vm325, %v1816, 0
        %v1821 = vsel %vm325, %v1818, 0
        %1823 = vmatprep.subr.mxu0 %v1821
        %1824 = vmatpush1.msra.mxu0 %v1819
        %1825 = vmatprep.subr.mxu0 0.0
        %1826 = vmatpush1.msra.mxu0 0.0
        %1827 = vmatprep.subr.mxu0 0.0
        %1828 = vmatpush1.msra.mxu0 0.0
        %1829 = vmatprep.subr.mxu0 0.0
        %1830 = vmatpush1.msra.mxu0 0.0
        %1831 = vmatprep.subr.mxu0 0.0
        %1832 = vmatpush1.msra.mxu0 0.0
        %1833 = vmatprep.subr.mxu0 0.0
        %1834 = vmatpush1.msra.mxu0 0.0
        %1835 = vmatprep.subr.mxu0 0.0
        %1836 = vmatpush1.msra.mxu0 0.0
        %1837 = vmatprep.subr.mxu0 0.0
        %1838 = vmatpush1.msra.mxu0 0.0
        %1839 = vmatprep.subr.mxu0 0.0
        %1840 = vmatpush1.msra.mxu0 0.0
        %1841 = vmatprep.subr.mxu0 0.0
        %1842 = vmatpush1.msra.mxu0 0.0
        %1843 = vmatprep.subr.mxu0 0.0
        %1844 = vmatpush1.msra.mxu0 0.0
        %1845 = vmatprep.subr.mxu0 0.0
        %1846 = vmatpush1.msra.mxu0 0.0
        %1847 = vmatprep.subr.mxu0 0.0
        %1848 = vmatpush1.msra.mxu0 0.0
        %1849 = vmatprep.subr.mxu0 0.0
        %1850 = vmatpush1.msra.mxu0 0.0
        %1851 = vmatprep.subr.mxu0 0.0
        %1852 = vmatpush1.msra.mxu0 0.0
        %1853 = vmatprep.subr.mxu0 0.0
        %1854 = vmatpush1.msra.mxu0 0.0
        %1855 = vmatprep.subr.mxu0 0.0
        %1856 = vmatpush1.msra.mxu0 0.0
        %1857 = vmatprep.subr.mxu0 0.0
        %1858 = vmatpush1.msra.mxu0 0.0
        %1859 = vmatprep.subr.mxu0 0.0
        %1860 = vmatpush1.msra.mxu0 0.0
        %1861 = vmatprep.subr.mxu0 0.0
        %1862 = vmatpush1.msra.mxu0 0.0
        %1863 = vmatprep.subr.mxu0 0.0
        %1864 = vmatpush1.msra.mxu0 0.0
        %1865 = vmatprep.subr.mxu0 0.0
        %1866 = vmatpush1.msra.mxu0 0.0
        %1867 = vmatprep.subr.mxu0 0.0
        %1868 = vmatpush1.msra.mxu0 0.0
        %1869 = vmatprep.subr.mxu0 0.0
        %1870 = vmatpush1.msra.mxu0 0.0
        %1871 = vmatprep.subr.mxu0 0.0
        %1872 = vmatpush1.msra.mxu0 0.0
        %1873 = vmatprep.subr.mxu0 0.0
        %1874 = vmatpush1.msra.mxu0 0.0
        %1875 = vmatprep.subr.mxu0 0.0
        %1876 = vmatpush1.msra.mxu0 0.0
        %1877 = vmatprep.subr.mxu0 0.0
        %1878 = vmatpush1.msra.mxu0 0.0
        %1879 = vmatprep.subr.mxu0 0.0
        %1880 = vmatpush1.msra.mxu0 0.0
        %1881 = vmatprep.subr.mxu0 0.0
        %1882 = vmatpush1.msra.mxu0 0.0
        %1883 = vmatprep.subr.mxu0 0.0
        %1884 = vmatpush1.msra.mxu0 0.0
        %1885 = vmatprep.subr.mxu0 0.0
        %1886 = vmatpush1.msra.mxu0 0.0
        %1887 = vmatprep.mubr.f32.mxu0 0.0
        %1888 = vmatmul.mubr.f32.gmra.mrb[0].mxu0 %v314
        %v1889 = vpop.f32.mrb[0].mxu0
        %v1890 = vadd.f32 %v293, %v1889
        %v1891 = vpop.f32.mrb[0].mxu0
        %v1892 = vadd.f32 %v293, %v1891
        %1893 = vmatprep.mubr.f32.mxu0 0.0
        %1894 = vmatmul.mubr.f32.gmra.mrb[0].mxu0 %v317
        %v1895 = vpop.f32.mrb[0].mxu0
        %v1896 = vadd.f32 %v298, %v1895
        %v1897 = vpop.f32.mrb[0].mxu0
        %v1898 = vadd.f32 %v298, %v1897
        %1899 = vmatprep.mubr.f32.mxu0 0.0
        %1900 = vmatmul.mubr.f32.gmra.mrb[0].mxu0 %v320
        %v1901 = vpop.f32.mrb[0].mxu0
        %v1902 = vadd.f32 %v303, %v1901
        %v1903 = vpop.f32.mrb[0].mxu0
        %v1904 = vadd.f32 %v303, %v1903
        %1905 = vmatprep.mubr.f32.mxu0 0.0
        %1906 = vmatmul.mubr.f32.gmra.mrb[0].mxu0 %v323
        %v1907 = vpop.f32.mrb[0].mxu0
        %v1908 = vadd.f32 %v308, %v1907
        %v1909 = vpop.f32.mrb[0].mxu0
        %v1910 = vadd.f32 %v308, %v1909
        %1911 = vdwg.mxu0
        %v1912 = vmax.f32 %v1890, 0.0
        %v1913 = vmax.f32 %v1892, 0.0
        %v1914 = vmax.f32 %v1896, 0.0
        %v1915 = vmax.f32 %v1898, 0.0
        %v1916 = vmax.f32 %v1902, 0.0
        %v1917 = vmax.f32 %v1904, 0.0
        %v1918 = vmax.f32 %v1908, 0.0
        %v1919 = vmax.f32 %v1910, 0.0
        %v1920 = vadd.f32 %v1912, %v1913
        %1921 = vadd.xlane.f32.xlu0 %v1920
        %v1922 = vpop.xlane.xlu0 %1921
        %v1923 = vadd.f32 %v1914, %v1915
        %1924 = vadd.xlane.f32.xlu0 %v1923
        %v1925 = vpop.xlane.xlu0 %1924
        %v1926 = vadd.f32 %v1916, %v1917
        %1927 = vadd.xlane.f32.xlu0 %v1926
        %v1928 = vpop.xlane.xlu0 %1927
        %v1929 = vadd.f32 %v1918, %v1919
        %1930 = vadd.xlane.f32.xlu0 %v1929
        %v1931 = vpop.xlane.xlu0 %1930
        %s1932 = scalar_lea.vmem [#allocation2], 3
        %v1933 = vld [vmem:[%s1932] sm:$0x1]
        %v1938 = vlaneseq
        %v1939 = vshrl.u32 %v1938, 7
        %v1940 = vsub.s32 0, %v1939
        %v1941 = vrot.slane %v1922, %v1940
        %v1942 = vlaneseq
        %v1943 = vshrl.u32 %v1942, 7
        %v1944 = vsub.s32 1, %v1943
        %v1945 = vrot.slane %v1922, %v1944
        %v1946 = vlaneseq
        %v1947 = vshrl.u32 %v1946, 7
        %v1948 = vsub.s32 2, %v1947
        %v1949 = vrot.slane %v1922, %v1948
        %v1950 = vlaneseq
        %v1951 = vshrl.u32 %v1950, 7
        %v1952 = vsub.s32 3, %v1951
        %v1953 = vrot.slane %v1922, %v1952
        %v1954 = vlaneseq
        %v1955 = vshrl.u32 %v1954, 7
        %v1956 = vsub.s32 4, %v1955
        %v1957 = vrot.slane %v1922, %v1956
        %v1958 = vlaneseq
        %v1959 = vshrl.u32 %v1958, 7
        %v1960 = vsub.s32 5, %v1959
        %v1961 = vrot.slane %v1922, %v1960
        %v1962 = vlaneseq
        %v1963 = vshrl.u32 %v1962, 7
        %v1964 = vsub.s32 6, %v1963
        %v1965 = vrot.slane %v1922, %v1964
        %v1966 = vlaneseq
        %v1967 = vshrl.u32 %v1966, 7
        %v1968 = vsub.s32 7, %v1967
        %v1969 = vrot.slane %v1922, %v1968
        %v1970 = vlaneseq
        %v1971 = vshrl.u32 %v1970, 7
        %v1972 = vsub.s32 0, %v1971
        %v1973 = vrot.slane %v1925, %v1972
        %v1974 = vlaneseq
        %v1975 = vshrl.u32 %v1974, 7
        %v1976 = vsub.s32 1, %v1975
        %v1977 = vrot.slane %v1925, %v1976
        %v1978 = vlaneseq
        %v1979 = vshrl.u32 %v1978, 7
        %v1980 = vsub.s32 2, %v1979
        %v1981 = vrot.slane %v1925, %v1980
        %v1982 = vlaneseq
        %v1983 = vshrl.u32 %v1982, 7
        %v1984 = vsub.s32 3, %v1983
        %v1985 = vrot.slane %v1925, %v1984
        %v1986 = vlaneseq
        %v1987 = vshrl.u32 %v1986, 7
        %v1988 = vsub.s32 4, %v1987
        %v1989 = vrot.slane %v1925, %v1988
        %v1990 = vlaneseq
        %v1991 = vshrl.u32 %v1990, 7
        %v1992 = vsub.s32 5, %v1991
        %v1993 = vrot.slane %v1925, %v1992
        %v1994 = vlaneseq
        %v1995 = vshrl.u32 %v1994, 7
        %v1996 = vsub.s32 6, %v1995
        %v1997 = vrot.slane %v1925, %v1996
        %v1998 = vlaneseq
        %v1999 = vshrl.u32 %v1998, 7
        %v2000 = vsub.s32 7, %v1999
        %v2001 = vrot.slane %v1925, %v2000
        %v2002 = vlaneseq
        %v2003 = vshrl.u32 %v2002, 7
        %v2004 = vsub.s32 0, %v2003
        %v2005 = vrot.slane %v1928, %v2004
        %v2006 = vlaneseq
        %v2007 = vshrl.u32 %v2006, 7
        %v2008 = vsub.s32 1, %v2007
        %v2009 = vrot.slane %v1928, %v2008
        %v2010 = vlaneseq
        %v2011 = vshrl.u32 %v2010, 7
        %v2012 = vsub.s32 2, %v2011
        %v2013 = vrot.slane %v1928, %v2012
        %v2014 = vlaneseq
        %v2015 = vshrl.u32 %v2014, 7
        %v2016 = vsub.s32 3, %v2015
        %v2017 = vrot.slane %v1928, %v2016
        %v2018 = vlaneseq
        %v2019 = vshrl.u32 %v2018, 7
        %v2020 = vsub.s32 4, %v2019
        %v2021 = vrot.slane %v1928, %v2020
        %v2022 = vlaneseq
        %v2023 = vshrl.u32 %v2022, 7
        %v2024 = vsub.s32 5, %v2023
        %v2025 = vrot.slane %v1928, %v2024
        %v2026 = vlaneseq
        %v2027 = vshrl.u32 %v2026, 7
        %v2028 = vsub.s32 6, %v2027
        %v2029 = vrot.slane %v1928, %v2028
        %v2030 = vlaneseq
        %v2031 = vshrl.u32 %v2030, 7
        %v2032 = vsub.s32 7, %v2031
        %v2033 = vrot.slane %v1928, %v2032
        %v2034 = vlaneseq
        %v2035 = vshrl.u32 %v2034, 7
        %v2036 = vsub.s32 0, %v2035
        %v2037 = vrot.slane %v1931, %v2036
        %v2038 = vlaneseq
        %v2039 = vshrl.u32 %v2038, 7
        %v2040 = vsub.s32 1, %v2039
        %v2041 = vrot.slane %v1931, %v2040
        %v2042 = vlaneseq
        %v2043 = vshrl.u32 %v2042, 7
        %v2044 = vsub.s32 2, %v2043
        %v2045 = vrot.slane %v1931, %v2044
        %v2046 = vlaneseq
        %v2047 = vshrl.u32 %v2046, 7
        %v2048 = vsub.s32 3, %v2047
        %v2049 = vrot.slane %v1931, %v2048
        %v2050 = vlaneseq
        %v2051 = vshrl.u32 %v2050, 7
        %v2052 = vsub.s32 4, %v2051
        %v2053 = vrot.slane %v1931, %v2052
        %v2054 = vlaneseq
        %v2055 = vshrl.u32 %v2054, 7
        %v2056 = vsub.s32 5, %v2055
        %v2057 = vrot.slane %v1931, %v2056
        %v2058 = vlaneseq
        %v2059 = vshrl.u32 %v2058, 7
        %v2060 = vsub.s32 6, %v2059
        %v2061 = vrot.slane %v1931, %v2060
        %v2062 = vlaneseq
        %v2063 = vshrl.u32 %v2062, 7
        %v2064 = vsub.s32 7, %v2063
        %v2065 = vrot.slane %v1931, %v2064
        %v2066 = vcombine.low %v1941, %v1945
        %v2067 = vcombine.low %v1949, %v1953
        %v2068 = vcombine.low %v1957, %v1961
        %v2069 = vcombine.low %v1965, %v1969
        %v2071 = vunpack.c.l.s4 1966171168
        %v2072 = vunpack.c.0.s8 %v2071
        %v2073 = vlaneseq
        %v2074 = vshrl.u32 %v2073, 7
        %v2075 = vsub.s32 %v2072, %v2074
        %v2076 = vrot.slane %v2066, %v2075
        %v2078 = vunpack.c.l.s4 1966171168
        %v2079 = vunpack.c.0.s8 %v2078
        %v2080 = vlaneseq
        %v2081 = vshrl.u32 %v2080, 7
        %v2082 = vsub.s32 %v2079, %v2081
        %v2083 = vrot.slane %v2067, %v2082
        %v2085 = vunpack.c.l.s4 1966171168
        %v2086 = vunpack.c.0.s8 %v2085
        %v2087 = vlaneseq
        %v2088 = vshrl.u32 %v2087, 7
        %v2089 = vsub.s32 %v2086, %v2088
        %v2090 = vrot.slane %v2068, %v2089
        %v2092 = vunpack.c.l.s4 1966171168
        %v2093 = vunpack.c.0.s8 %v2092
        %v2094 = vlaneseq
        %v2095 = vshrl.u32 %v2094, 7
        %v2096 = vsub.s32 %v2093, %v2095
        %v2097 = vrot.slane %v2069, %v2096
        %v2098 = vcombine.low %v2076, %v2083
        %v2099 = vcombine.low %v2090, %v2097
        %v2101 = vunpack.c.l.s4 1966171168
        %v2102 = vunpack.c.0.s8 %v2101
        %v2103 = vlaneseq
        %v2104 = vshrl.u32 %v2103, 7
        %v2105 = vsub.s32 %v2102, %v2104
        %v2106 = vrot.slane %v2098, %v2105
        %v2108 = vunpack.c.l.s4 1966171168
        %v2109 = vunpack.c.0.s8 %v2108
        %v2110 = vlaneseq
        %v2111 = vshrl.u32 %v2110, 7
        %v2112 = vsub.s32 %v2109, %v2111
        %v2113 = vrot.slane %v2099, %v2112
        %v2114 = vcombine.low %v2106, %v2113
        %v2115 = vcombine.low %v1973, %v1977
        %v2116 = vcombine.low %v1981, %v1985
        %v2117 = vcombine.low %v1989, %v1993
        %v2118 = vcombine.low %v1997, %v2001
        %v2120 = vunpack.c.l.s4 1966171168
        %v2121 = vunpack.c.0.s8 %v2120
        %v2122 = vlaneseq
        %v2123 = vshrl.u32 %v2122, 7
        %v2124 = vsub.s32 %v2121, %v2123
        %v2125 = vrot.slane %v2115, %v2124
        %v2127 = vunpack.c.l.s4 1966171168
        %v2128 = vunpack.c.0.s8 %v2127
        %v2129 = vlaneseq
        %v2130 = vshrl.u32 %v2129, 7
        %v2131 = vsub.s32 %v2128, %v2130
        %v2132 = vrot.slane %v2116, %v2131
        %v2134 = vunpack.c.l.s4 1966171168
        %v2135 = vunpack.c.0.s8 %v2134
        %v2136 = vlaneseq
        %v2137 = vshrl.u32 %v2136, 7
        %v2138 = vsub.s32 %v2135, %v2137
        %v2139 = vrot.slane %v2117, %v2138
        %v2141 = vunpack.c.l.s4 1966171168
        %v2142 = vunpack.c.0.s8 %v2141
        %v2143 = vlaneseq
        %v2144 = vshrl.u32 %v2143, 7
        %v2145 = vsub.s32 %v2142, %v2144
        %v2146 = vrot.slane %v2118, %v2145
        %v2147 = vcombine.low %v2125, %v2132
        %v2148 = vcombine.low %v2139, %v2146
        %v2150 = vunpack.c.l.s4 1966171168
        %v2151 = vunpack.c.0.s8 %v2150
        %v2152 = vlaneseq
        %v2153 = vshrl.u32 %v2152, 7
        %v2154 = vsub.s32 %v2151, %v2153
        %v2155 = vrot.slane %v2147, %v2154
        %v2157 = vunpack.c.l.s4 1966171168
        %v2158 = vunpack.c.0.s8 %v2157
        %v2159 = vlaneseq
        %v2160 = vshrl.u32 %v2159, 7
        %v2161 = vsub.s32 %v2158, %v2160
        %v2162 = vrot.slane %v2148, %v2161
        %v2163 = vcombine.low %v2155, %v2162
        %v2164 = vcombine.low %v2005, %v2009
        %v2165 = vcombine.low %v2013, %v2017
        %v2166 = vcombine.low %v2021, %v2025
        %v2167 = vcombine.low %v2029, %v2033
        %v2169 = vunpack.c.l.s4 1966171168
        %v2170 = vunpack.c.0.s8 %v2169
        %v2171 = vlaneseq
        %v2172 = vshrl.u32 %v2171, 7
        %v2173 = vsub.s32 %v2170, %v2172
        %v2174 = vrot.slane %v2164, %v2173
        %v2176 = vunpack.c.l.s4 1966171168
        %v2177 = vunpack.c.0.s8 %v2176
        %v2178 = vlaneseq
        %v2179 = vshrl.u32 %v2178, 7
        %v2180 = vsub.s32 %v2177, %v2179
        %v2181 = vrot.slane %v2165, %v2180
        %v2183 = vunpack.c.l.s4 1966171168
        %v2184 = vunpack.c.0.s8 %v2183
        %v2185 = vlaneseq
        %v2186 = vshrl.u32 %v2185, 7
        %v2187 = vsub.s32 %v2184, %v2186
        %v2188 = vrot.slane %v2166, %v2187
        %v2190 = vunpack.c.l.s4 1966171168
        %v2191 = vunpack.c.0.s8 %v2190
        %v2192 = vlaneseq
        %v2193 = vshrl.u32 %v2192, 7
        %v2194 = vsub.s32 %v2191, %v2193
        %v2195 = vrot.slane %v2167, %v2194
        %v2196 = vcombine.low %v2174, %v2181
        %v2197 = vcombine.low %v2188, %v2195
        %v2199 = vunpack.c.l.s4 1966171168
        %v2200 = vunpack.c.0.s8 %v2199
        %v2201 = vlaneseq
        %v2202 = vshrl.u32 %v2201, 7
        %v2203 = vsub.s32 %v2200, %v2202
        %v2204 = vrot.slane %v2196, %v2203
        %v2206 = vunpack.c.l.s4 1966171168
        %v2207 = vunpack.c.0.s8 %v2206
        %v2208 = vlaneseq
        %v2209 = vshrl.u32 %v2208, 7
        %v2210 = vsub.s32 %v2207, %v2209
        %v2211 = vrot.slane %v2197, %v2210
        %v2212 = vcombine.low %v2204, %v2211
        %v2213 = vcombine.low %v2037, %v2041
        %v2214 = vcombine.low %v2045, %v2049
        %v2215 = vcombine.low %v2053, %v2057
        %v2216 = vcombine.low %v2061, %v2065
        %v2218 = vunpack.c.l.s4 1966171168
        %v2219 = vunpack.c.0.s8 %v2218
        %v2220 = vlaneseq
        %v2221 = vshrl.u32 %v2220, 7
        %v2222 = vsub.s32 %v2219, %v2221
        %v2223 = vrot.slane %v2213, %v2222
        %v2225 = vunpack.c.l.s4 1966171168
        %v2226 = vunpack.c.0.s8 %v2225
        %v2227 = vlaneseq
        %v2228 = vshrl.u32 %v2227, 7
        %v2229 = vsub.s32 %v2226, %v2228
        %v2230 = vrot.slane %v2214, %v2229
        %v2232 = vunpack.c.l.s4 1966171168
        %v2233 = vunpack.c.0.s8 %v2232
        %v2234 = vlaneseq
        %v2235 = vshrl.u32 %v2234, 7
        %v2236 = vsub.s32 %v2233, %v2235
        %v2237 = vrot.slane %v2215, %v2236
        %v2239 = vunpack.c.l.s4 1966171168
        %v2240 = vunpack.c.0.s8 %v2239
        %v2241 = vlaneseq
        %v2242 = vshrl.u32 %v2241, 7
        %v2243 = vsub.s32 %v2240, %v2242
        %v2244 = vrot.slane %v2216, %v2243
        %v2245 = vcombine.low %v2223, %v2230
        %v2246 = vcombine.low %v2237, %v2244
        %v2248 = vunpack.c.l.s4 1966171168
        %v2249 = vunpack.c.0.s8 %v2248
        %v2250 = vlaneseq
        %v2251 = vshrl.u32 %v2250, 7
        %v2252 = vsub.s32 %v2249, %v2251
        %v2253 = vrot.slane %v2245, %v2252
        %v2255 = vunpack.c.l.s4 1966171168
        %v2256 = vunpack.c.0.s8 %v2255
        %v2257 = vlaneseq
        %v2258 = vshrl.u32 %v2257, 7
        %v2259 = vsub.s32 %v2256, %v2258
        %v2260 = vrot.slane %v2246, %v2259
        %v2261 = vcombine.low %v2253, %v2260
        %2262 = vset.pattern.permute.xlu0 0
        %2263 = vperm.xlu0 %2262, %v2114
        %v2264 = vpop.permute.xlu0 %2263
        %2265 = vset.pattern.permute.xlu0 0
        %2266 = vperm.xlu0 %2265, %v2163
        %v2267 = vpop.permute.xlu0 %2266
        %2268 = vset.pattern.permute.xlu0 0
        %2269 = vperm.xlu0 %2268, %v2212
        %v2270 = vpop.permute.xlu0 %2269
        %2271 = vset.pattern.permute.xlu0 0
        %2272 = vperm.xlu0 %2271, %v2261
        %v2273 = vpop.permute.xlu0 %2272
        %v2274 = vlaneseq
        %v2275 = vshrl.u32 %v2274, 7
        %v2276 = vsub.s32 %v781, %v2275
        %v2277 = vrot.slane %v2264, %v2276
        %v2278 = vlaneseq
        %v2279 = vshrl.u32 %v2278, 7
        %v2280 = vsub.s32 %v786, %v2279
        %v2281 = vrot.slane %v2267, %v2280
        %v2282 = vsel %vm791, %v2281, %v2277
        %v2283 = vlaneseq
        %v2284 = vshrl.u32 %v2283, 7
        %v2285 = vsub.s32 %v793, %v2284
        %v2286 = vrot.slane %v2270, %v2285
        %v2287 = vsel %vm798, %v2286, %v2282
        %v2288 = vlaneseq
        %v2289 = vshrl.u32 %v2288, 7
        %v2290 = vsub.s32 %v800, %v2289
        %v2291 = vrot.slane %v2273, %v2290
        %v2292 = vsel %vm805, %v2291, %v2287
        %v2294 = vunpack.c.l.s4 1966171168
        %v2295 = vunpack.c.0.s8 %v2294
        %v2296 = vlaneseq
        %v2297 = vshrl.u32 %v2296, 7
        %v2298 = vsub.s32 %v2295, %v2297
        %v2299 = vrot.slane %v2292, %v2298
        %v2301 = vunpack.c.l.s4 1966171168
        %v2302 = vunpack.c.0.s8 %v2301
        %v2303 = vlaneseq
        %v2304 = vshrl.u32 %v2303, 7
        %v2305 = vsub.s32 %v2302, %v2304
        %v2306 = vrot.slane %v2299, %v2305
        %v2308 = vadd.f32 %v1933, %v2306
        %2309 = vst.msk [vmem:[%s1932] sm:$0x1] %vm823, %v2308
        %s2310 = scalar_lea.vmem %s242, 32 [#allocation3]
        %v2311 = vld [vmem:[%s2310] sm:$0xff]
        %v2313 = vcombine.high %v2311, %v2311
        %v2314 = vsel %vm325, %v2311, 0
        %v2316 = vsel %vm325, %v2313, 0
        %2318 = vmatprep.subr.mxu0 %v2316
        %2319 = vmatpush1.msra.mxu0 %v2314
        %2320 = vmatprep.subr.mxu0 0.0
        %2321 = vmatpush1.msra.mxu0 0.0
        %2322 = vmatprep.subr.mxu0 0.0
        %2323 = vmatpush1.msra.mxu0 0.0
        %2324 = vmatprep.subr.mxu0 0.0
        %2325 = vmatpush1.msra.mxu0 0.0
        %2326 = vmatprep.subr.mxu0 0.0
        %2327 = vmatpush1.msra.mxu0 0.0
        %2328 = vmatprep.subr.mxu0 0.0
        %2329 = vmatpush1.msra.mxu0 0.0
        %2330 = vmatprep.subr.mxu0 0.0
        %2331 = vmatpush1.msra.mxu0 0.0
        %2332 = vmatprep.subr.mxu0 0.0
        %2333 = vmatpush1.msra.mxu0 0.0
        %2334 = vmatprep.subr.mxu0 0.0
        %2335 = vmatpush1.msra.mxu0 0.0
        %2336 = vmatprep.subr.mxu0 0.0
        %2337 = vmatpush1.msra.mxu0 0.0
        %2338 = vmatprep.subr.mxu0 0.0
        %2339 = vmatpush1.msra.mxu0 0.0
        %2340 = vmatprep.subr.mxu0 0.0
        %2341 = vmatpush1.msra.mxu0 0.0
        %2342 = vmatprep.subr.mxu0 0.0
        %2343 = vmatpush1.msra.mxu0 0.0
        %2344 = vmatprep.subr.mxu0 0.0
        %2345 = vmatpush1.msra.mxu0 0.0
        %2346 = vmatprep.subr.mxu0 0.0
        %2347 = vmatpush1.msra.mxu0 0.0
        %2348 = vmatprep.subr.mxu0 0.0
        %2349 = vmatpush1.msra.mxu0 0.0
        %2350 = vmatprep.subr.mxu0 0.0
        %2351 = vmatpush1.msra.mxu0 0.0
        %2352 = vmatprep.subr.mxu0 0.0
        %2353 = vmatpush1.msra.mxu0 0.0
        %2354 = vmatprep.subr.mxu0 0.0
        %2355 = vmatpush1.msra.mxu0 0.0
        %2356 = vmatprep.subr.mxu0 0.0
        %2357 = vmatpush1.msra.mxu0 0.0
        %2358 = vmatprep.subr.mxu0 0.0
        %2359 = vmatpush1.msra.mxu0 0.0
        %2360 = vmatprep.subr.mxu0 0.0
        %2361 = vmatpush1.msra.mxu0 0.0
        %2362 = vmatprep.subr.mxu0 0.0
        %2363 = vmatpush1.msra.mxu0 0.0
        %2364 = vmatprep.subr.mxu0 0.0
        %2365 = vmatpush1.msra.mxu0 0.0
        %2366 = vmatprep.subr.mxu0 0.0
        %2367 = vmatpush1.msra.mxu0 0.0
        %2368 = vmatprep.subr.mxu0 0.0
        %2369 = vmatpush1.msra.mxu0 0.0
        %2370 = vmatprep.subr.mxu0 0.0
        %2371 = vmatpush1.msra.mxu0 0.0
        %2372 = vmatprep.subr.mxu0 0.0
        %2373 = vmatpush1.msra.mxu0 0.0
        %2374 = vmatprep.subr.mxu0 0.0
        %2375 = vmatpush1.msra.mxu0 0.0
        %2376 = vmatprep.subr.mxu0 0.0
        %2377 = vmatpush1.msra.mxu0 0.0
        %2378 = vmatprep.subr.mxu0 0.0
        %2379 = vmatpush1.msra.mxu0 0.0
        %2380 = vmatprep.subr.mxu0 0.0
        %2381 = vmatpush1.msra.mxu0 0.0
        %2382 = vmatprep.mubr.f32.mxu0 0.0
        %2383 = vmatmul.mubr.f32.gmra.mrb[0].mxu0 %v314
        %v2384 = vpop.f32.mrb[0].mxu0
        %v2385 = vadd.f32 %v293, %v2384
        %v2386 = vpop.f32.mrb[0].mxu0
        %v2387 = vadd.f32 %v293, %v2386
        %2388 = vmatprep.mubr.f32.mxu0 0.0
        %2389 = vmatmul.mubr.f32.gmra.mrb[0].mxu0 %v317
        %v2390 = vpop.f32.mrb[0].mxu0
        %v2391 = vadd.f32 %v298, %v2390
        %v2392 = vpop.f32.mrb[0].mxu0
        %v2393 = vadd.f32 %v298, %v2392
        %2394 = vmatprep.mubr.f32.mxu0 0.0
        %2395 = vmatmul.mubr.f32.gmra.mrb[0].mxu0 %v320
        %v2396 = vpop.f32.mrb[0].mxu0
        %v2397 = vadd.f32 %v303, %v2396
        %v2398 = vpop.f32.mrb[0].mxu0
        %v2399 = vadd.f32 %v303, %v2398
        %2400 = vmatprep.mubr.f32.mxu0 0.0
        %2401 = vmatmul.mubr.f32.gmra.mrb[0].mxu0 %v323
        %v2402 = vpop.f32.mrb[0].mxu0
        %v2403 = vadd.f32 %v308, %v2402
        %v2404 = vpop.f32.mrb[0].mxu0
        %v2405 = vadd.f32 %v308, %v2404
        %2406 = vdwg.mxu0
        %v2407 = vmax.f32 %v2385, 0.0
        %v2408 = vmax.f32 %v2387, 0.0
        %v2409 = vmax.f32 %v2391, 0.0
        %v2410 = vmax.f32 %v2393, 0.0
        %v2411 = vmax.f32 %v2397, 0.0
        %v2412 = vmax.f32 %v2399, 0.0
        %v2413 = vmax.f32 %v2403, 0.0
        %v2414 = vmax.f32 %v2405, 0.0
        %v2415 = vadd.f32 %v2407, %v2408
        %2416 = vadd.xlane.f32.xlu0 %v2415
        %v2417 = vpop.xlane.xlu0 %2416
        %v2418 = vadd.f32 %v2409, %v2410
        %2419 = vadd.xlane.f32.xlu0 %v2418
        %v2420 = vpop.xlane.xlu0 %2419
        %v2421 = vadd.f32 %v2411, %v2412
        %2422 = vadd.xlane.f32.xlu0 %v2421
        %v2423 = vpop.xlane.xlu0 %2422
        %v2424 = vadd.f32 %v2413, %v2414
        %2425 = vadd.xlane.f32.xlu0 %v2424
        %v2426 = vpop.xlane.xlu0 %2425
        %s2427 = scalar_lea.vmem [#allocation2], 4
        %v2428 = vld [vmem:[%s2427] sm:$0x1]
        %v2433 = vlaneseq
        %v2434 = vshrl.u32 %v2433, 7
        %v2435 = vsub.s32 0, %v2434
        %v2436 = vrot.slane %v2417, %v2435
        %v2437 = vlaneseq
        %v2438 = vshrl.u32 %v2437, 7
        %v2439 = vsub.s32 1, %v2438
        %v2440 = vrot.slane %v2417, %v2439
        %v2441 = vlaneseq
        %v2442 = vshrl.u32 %v2441, 7
        %v2443 = vsub.s32 2, %v2442
        %v2444 = vrot.slane %v2417, %v2443
        %v2445 = vlaneseq
        %v2446 = vshrl.u32 %v2445, 7
        %v2447 = vsub.s32 3, %v2446
        %v2448 = vrot.slane %v2417, %v2447
        %v2449 = vlaneseq
        %v2450 = vshrl.u32 %v2449, 7
        %v2451 = vsub.s32 4, %v2450
        %v2452 = vrot.slane %v2417, %v2451
        %v2453 = vlaneseq
        %v2454 = vshrl.u32 %v2453, 7
        %v2455 = vsub.s32 5, %v2454
        %v2456 = vrot.slane %v2417, %v2455
        %v2457 = vlaneseq
        %v2458 = vshrl.u32 %v2457, 7
        %v2459 = vsub.s32 6, %v2458
        %v2460 = vrot.slane %v2417, %v2459
        %v2461 = vlaneseq
        %v2462 = vshrl.u32 %v2461, 7
        %v2463 = vsub.s32 7, %v2462
        %v2464 = vrot.slane %v2417, %v2463
        %v2465 = vlaneseq
        %v2466 = vshrl.u32 %v2465, 7
        %v2467 = vsub.s32 0, %v2466
        %v2468 = vrot.slane %v2420, %v2467
        %v2469 = vlaneseq
        %v2470 = vshrl.u32 %v2469, 7
        %v2471 = vsub.s32 1, %v2470
        %v2472 = vrot.slane %v2420, %v2471
        %v2473 = vlaneseq
        %v2474 = vshrl.u32 %v2473, 7
        %v2475 = vsub.s32 2, %v2474
        %v2476 = vrot.slane %v2420, %v2475
        %v2477 = vlaneseq
        %v2478 = vshrl.u32 %v2477, 7
        %v2479 = vsub.s32 3, %v2478
        %v2480 = vrot.slane %v2420, %v2479
        %v2481 = vlaneseq
        %v2482 = vshrl.u32 %v2481, 7
        %v2483 = vsub.s32 4, %v2482
        %v2484 = vrot.slane %v2420, %v2483
        %v2485 = vlaneseq
        %v2486 = vshrl.u32 %v2485, 7
        %v2487 = vsub.s32 5, %v2486
        %v2488 = vrot.slane %v2420, %v2487
        %v2489 = vlaneseq
        %v2490 = vshrl.u32 %v2489, 7
        %v2491 = vsub.s32 6, %v2490
        %v2492 = vrot.slane %v2420, %v2491
        %v2493 = vlaneseq
        %v2494 = vshrl.u32 %v2493, 7
        %v2495 = vsub.s32 7, %v2494
        %v2496 = vrot.slane %v2420, %v2495
        %v2497 = vlaneseq
        %v2498 = vshrl.u32 %v2497, 7
        %v2499 = vsub.s32 0, %v2498
        %v2500 = vrot.slane %v2423, %v2499
        %v2501 = vlaneseq
        %v2502 = vshrl.u32 %v2501, 7
        %v2503 = vsub.s32 1, %v2502
        %v2504 = vrot.slane %v2423, %v2503
        %v2505 = vlaneseq
        %v2506 = vshrl.u32 %v2505, 7
        %v2507 = vsub.s32 2, %v2506
        %v2508 = vrot.slane %v2423, %v2507
        %v2509 = vlaneseq
        %v2510 = vshrl.u32 %v2509, 7
        %v2511 = vsub.s32 3, %v2510
        %v2512 = vrot.slane %v2423, %v2511
        %v2513 = vlaneseq
        %v2514 = vshrl.u32 %v2513, 7
        %v2515 = vsub.s32 4, %v2514
        %v2516 = vrot.slane %v2423, %v2515
        %v2517 = vlaneseq
        %v2518 = vshrl.u32 %v2517, 7
        %v2519 = vsub.s32 5, %v2518
        %v2520 = vrot.slane %v2423, %v2519
        %v2521 = vlaneseq
        %v2522 = vshrl.u32 %v2521, 7
        %v2523 = vsub.s32 6, %v2522
        %v2524 = vrot.slane %v2423, %v2523
        %v2525 = vlaneseq
        %v2526 = vshrl.u32 %v2525, 7
        %v2527 = vsub.s32 7, %v2526
        %v2528 = vrot.slane %v2423, %v2527
        %v2529 = vlaneseq
        %v2530 = vshrl.u32 %v2529, 7
        %v2531 = vsub.s32 0, %v2530
        %v2532 = vrot.slane %v2426, %v2531
        %v2533 = vlaneseq
        %v2534 = vshrl.u32 %v2533, 7
        %v2535 = vsub.s32 1, %v2534
        %v2536 = vrot.slane %v2426, %v2535
        %v2537 = vlaneseq
        %v2538 = vshrl.u32 %v2537, 7
        %v2539 = vsub.s32 2, %v2538
        %v2540 = vrot.slane %v2426, %v2539
        %v2541 = vlaneseq
        %v2542 = vshrl.u32 %v2541, 7
        %v2543 = vsub.s32 3, %v2542
        %v2544 = vrot.slane %v2426, %v2543
        %v2545 = vlaneseq
        %v2546 = vshrl.u32 %v2545, 7
        %v2547 = vsub.s32 4, %v2546
        %v2548 = vrot.slane %v2426, %v2547
        %v2549 = vlaneseq
        %v2550 = vshrl.u32 %v2549, 7
        %v2551 = vsub.s32 5, %v2550
        %v2552 = vrot.slane %v2426, %v2551
        %v2553 = vlaneseq
        %v2554 = vshrl.u32 %v2553, 7
        %v2555 = vsub.s32 6, %v2554
        %v2556 = vrot.slane %v2426, %v2555
        %v2557 = vlaneseq
        %v2558 = vshrl.u32 %v2557, 7
        %v2559 = vsub.s32 7, %v2558
        %v2560 = vrot.slane %v2426, %v2559
        %v2561 = vcombine.low %v2436, %v2440
        %v2562 = vcombine.low %v2444, %v2448
        %v2563 = vcombine.low %v2452, %v2456
        %v2564 = vcombine.low %v2460, %v2464
        %v2566 = vunpack.c.l.s4 1966171168
        %v2567 = vunpack.c.0.s8 %v2566
        %v2568 = vlaneseq
        %v2569 = vshrl.u32 %v2568, 7
        %v2570 = vsub.s32 %v2567, %v2569
        %v2571 = vrot.slane %v2561, %v2570
        %v2573 = vunpack.c.l.s4 1966171168
        %v2574 = vunpack.c.0.s8 %v2573
        %v2575 = vlaneseq
        %v2576 = vshrl.u32 %v2575, 7
        %v2577 = vsub.s32 %v2574, %v2576
        %v2578 = vrot.slane %v2562, %v2577
        %v2580 = vunpack.c.l.s4 1966171168
        %v2581 = vunpack.c.0.s8 %v2580
        %v2582 = vlaneseq
        %v2583 = vshrl.u32 %v2582, 7
        %v2584 = vsub.s32 %v2581, %v2583
        %v2585 = vrot.slane %v2563, %v2584
        %v2587 = vunpack.c.l.s4 1966171168
        %v2588 = vunpack.c.0.s8 %v2587
        %v2589 = vlaneseq
        %v2590 = vshrl.u32 %v2589, 7
        %v2591 = vsub.s32 %v2588, %v2590
        %v2592 = vrot.slane %v2564, %v2591
        %v2593 = vcombine.low %v2571, %v2578
        %v2594 = vcombine.low %v2585, %v2592
        %v2596 = vunpack.c.l.s4 1966171168
        %v2597 = vunpack.c.0.s8 %v2596
        %v2598 = vlaneseq
        %v2599 = vshrl.u32 %v2598, 7
        %v2600 = vsub.s32 %v2597, %v2599
        %v2601 = vrot.slane %v2593, %v2600
        %v2603 = vunpack.c.l.s4 1966171168
        %v2604 = vunpack.c.0.s8 %v2603
        %v2605 = vlaneseq
        %v2606 = vshrl.u32 %v2605, 7
        %v2607 = vsub.s32 %v2604, %v2606
        %v2608 = vrot.slane %v2594, %v2607
        %v2609 = vcombine.low %v2601, %v2608
        %v2610 = vcombine.low %v2468, %v2472
        %v2611 = vcombine.low %v2476, %v2480
        %v2612 = vcombine.low %v2484, %v2488
        %v2613 = vcombine.low %v2492, %v2496
        %v2615 = vunpack.c.l.s4 1966171168
        %v2616 = vunpack.c.0.s8 %v2615
        %v2617 = vlaneseq
        %v2618 = vshrl.u32 %v2617, 7
        %v2619 = vsub.s32 %v2616, %v2618
        %v2620 = vrot.slane %v2610, %v2619
        %v2622 = vunpack.c.l.s4 1966171168
        %v2623 = vunpack.c.0.s8 %v2622
        %v2624 = vlaneseq
        %v2625 = vshrl.u32 %v2624, 7
        %v2626 = vsub.s32 %v2623, %v2625
        %v2627 = vrot.slane %v2611, %v2626
        %v2629 = vunpack.c.l.s4 1966171168
        %v2630 = vunpack.c.0.s8 %v2629
        %v2631 = vlaneseq
        %v2632 = vshrl.u32 %v2631, 7
        %v2633 = vsub.s32 %v2630, %v2632
        %v2634 = vrot.slane %v2612, %v2633
        %v2636 = vunpack.c.l.s4 1966171168
        %v2637 = vunpack.c.0.s8 %v2636
        %v2638 = vlaneseq
        %v2639 = vshrl.u32 %v2638, 7
        %v2640 = vsub.s32 %v2637, %v2639
        %v2641 = vrot.slane %v2613, %v2640
        %v2642 = vcombine.low %v2620, %v2627
        %v2643 = vcombine.low %v2634, %v2641
        %v2645 = vunpack.c.l.s4 1966171168
        %v2646 = vunpack.c.0.s8 %v2645
        %v2647 = vlaneseq
        %v2648 = vshrl.u32 %v2647, 7
        %v2649 = vsub.s32 %v2646, %v2648
        %v2650 = vrot.slane %v2642, %v2649
        %v2652 = vunpack.c.l.s4 1966171168
        %v2653 = vunpack.c.0.s8 %v2652
        %v2654 = vlaneseq
        %v2655 = vshrl.u32 %v2654, 7
        %v2656 = vsub.s32 %v2653, %v2655
        %v2657 = vrot.slane %v2643, %v2656
        %v2658 = vcombine.low %v2650, %v2657
        %v2659 = vcombine.low %v2500, %v2504
        %v2660 = vcombine.low %v2508, %v2512
        %v2661 = vcombine.low %v2516, %v2520
        %v2662 = vcombine.low %v2524, %v2528
        %v2664 = vunpack.c.l.s4 1966171168
        %v2665 = vunpack.c.0.s8 %v2664
        %v2666 = vlaneseq
        %v2667 = vshrl.u32 %v2666, 7
        %v2668 = vsub.s32 %v2665, %v2667
        %v2669 = vrot.slane %v2659, %v2668
        %v2671 = vunpack.c.l.s4 1966171168
        %v2672 = vunpack.c.0.s8 %v2671
        %v2673 = vlaneseq
        %v2674 = vshrl.u32 %v2673, 7
        %v2675 = vsub.s32 %v2672, %v2674
        %v2676 = vrot.slane %v2660, %v2675
        %v2678 = vunpack.c.l.s4 1966171168
        %v2679 = vunpack.c.0.s8 %v2678
        %v2680 = vlaneseq
        %v2681 = vshrl.u32 %v2680, 7
        %v2682 = vsub.s32 %v2679, %v2681
        %v2683 = vrot.slane %v2661, %v2682
        %v2685 = vunpack.c.l.s4 1966171168
        %v2686 = vunpack.c.0.s8 %v2685
        %v2687 = vlaneseq
        %v2688 = vshrl.u32 %v2687, 7
        %v2689 = vsub.s32 %v2686, %v2688
        %v2690 = vrot.slane %v2662, %v2689
        %v2691 = vcombine.low %v2669, %v2676
        %v2692 = vcombine.low %v2683, %v2690
        %v2694 = vunpack.c.l.s4 1966171168
        %v2695 = vunpack.c.0.s8 %v2694
        %v2696 = vlaneseq
        %v2697 = vshrl.u32 %v2696, 7
        %v2698 = vsub.s32 %v2695, %v2697
        %v2699 = vrot.slane %v2691, %v2698
        %v2701 = vunpack.c.l.s4 1966171168
        %v2702 = vunpack.c.0.s8 %v2701
        %v2703 = vlaneseq
        %v2704 = vshrl.u32 %v2703, 7
        %v2705 = vsub.s32 %v2702, %v2704
        %v2706 = vrot.slane %v2692, %v2705
        %v2707 = vcombine.low %v2699, %v2706
        %v2708 = vcombine.low %v2532, %v2536
        %v2709 = vcombine.low %v2540, %v2544
        %v2710 = vcombine.low %v2548, %v2552
        %v2711 = vcombine.low %v2556, %v2560
        %v2713 = vunpack.c.l.s4 1966171168
        %v2714 = vunpack.c.0.s8 %v2713
        %v2715 = vlaneseq
        %v2716 = vshrl.u32 %v2715, 7
        %v2717 = vsub.s32 %v2714, %v2716
        %v2718 = vrot.slane %v2708, %v2717
        %v2720 = vunpack.c.l.s4 1966171168
        %v2721 = vunpack.c.0.s8 %v2720
        %v2722 = vlaneseq
        %v2723 = vshrl.u32 %v2722, 7
        %v2724 = vsub.s32 %v2721, %v2723
        %v2725 = vrot.slane %v2709, %v2724
        %v2727 = vunpack.c.l.s4 1966171168
        %v2728 = vunpack.c.0.s8 %v2727
        %v2729 = vlaneseq
        %v2730 = vshrl.u32 %v2729, 7
        %v2731 = vsub.s32 %v2728, %v2730
        %v2732 = vrot.slane %v2710, %v2731
        %v2734 = vunpack.c.l.s4 1966171168
        %v2735 = vunpack.c.0.s8 %v2734
        %v2736 = vlaneseq
        %v2737 = vshrl.u32 %v2736, 7
        %v2738 = vsub.s32 %v2735, %v2737
        %v2739 = vrot.slane %v2711, %v2738
        %v2740 = vcombine.low %v2718, %v2725
        %v2741 = vcombine.low %v2732, %v2739
        %v2743 = vunpack.c.l.s4 1966171168
        %v2744 = vunpack.c.0.s8 %v2743
        %v2745 = vlaneseq
        %v2746 = vshrl.u32 %v2745, 7
        %v2747 = vsub.s32 %v2744, %v2746
        %v2748 = vrot.slane %v2740, %v2747
        %v2750 = vunpack.c.l.s4 1966171168
        %v2751 = vunpack.c.0.s8 %v2750
        %v2752 = vlaneseq
        %v2753 = vshrl.u32 %v2752, 7
        %v2754 = vsub.s32 %v2751, %v2753
        %v2755 = vrot.slane %v2741, %v2754
        %v2756 = vcombine.low %v2748, %v2755
        %2757 = vset.pattern.permute.xlu0 0
        %2758 = vperm.xlu0 %2757, %v2609
        %v2759 = vpop.permute.xlu0 %2758
        %2760 = vset.pattern.permute.xlu0 0
        %2761 = vperm.xlu0 %2760, %v2658
        %v2762 = vpop.permute.xlu0 %2761
        %2763 = vset.pattern.permute.xlu0 0
        %2764 = vperm.xlu0 %2763, %v2707
        %v2765 = vpop.permute.xlu0 %2764
        %2766 = vset.pattern.permute.xlu0 0
        %2767 = vperm.xlu0 %2766, %v2756
        %v2768 = vpop.permute.xlu0 %2767
        %v2769 = vlaneseq
        %v2770 = vshrl.u32 %v2769, 7
        %v2771 = vsub.s32 %v781, %v2770
        %v2772 = vrot.slane %v2759, %v2771
        %v2773 = vlaneseq
        %v2774 = vshrl.u32 %v2773, 7
        %v2775 = vsub.s32 %v786, %v2774
        %v2776 = vrot.slane %v2762, %v2775
        %v2777 = vsel %vm791, %v2776, %v2772
        %v2778 = vlaneseq
        %v2779 = vshrl.u32 %v2778, 7
        %v2780 = vsub.s32 %v793, %v2779
        %v2781 = vrot.slane %v2765, %v2780
        %v2782 = vsel %vm798, %v2781, %v2777
        %v2783 = vlaneseq
        %v2784 = vshrl.u32 %v2783, 7
        %v2785 = vsub.s32 %v800, %v2784
        %v2786 = vrot.slane %v2768, %v2785
        %v2787 = vsel %vm805, %v2786, %v2782
        %v2789 = vunpack.c.l.s4 1966171168
        %v2790 = vunpack.c.0.s8 %v2789
        %v2791 = vlaneseq
        %v2792 = vshrl.u32 %v2791, 7
        %v2793 = vsub.s32 %v2790, %v2792
        %v2794 = vrot.slane %v2787, %v2793
        %v2796 = vunpack.c.l.s4 1966171168
        %v2797 = vunpack.c.0.s8 %v2796
        %v2798 = vlaneseq
        %v2799 = vshrl.u32 %v2798, 7
        %v2800 = vsub.s32 %v2797, %v2799
        %v2801 = vrot.slane %v2794, %v2800
        %v2803 = vadd.f32 %v2428, %v2801
        %2804 = vst.msk [vmem:[%s2427] sm:$0x1] %vm823, %v2803
        %s2805 = scalar_lea.vmem %s242, 40 [#allocation3]
        %v2806 = vld [vmem:[%s2805] sm:$0xff]
        %v2808 = vcombine.high %v2806, %v2806
        %v2809 = vsel %vm325, %v2806, 0
        %v2811 = vsel %vm325, %v2808, 0
        %2813 = vmatprep.subr.mxu0 %v2811
        %2814 = vmatpush1.msra.mxu0 %v2809
        %2815 = vmatprep.subr.mxu0 0.0
        %2816 = vmatpush1.msra.mxu0 0.0
        %2817 = vmatprep.subr.mxu0 0.0
        %2818 = vmatpush1.msra.mxu0 0.0
        %2819 = vmatprep.subr.mxu0 0.0
        %2820 = vmatpush1.msra.mxu0 0.0
        %2821 = vmatprep.subr.mxu0 0.0
        %2822 = vmatpush1.msra.mxu0 0.0
        %2823 = vmatprep.subr.mxu0 0.0
        %2824 = vmatpush1.msra.mxu0 0.0
        %2825 = vmatprep.subr.mxu0 0.0
        %2826 = vmatpush1.msra.mxu0 0.0
        %2827 = vmatprep.subr.mxu0 0.0
        %2828 = vmatpush1.msra.mxu0 0.0
        %2829 = vmatprep.subr.mxu0 0.0
        %2830 = vmatpush1.msra.mxu0 0.0
        %2831 = vmatprep.subr.mxu0 0.0
        %2832 = vmatpush1.msra.mxu0 0.0
        %2833 = vmatprep.subr.mxu0 0.0
        %2834 = vmatpush1.msra.mxu0 0.0
        %2835 = vmatprep.subr.mxu0 0.0
        %2836 = vmatpush1.msra.mxu0 0.0
        %2837 = vmatprep.subr.mxu0 0.0
        %2838 = vmatpush1.msra.mxu0 0.0
        %2839 = vmatprep.subr.mxu0 0.0
        %2840 = vmatpush1.msra.mxu0 0.0
        %2841 = vmatprep.subr.mxu0 0.0
        %2842 = vmatpush1.msra.mxu0 0.0
        %2843 = vmatprep.subr.mxu0 0.0
        %2844 = vmatpush1.msra.mxu0 0.0
        %2845 = vmatprep.subr.mxu0 0.0
        %2846 = vmatpush1.msra.mxu0 0.0
        %2847 = vmatprep.subr.mxu0 0.0
        %2848 = vmatpush1.msra.mxu0 0.0
        %2849 = vmatprep.subr.mxu0 0.0
        %2850 = vmatpush1.msra.mxu0 0.0
        %2851 = vmatprep.subr.mxu0 0.0
        %2852 = vmatpush1.msra.mxu0 0.0
        %2853 = vmatprep.subr.mxu0 0.0
        %2854 = vmatpush1.msra.mxu0 0.0
        %2855 = vmatprep.subr.mxu0 0.0
        %2856 = vmatpush1.msra.mxu0 0.0
        %2857 = vmatprep.subr.mxu0 0.0
        %2858 = vmatpush1.msra.mxu0 0.0
        %2859 = vmatprep.subr.mxu0 0.0
        %2860 = vmatpush1.msra.mxu0 0.0
        %2861 = vmatprep.subr.mxu0 0.0
        %2862 = vmatpush1.msra.mxu0 0.0
        %2863 = vmatprep.subr.mxu0 0.0
        %2864 = vmatpush1.msra.mxu0 0.0
        %2865 = vmatprep.subr.mxu0 0.0
        %2866 = vmatpush1.msra.mxu0 0.0
        %2867 = vmatprep.subr.mxu0 0.0
        %2868 = vmatpush1.msra.mxu0 0.0
        %2869 = vmatprep.subr.mxu0 0.0
        %2870 = vmatpush1.msra.mxu0 0.0
        %2871 = vmatprep.subr.mxu0 0.0
        %2872 = vmatpush1.msra.mxu0 0.0
        %2873 = vmatprep.subr.mxu0 0.0
        %2874 = vmatpush1.msra.mxu0 0.0
        %2875 = vmatprep.subr.mxu0 0.0
        %2876 = vmatpush1.msra.mxu0 0.0
        %2877 = vmatprep.mubr.f32.mxu0 0.0
        %2878 = vmatmul.mubr.f32.gmra.mrb[0].mxu0 %v314
        %v2879 = vpop.f32.mrb[0].mxu0
        %v2880 = vadd.f32 %v293, %v2879
        %v2881 = vpop.f32.mrb[0].mxu0
        %v2882 = vadd.f32 %v293, %v2881
        %2883 = vmatprep.mubr.f32.mxu0 0.0
        %2884 = vmatmul.mubr.f32.gmra.mrb[0].mxu0 %v317
        %v2885 = vpop.f32.mrb[0].mxu0
        %v2886 = vadd.f32 %v298, %v2885
        %v2887 = vpop.f32.mrb[0].mxu0
        %v2888 = vadd.f32 %v298, %v2887
        %2889 = vmatprep.mubr.f32.mxu0 0.0
        %2890 = vmatmul.mubr.f32.gmra.mrb[0].mxu0 %v320
        %v2891 = vpop.f32.mrb[0].mxu0
        %v2892 = vadd.f32 %v303, %v2891
        %v2893 = vpop.f32.mrb[0].mxu0
        %v2894 = vadd.f32 %v303, %v2893
        %2895 = vmatprep.mubr.f32.mxu0 0.0
        %2896 = vmatmul.mubr.f32.gmra.mrb[0].mxu0 %v323
        %v2897 = vpop.f32.mrb[0].mxu0
        %v2898 = vadd.f32 %v308, %v2897
        %v2899 = vpop.f32.mrb[0].mxu0
        %v2900 = vadd.f32 %v308, %v2899
        %2901 = vdwg.mxu0
        %v2902 = vmax.f32 %v2880, 0.0
        %v2903 = vmax.f32 %v2882, 0.0
        %v2904 = vmax.f32 %v2886, 0.0
        %v2905 = vmax.f32 %v2888, 0.0
        %v2906 = vmax.f32 %v2892, 0.0
        %v2907 = vmax.f32 %v2894, 0.0
        %v2908 = vmax.f32 %v2898, 0.0
        %v2909 = vmax.f32 %v2900, 0.0
        %v2910 = vadd.f32 %v2902, %v2903
        %2911 = vadd.xlane.f32.xlu0 %v2910
        %v2912 = vpop.xlane.xlu0 %2911
        %v2913 = vadd.f32 %v2904, %v2905
        %2914 = vadd.xlane.f32.xlu0 %v2913
        %v2915 = vpop.xlane.xlu0 %2914
        %v2916 = vadd.f32 %v2906, %v2907
        %2917 = vadd.xlane.f32.xlu0 %v2916
        %v2918 = vpop.xlane.xlu0 %2917
        %v2919 = vadd.f32 %v2908, %v2909
        %2920 = vadd.xlane.f32.xlu0 %v2919
        %v2921 = vpop.xlane.xlu0 %2920
        %s2922 = scalar_lea.vmem [#allocation2], 5
        %v2923 = vld [vmem:[%s2922] sm:$0x1]
        %v2928 = vlaneseq
        %v2929 = vshrl.u32 %v2928, 7
        %v2930 = vsub.s32 0, %v2929
        %v2931 = vrot.slane %v2912, %v2930
        %v2932 = vlaneseq
        %v2933 = vshrl.u32 %v2932, 7
        %v2934 = vsub.s32 1, %v2933
        %v2935 = vrot.slane %v2912, %v2934
        %v2936 = vlaneseq
        %v2937 = vshrl.u32 %v2936, 7
        %v2938 = vsub.s32 2, %v2937
        %v2939 = vrot.slane %v2912, %v2938
        %v2940 = vlaneseq
        %v2941 = vshrl.u32 %v2940, 7
        %v2942 = vsub.s32 3, %v2941
        %v2943 = vrot.slane %v2912, %v2942
        %v2944 = vlaneseq
        %v2945 = vshrl.u32 %v2944, 7
        %v2946 = vsub.s32 4, %v2945
        %v2947 = vrot.slane %v2912, %v2946
        %v2948 = vlaneseq
        %v2949 = vshrl.u32 %v2948, 7
        %v2950 = vsub.s32 5, %v2949
        %v2951 = vrot.slane %v2912, %v2950
        %v2952 = vlaneseq
        %v2953 = vshrl.u32 %v2952, 7
        %v2954 = vsub.s32 6, %v2953
        %v2955 = vrot.slane %v2912, %v2954
        %v2956 = vlaneseq
        %v2957 = vshrl.u32 %v2956, 7
        %v2958 = vsub.s32 7, %v2957
        %v2959 = vrot.slane %v2912, %v2958
        %v2960 = vlaneseq
        %v2961 = vshrl.u32 %v2960, 7
        %v2962 = vsub.s32 0, %v2961
        %v2963 = vrot.slane %v2915, %v2962
        %v2964 = vlaneseq
        %v2965 = vshrl.u32 %v2964, 7
        %v2966 = vsub.s32 1, %v2965
        %v2967 = vrot.slane %v2915, %v2966
        %v2968 = vlaneseq
        %v2969 = vshrl.u32 %v2968, 7
        %v2970 = vsub.s32 2, %v2969
        %v2971 = vrot.slane %v2915, %v2970
        %v2972 = vlaneseq
        %v2973 = vshrl.u32 %v2972, 7
        %v2974 = vsub.s32 3, %v2973
        %v2975 = vrot.slane %v2915, %v2974
        %v2976 = vlaneseq
        %v2977 = vshrl.u32 %v2976, 7
        %v2978 = vsub.s32 4, %v2977
        %v2979 = vrot.slane %v2915, %v2978
        %v2980 = vlaneseq
        %v2981 = vshrl.u32 %v2980, 7
        %v2982 = vsub.s32 5, %v2981
        %v2983 = vrot.slane %v2915, %v2982
        %v2984 = vlaneseq
        %v2985 = vshrl.u32 %v2984, 7
        %v2986 = vsub.s32 6, %v2985
        %v2987 = vrot.slane %v2915, %v2986
        %v2988 = vlaneseq
        %v2989 = vshrl.u32 %v2988, 7
        %v2990 = vsub.s32 7, %v2989
        %v2991 = vrot.slane %v2915, %v2990
        %v2992 = vlaneseq
        %v2993 = vshrl.u32 %v2992, 7
        %v2994 = vsub.s32 0, %v2993
        %v2995 = vrot.slane %v2918, %v2994
        %v2996 = vlaneseq
        %v2997 = vshrl.u32 %v2996, 7
        %v2998 = vsub.s32 1, %v2997
        %v2999 = vrot.slane %v2918, %v2998
        %v3000 = vlaneseq
        %v3001 = vshrl.u32 %v3000, 7
        %v3002 = vsub.s32 2, %v3001
        %v3003 = vrot.slane %v2918, %v3002
        %v3004 = vlaneseq
        %v3005 = vshrl.u32 %v3004, 7
        %v3006 = vsub.s32 3, %v3005
        %v3007 = vrot.slane %v2918, %v3006
        %v3008 = vlaneseq
        %v3009 = vshrl.u32 %v3008, 7
        %v3010 = vsub.s32 4, %v3009
        %v3011 = vrot.slane %v2918, %v3010
        %v3012 = vlaneseq
        %v3013 = vshrl.u32 %v3012, 7
        %v3014 = vsub.s32 5, %v3013
        %v3015 = vrot.slane %v2918, %v3014
        %v3016 = vlaneseq
        %v3017 = vshrl.u32 %v3016, 7
        %v3018 = vsub.s32 6, %v3017
        %v3019 = vrot.slane %v2918, %v3018
        %v3020 = vlaneseq
        %v3021 = vshrl.u32 %v3020, 7
        %v3022 = vsub.s32 7, %v3021
        %v3023 = vrot.slane %v2918, %v3022
        %v3024 = vlaneseq
        %v3025 = vshrl.u32 %v3024, 7
        %v3026 = vsub.s32 0, %v3025
        %v3027 = vrot.slane %v2921, %v3026
        %v3028 = vlaneseq
        %v3029 = vshrl.u32 %v3028, 7
        %v3030 = vsub.s32 1, %v3029
        %v3031 = vrot.slane %v2921, %v3030
        %v3032 = vlaneseq
        %v3033 = vshrl.u32 %v3032, 7
        %v3034 = vsub.s32 2, %v3033
        %v3035 = vrot.slane %v2921, %v3034
        %v3036 = vlaneseq
        %v3037 = vshrl.u32 %v3036, 7
        %v3038 = vsub.s32 3, %v3037
        %v3039 = vrot.slane %v2921, %v3038
        %v3040 = vlaneseq
        %v3041 = vshrl.u32 %v3040, 7
        %v3042 = vsub.s32 4, %v3041
        %v3043 = vrot.slane %v2921, %v3042
        %v3044 = vlaneseq
        %v3045 = vshrl.u32 %v3044, 7
        %v3046 = vsub.s32 5, %v3045
        %v3047 = vrot.slane %v2921, %v3046
        %v3048 = vlaneseq
        %v3049 = vshrl.u32 %v3048, 7
        %v3050 = vsub.s32 6, %v3049
        %v3051 = vrot.slane %v2921, %v3050
        %v3052 = vlaneseq
        %v3053 = vshrl.u32 %v3052, 7
        %v3054 = vsub.s32 7, %v3053
        %v3055 = vrot.slane %v2921, %v3054
        %v3056 = vcombine.low %v2931, %v2935
        %v3057 = vcombine.low %v2939, %v2943
        %v3058 = vcombine.low %v2947, %v2951
        %v3059 = vcombine.low %v2955, %v2959
        %v3061 = vunpack.c.l.s4 1966171168
        %v3062 = vunpack.c.0.s8 %v3061
        %v3063 = vlaneseq
        %v3064 = vshrl.u32 %v3063, 7
        %v3065 = vsub.s32 %v3062, %v3064
        %v3066 = vrot.slane %v3056, %v3065
        %v3068 = vunpack.c.l.s4 1966171168
        %v3069 = vunpack.c.0.s8 %v3068
        %v3070 = vlaneseq
        %v3071 = vshrl.u32 %v3070, 7
        %v3072 = vsub.s32 %v3069, %v3071
        %v3073 = vrot.slane %v3057, %v3072
        %v3075 = vunpack.c.l.s4 1966171168
        %v3076 = vunpack.c.0.s8 %v3075
        %v3077 = vlaneseq
        %v3078 = vshrl.u32 %v3077, 7
        %v3079 = vsub.s32 %v3076, %v3078
        %v3080 = vrot.slane %v3058, %v3079
        %v3082 = vunpack.c.l.s4 1966171168
        %v3083 = vunpack.c.0.s8 %v3082
        %v3084 = vlaneseq
        %v3085 = vshrl.u32 %v3084, 7
        %v3086 = vsub.s32 %v3083, %v3085
        %v3087 = vrot.slane %v3059, %v3086
        %v3088 = vcombine.low %v3066, %v3073
        %v3089 = vcombine.low %v3080, %v3087
        %v3091 = vunpack.c.l.s4 1966171168
        %v3092 = vunpack.c.0.s8 %v3091
        %v3093 = vlaneseq
        %v3094 = vshrl.u32 %v3093, 7
        %v3095 = vsub.s32 %v3092, %v3094
        %v3096 = vrot.slane %v3088, %v3095
        %v3098 = vunpack.c.l.s4 1966171168
        %v3099 = vunpack.c.0.s8 %v3098
        %v3100 = vlaneseq
        %v3101 = vshrl.u32 %v3100, 7
        %v3102 = vsub.s32 %v3099, %v3101
        %v3103 = vrot.slane %v3089, %v3102
        %v3104 = vcombine.low %v3096, %v3103
        %v3105 = vcombine.low %v2963, %v2967
        %v3106 = vcombine.low %v2971, %v2975
        %v3107 = vcombine.low %v2979, %v2983
        %v3108 = vcombine.low %v2987, %v2991
        %v3110 = vunpack.c.l.s4 1966171168
        %v3111 = vunpack.c.0.s8 %v3110
        %v3112 = vlaneseq
        %v3113 = vshrl.u32 %v3112, 7
        %v3114 = vsub.s32 %v3111, %v3113
        %v3115 = vrot.slane %v3105, %v3114
        %v3117 = vunpack.c.l.s4 1966171168
        %v3118 = vunpack.c.0.s8 %v3117
        %v3119 = vlaneseq
        %v3120 = vshrl.u32 %v3119, 7
        %v3121 = vsub.s32 %v3118, %v3120
        %v3122 = vrot.slane %v3106, %v3121
        %v3124 = vunpack.c.l.s4 1966171168
        %v3125 = vunpack.c.0.s8 %v3124
        %v3126 = vlaneseq
        %v3127 = vshrl.u32 %v3126, 7
        %v3128 = vsub.s32 %v3125, %v3127
        %v3129 = vrot.slane %v3107, %v3128
        %v3131 = vunpack.c.l.s4 1966171168
        %v3132 = vunpack.c.0.s8 %v3131
        %v3133 = vlaneseq
        %v3134 = vshrl.u32 %v3133, 7
        %v3135 = vsub.s32 %v3132, %v3134
        %v3136 = vrot.slane %v3108, %v3135
        %v3137 = vcombine.low %v3115, %v3122
        %v3138 = vcombine.low %v3129, %v3136
        %v3140 = vunpack.c.l.s4 1966171168
        %v3141 = vunpack.c.0.s8 %v3140
        %v3142 = vlaneseq
        %v3143 = vshrl.u32 %v3142, 7
        %v3144 = vsub.s32 %v3141, %v3143
        %v3145 = vrot.slane %v3137, %v3144
        %v3147 = vunpack.c.l.s4 1966171168
        %v3148 = vunpack.c.0.s8 %v3147
        %v3149 = vlaneseq
        %v3150 = vshrl.u32 %v3149, 7
        %v3151 = vsub.s32 %v3148, %v3150
        %v3152 = vrot.slane %v3138, %v3151
        %v3153 = vcombine.low %v3145, %v3152
        %v3154 = vcombine.low %v2995, %v2999
        %v3155 = vcombine.low %v3003, %v3007
        %v3156 = vcombine.low %v3011, %v3015
        %v3157 = vcombine.low %v3019, %v3023
        %v3159 = vunpack.c.l.s4 1966171168
        %v3160 = vunpack.c.0.s8 %v3159
        %v3161 = vlaneseq
        %v3162 = vshrl.u32 %v3161, 7
        %v3163 = vsub.s32 %v3160, %v3162
        %v3164 = vrot.slane %v3154, %v3163
        %v3166 = vunpack.c.l.s4 1966171168
        %v3167 = vunpack.c.0.s8 %v3166
        %v3168 = vlaneseq
        %v3169 = vshrl.u32 %v3168, 7
        %v3170 = vsub.s32 %v3167, %v3169
        %v3171 = vrot.slane %v3155, %v3170
        %v3173 = vunpack.c.l.s4 1966171168
        %v3174 = vunpack.c.0.s8 %v3173
        %v3175 = vlaneseq
        %v3176 = vshrl.u32 %v3175, 7
        %v3177 = vsub.s32 %v3174, %v3176
        %v3178 = vrot.slane %v3156, %v3177
        %v3180 = vunpack.c.l.s4 1966171168
        %v3181 = vunpack.c.0.s8 %v3180
        %v3182 = vlaneseq
        %v3183 = vshrl.u32 %v3182, 7
        %v3184 = vsub.s32 %v3181, %v3183
        %v3185 = vrot.slane %v3157, %v3184
        %v3186 = vcombine.low %v3164, %v3171
        %v3187 = vcombine.low %v3178, %v3185
        %v3189 = vunpack.c.l.s4 1966171168
        %v3190 = vunpack.c.0.s8 %v3189
        %v3191 = vlaneseq
        %v3192 = vshrl.u32 %v3191, 7
        %v3193 = vsub.s32 %v3190, %v3192
        %v3194 = vrot.slane %v3186, %v3193
        %v3196 = vunpack.c.l.s4 1966171168
        %v3197 = vunpack.c.0.s8 %v3196
        %v3198 = vlaneseq
        %v3199 = vshrl.u32 %v3198, 7
        %v3200 = vsub.s32 %v3197, %v3199
        %v3201 = vrot.slane %v3187, %v3200
        %v3202 = vcombine.low %v3194, %v3201
        %v3203 = vcombine.low %v3027, %v3031
        %v3204 = vcombine.low %v3035, %v3039
        %v3205 = vcombine.low %v3043, %v3047
        %v3206 = vcombine.low %v3051, %v3055
        %v3208 = vunpack.c.l.s4 1966171168
        %v3209 = vunpack.c.0.s8 %v3208
        %v3210 = vlaneseq
        %v3211 = vshrl.u32 %v3210, 7
        %v3212 = vsub.s32 %v3209, %v3211
        %v3213 = vrot.slane %v3203, %v3212
        %v3215 = vunpack.c.l.s4 1966171168
        %v3216 = vunpack.c.0.s8 %v3215
        %v3217 = vlaneseq
        %v3218 = vshrl.u32 %v3217, 7
        %v3219 = vsub.s32 %v3216, %v3218
        %v3220 = vrot.slane %v3204, %v3219
        %v3222 = vunpack.c.l.s4 1966171168
        %v3223 = vunpack.c.0.s8 %v3222
        %v3224 = vlaneseq
        %v3225 = vshrl.u32 %v3224, 7
        %v3226 = vsub.s32 %v3223, %v3225
        %v3227 = vrot.slane %v3205, %v3226
        %v3229 = vunpack.c.l.s4 1966171168
        %v3230 = vunpack.c.0.s8 %v3229
        %v3231 = vlaneseq
        %v3232 = vshrl.u32 %v3231, 7
        %v3233 = vsub.s32 %v3230, %v3232
        %v3234 = vrot.slane %v3206, %v3233
        %v3235 = vcombine.low %v3213, %v3220
        %v3236 = vcombine.low %v3227, %v3234
        %v3238 = vunpack.c.l.s4 1966171168
        %v3239 = vunpack.c.0.s8 %v3238
        %v3240 = vlaneseq
        %v3241 = vshrl.u32 %v3240, 7
        %v3242 = vsub.s32 %v3239, %v3241
        %v3243 = vrot.slane %v3235, %v3242
        %v3245 = vunpack.c.l.s4 1966171168
        %v3246 = vunpack.c.0.s8 %v3245
        %v3247 = vlaneseq
        %v3248 = vshrl.u32 %v3247, 7
        %v3249 = vsub.s32 %v3246, %v3248
        %v3250 = vrot.slane %v3236, %v3249
        %v3251 = vcombine.low %v3243, %v3250
        %3252 = vset.pattern.permute.xlu0 0
        %3253 = vperm.xlu0 %3252, %v3104
        %v3254 = vpop.permute.xlu0 %3253
        %3255 = vset.pattern.permute.xlu0 0
        %3256 = vperm.xlu0 %3255, %v3153
        %v3257 = vpop.permute.xlu0 %3256
        %3258 = vset.pattern.permute.xlu0 0
        %3259 = vperm.xlu0 %3258, %v3202
        %v3260 = vpop.permute.xlu0 %3259
        %3261 = vset.pattern.permute.xlu0 0
        %3262 = vperm.xlu0 %3261, %v3251
        %v3263 = vpop.permute.xlu0 %3262
        %v3264 = vlaneseq
        %v3265 = vshrl.u32 %v3264, 7
        %v3266 = vsub.s32 %v781, %v3265
        %v3267 = vrot.slane %v3254, %v3266
        %v3268 = vlaneseq
        %v3269 = vshrl.u32 %v3268, 7
        %v3270 = vsub.s32 %v786, %v3269
        %v3271 = vrot.slane %v3257, %v3270
        %v3272 = vsel %vm791, %v3271, %v3267
        %v3273 = vlaneseq
        %v3274 = vshrl.u32 %v3273, 7
        %v3275 = vsub.s32 %v793, %v3274
        %v3276 = vrot.slane %v3260, %v3275
        %v3277 = vsel %vm798, %v3276, %v3272
        %v3278 = vlaneseq
        %v3279 = vshrl.u32 %v3278, 7
        %v3280 = vsub.s32 %v800, %v3279
        %v3281 = vrot.slane %v3263, %v3280
        %v3282 = vsel %vm805, %v3281, %v3277
        %v3284 = vunpack.c.l.s4 1966171168
        %v3285 = vunpack.c.0.s8 %v3284
        %v3286 = vlaneseq
        %v3287 = vshrl.u32 %v3286, 7
        %v3288 = vsub.s32 %v3285, %v3287
        %v3289 = vrot.slane %v3282, %v3288
        %v3291 = vunpack.c.l.s4 1966171168
        %v3292 = vunpack.c.0.s8 %v3291
        %v3293 = vlaneseq
        %v3294 = vshrl.u32 %v3293, 7
        %v3295 = vsub.s32 %v3292, %v3294
        %v3296 = vrot.slane %v3289, %v3295
        %v3298 = vadd.f32 %v2923, %v3296
        %3299 = vst.msk [vmem:[%s2922] sm:$0x1] %vm823, %v3298
        %s3300 = scalar_lea.vmem %s242, 48 [#allocation3]
        %v3301 = vld [vmem:[%s3300] sm:$0xff]
        %v3303 = vcombine.high %v3301, %v3301
        %v3304 = vsel %vm325, %v3301, 0
        %v3306 = vsel %vm325, %v3303, 0
        %3308 = vmatprep.subr.mxu0 %v3306
        %3309 = vmatpush1.msra.mxu0 %v3304
        %3310 = vmatprep.subr.mxu0 0.0
        %3311 = vmatpush1.msra.mxu0 0.0
        %3312 = vmatprep.subr.mxu0 0.0
        %3313 = vmatpush1.msra.mxu0 0.0
        %3314 = vmatprep.subr.mxu0 0.0
        %3315 = vmatpush1.msra.mxu0 0.0
        %3316 = vmatprep.subr.mxu0 0.0
        %3317 = vmatpush1.msra.mxu0 0.0
        %3318 = vmatprep.subr.mxu0 0.0
        %3319 = vmatpush1.msra.mxu0 0.0
        %3320 = vmatprep.subr.mxu0 0.0
        %3321 = vmatpush1.msra.mxu0 0.0
        %3322 = vmatprep.subr.mxu0 0.0
        %3323 = vmatpush1.msra.mxu0 0.0
        %3324 = vmatprep.subr.mxu0 0.0
        %3325 = vmatpush1.msra.mxu0 0.0
        %3326 = vmatprep.subr.mxu0 0.0
        %3327 = vmatpush1.msra.mxu0 0.0
        %3328 = vmatprep.subr.mxu0 0.0
        %3329 = vmatpush1.msra.mxu0 0.0
        %3330 = vmatprep.subr.mxu0 0.0
        %3331 = vmatpush1.msra.mxu0 0.0
        %3332 = vmatprep.subr.mxu0 0.0
        %3333 = vmatpush1.msra.mxu0 0.0
        %3334 = vmatprep.subr.mxu0 0.0
        %3335 = vmatpush1.msra.mxu0 0.0
        %3336 = vmatprep.subr.mxu0 0.0
        %3337 = vmatpush1.msra.mxu0 0.0
        %3338 = vmatprep.subr.mxu0 0.0
        %3339 = vmatpush1.msra.mxu0 0.0
        %3340 = vmatprep.subr.mxu0 0.0
        %3341 = vmatpush1.msra.mxu0 0.0
        %3342 = vmatprep.subr.mxu0 0.0
        %3343 = vmatpush1.msra.mxu0 0.0
        %3344 = vmatprep.subr.mxu0 0.0
        %3345 = vmatpush1.msra.mxu0 0.0
        %3346 = vmatprep.subr.mxu0 0.0
        %3347 = vmatpush1.msra.mxu0 0.0
        %3348 = vmatprep.subr.mxu0 0.0
        %3349 = vmatpush1.msra.mxu0 0.0
        %3350 = vmatprep.subr.mxu0 0.0
        %3351 = vmatpush1.msra.mxu0 0.0
        %3352 = vmatprep.subr.mxu0 0.0
        %3353 = vmatpush1.msra.mxu0 0.0
        %3354 = vmatprep.subr.mxu0 0.0
        %3355 = vmatpush1.msra.mxu0 0.0
        %3356 = vmatprep.subr.mxu0 0.0
        %3357 = vmatpush1.msra.mxu0 0.0
        %3358 = vmatprep.subr.mxu0 0.0
        %3359 = vmatpush1.msra.mxu0 0.0
        %3360 = vmatprep.subr.mxu0 0.0
        %3361 = vmatpush1.msra.mxu0 0.0
        %3362 = vmatprep.subr.mxu0 0.0
        %3363 = vmatpush1.msra.mxu0 0.0
        %3364 = vmatprep.subr.mxu0 0.0
        %3365 = vmatpush1.msra.mxu0 0.0
        %3366 = vmatprep.subr.mxu0 0.0
        %3367 = vmatpush1.msra.mxu0 0.0
        %3368 = vmatprep.subr.mxu0 0.0
        %3369 = vmatpush1.msra.mxu0 0.0
        %3370 = vmatprep.subr.mxu0 0.0
        %3371 = vmatpush1.msra.mxu0 0.0
        %3372 = vmatprep.mubr.f32.mxu0 0.0
        %3373 = vmatmul.mubr.f32.gmra.mrb[0].mxu0 %v314
        %v3374 = vpop.f32.mrb[0].mxu0
        %v3375 = vadd.f32 %v293, %v3374
        %v3376 = vpop.f32.mrb[0].mxu0
        %v3377 = vadd.f32 %v293, %v3376
        %3378 = vmatprep.mubr.f32.mxu0 0.0
        %3379 = vmatmul.mubr.f32.gmra.mrb[0].mxu0 %v317
        %v3380 = vpop.f32.mrb[0].mxu0
        %v3381 = vadd.f32 %v298, %v3380
        %v3382 = vpop.f32.mrb[0].mxu0
        %v3383 = vadd.f32 %v298, %v3382
        %3384 = vmatprep.mubr.f32.mxu0 0.0
        %3385 = vmatmul.mubr.f32.gmra.mrb[0].mxu0 %v320
        %v3386 = vpop.f32.mrb[0].mxu0
        %v3387 = vadd.f32 %v303, %v3386
        %v3388 = vpop.f32.mrb[0].mxu0
        %v3389 = vadd.f32 %v303, %v3388
        %3390 = vmatprep.mubr.f32.mxu0 0.0
        %3391 = vmatmul.mubr.f32.gmra.mrb[0].mxu0 %v323
        %v3392 = vpop.f32.mrb[0].mxu0
        %v3393 = vadd.f32 %v308, %v3392
        %v3394 = vpop.f32.mrb[0].mxu0
        %v3395 = vadd.f32 %v308, %v3394
        %3396 = vdwg.mxu0
        %v3397 = vmax.f32 %v3375, 0.0
        %v3398 = vmax.f32 %v3377, 0.0
        %v3399 = vmax.f32 %v3381, 0.0
        %v3400 = vmax.f32 %v3383, 0.0
        %v3401 = vmax.f32 %v3387, 0.0
        %v3402 = vmax.f32 %v3389, 0.0
        %v3403 = vmax.f32 %v3393, 0.0
        %v3404 = vmax.f32 %v3395, 0.0
        %v3405 = vadd.f32 %v3397, %v3398
        %3406 = vadd.xlane.f32.xlu0 %v3405
        %v3407 = vpop.xlane.xlu0 %3406
        %v3408 = vadd.f32 %v3399, %v3400
        %3409 = vadd.xlane.f32.xlu0 %v3408
        %v3410 = vpop.xlane.xlu0 %3409
        %v3411 = vadd.f32 %v3401, %v3402
        %3412 = vadd.xlane.f32.xlu0 %v3411
        %v3413 = vpop.xlane.xlu0 %3412
        %v3414 = vadd.f32 %v3403, %v3404
        %3415 = vadd.xlane.f32.xlu0 %v3414
        %v3416 = vpop.xlane.xlu0 %3415
        %s3417 = scalar_lea.vmem [#allocation2], 6
        %v3418 = vld [vmem:[%s3417] sm:$0x1]
        %v3423 = vlaneseq
        %v3424 = vshrl.u32 %v3423, 7
        %v3425 = vsub.s32 0, %v3424
        %v3426 = vrot.slane %v3407, %v3425
        %v3427 = vlaneseq
        %v3428 = vshrl.u32 %v3427, 7
        %v3429 = vsub.s32 1, %v3428
        %v3430 = vrot.slane %v3407, %v3429
        %v3431 = vlaneseq
        %v3432 = vshrl.u32 %v3431, 7
        %v3433 = vsub.s32 2, %v3432
        %v3434 = vrot.slane %v3407, %v3433
        %v3435 = vlaneseq
        %v3436 = vshrl.u32 %v3435, 7
        %v3437 = vsub.s32 3, %v3436
        %v3438 = vrot.slane %v3407, %v3437
        %v3439 = vlaneseq
        %v3440 = vshrl.u32 %v3439, 7
        %v3441 = vsub.s32 4, %v3440
        %v3442 = vrot.slane %v3407, %v3441
        %v3443 = vlaneseq
        %v3444 = vshrl.u32 %v3443, 7
        %v3445 = vsub.s32 5, %v3444
        %v3446 = vrot.slane %v3407, %v3445
        %v3447 = vlaneseq
        %v3448 = vshrl.u32 %v3447, 7
        %v3449 = vsub.s32 6, %v3448
        %v3450 = vrot.slane %v3407, %v3449
        %v3451 = vlaneseq
        %v3452 = vshrl.u32 %v3451, 7
        %v3453 = vsub.s32 7, %v3452
        %v3454 = vrot.slane %v3407, %v3453
        %v3455 = vlaneseq
        %v3456 = vshrl.u32 %v3455, 7
        %v3457 = vsub.s32 0, %v3456
        %v3458 = vrot.slane %v3410, %v3457
        %v3459 = vlaneseq
        %v3460 = vshrl.u32 %v3459, 7
        %v3461 = vsub.s32 1, %v3460
        %v3462 = vrot.slane %v3410, %v3461
        %v3463 = vlaneseq
        %v3464 = vshrl.u32 %v3463, 7
        %v3465 = vsub.s32 2, %v3464
        %v3466 = vrot.slane %v3410, %v3465
        %v3467 = vlaneseq
        %v3468 = vshrl.u32 %v3467, 7
        %v3469 = vsub.s32 3, %v3468
        %v3470 = vrot.slane %v3410, %v3469
        %v3471 = vlaneseq
        %v3472 = vshrl.u32 %v3471, 7
        %v3473 = vsub.s32 4, %v3472
        %v3474 = vrot.slane %v3410, %v3473
        %v3475 = vlaneseq
        %v3476 = vshrl.u32 %v3475, 7
        %v3477 = vsub.s32 5, %v3476
        %v3478 = vrot.slane %v3410, %v3477
        %v3479 = vlaneseq
        %v3480 = vshrl.u32 %v3479, 7
        %v3481 = vsub.s32 6, %v3480
        %v3482 = vrot.slane %v3410, %v3481
        %v3483 = vlaneseq
        %v3484 = vshrl.u32 %v3483, 7
        %v3485 = vsub.s32 7, %v3484
        %v3486 = vrot.slane %v3410, %v3485
        %v3487 = vlaneseq
        %v3488 = vshrl.u32 %v3487, 7
        %v3489 = vsub.s32 0, %v3488
        %v3490 = vrot.slane %v3413, %v3489
        %v3491 = vlaneseq
        %v3492 = vshrl.u32 %v3491, 7
        %v3493 = vsub.s32 1, %v3492
        %v3494 = vrot.slane %v3413, %v3493
        %v3495 = vlaneseq
        %v3496 = vshrl.u32 %v3495, 7
        %v3497 = vsub.s32 2, %v3496
        %v3498 = vrot.slane %v3413, %v3497
        %v3499 = vlaneseq
        %v3500 = vshrl.u32 %v3499, 7
        %v3501 = vsub.s32 3, %v3500
        %v3502 = vrot.slane %v3413, %v3501
        %v3503 = vlaneseq
        %v3504 = vshrl.u32 %v3503, 7
        %v3505 = vsub.s32 4, %v3504
        %v3506 = vrot.slane %v3413, %v3505
        %v3507 = vlaneseq
        %v3508 = vshrl.u32 %v3507, 7
        %v3509 = vsub.s32 5, %v3508
        %v3510 = vrot.slane %v3413, %v3509
        %v3511 = vlaneseq
        %v3512 = vshrl.u32 %v3511, 7
        %v3513 = vsub.s32 6, %v3512
        %v3514 = vrot.slane %v3413, %v3513
        %v3515 = vlaneseq
        %v3516 = vshrl.u32 %v3515, 7
        %v3517 = vsub.s32 7, %v3516
        %v3518 = vrot.slane %v3413, %v3517
        %v3519 = vlaneseq
        %v3520 = vshrl.u32 %v3519, 7
        %v3521 = vsub.s32 0, %v3520
        %v3522 = vrot.slane %v3416, %v3521
        %v3523 = vlaneseq
        %v3524 = vshrl.u32 %v3523, 7
        %v3525 = vsub.s32 1, %v3524
        %v3526 = vrot.slane %v3416, %v3525
        %v3527 = vlaneseq
        %v3528 = vshrl.u32 %v3527, 7
        %v3529 = vsub.s32 2, %v3528
        %v3530 = vrot.slane %v3416, %v3529
        %v3531 = vlaneseq
        %v3532 = vshrl.u32 %v3531, 7
        %v3533 = vsub.s32 3, %v3532
        %v3534 = vrot.slane %v3416, %v3533
        %v3535 = vlaneseq
        %v3536 = vshrl.u32 %v3535, 7
        %v3537 = vsub.s32 4, %v3536
        %v3538 = vrot.slane %v3416, %v3537
        %v3539 = vlaneseq
        %v3540 = vshrl.u32 %v3539, 7
        %v3541 = vsub.s32 5, %v3540
        %v3542 = vrot.slane %v3416, %v3541
        %v3543 = vlaneseq
        %v3544 = vshrl.u32 %v3543, 7
        %v3545 = vsub.s32 6, %v3544
        %v3546 = vrot.slane %v3416, %v3545
        %v3547 = vlaneseq
        %v3548 = vshrl.u32 %v3547, 7
        %v3549 = vsub.s32 7, %v3548
        %v3550 = vrot.slane %v3416, %v3549
        %v3551 = vcombine.low %v3426, %v3430
        %v3552 = vcombine.low %v3434, %v3438
        %v3553 = vcombine.low %v3442, %v3446
        %v3554 = vcombine.low %v3450, %v3454
        %v3556 = vunpack.c.l.s4 1966171168
        %v3557 = vunpack.c.0.s8 %v3556
        %v3558 = vlaneseq
        %v3559 = vshrl.u32 %v3558, 7
        %v3560 = vsub.s32 %v3557, %v3559
        %v3561 = vrot.slane %v3551, %v3560
        %v3563 = vunpack.c.l.s4 1966171168
        %v3564 = vunpack.c.0.s8 %v3563
        %v3565 = vlaneseq
        %v3566 = vshrl.u32 %v3565, 7
        %v3567 = vsub.s32 %v3564, %v3566
        %v3568 = vrot.slane %v3552, %v3567
        %v3570 = vunpack.c.l.s4 1966171168
        %v3571 = vunpack.c.0.s8 %v3570
        %v3572 = vlaneseq
        %v3573 = vshrl.u32 %v3572, 7
        %v3574 = vsub.s32 %v3571, %v3573
        %v3575 = vrot.slane %v3553, %v3574
        %v3577 = vunpack.c.l.s4 1966171168
        %v3578 = vunpack.c.0.s8 %v3577
        %v3579 = vlaneseq
        %v3580 = vshrl.u32 %v3579, 7
        %v3581 = vsub.s32 %v3578, %v3580
        %v3582 = vrot.slane %v3554, %v3581
        %v3583 = vcombine.low %v3561, %v3568
        %v3584 = vcombine.low %v3575, %v3582
        %v3586 = vunpack.c.l.s4 1966171168
        %v3587 = vunpack.c.0.s8 %v3586
        %v3588 = vlaneseq
        %v3589 = vshrl.u32 %v3588, 7
        %v3590 = vsub.s32 %v3587, %v3589
        %v3591 = vrot.slane %v3583, %v3590
        %v3593 = vunpack.c.l.s4 1966171168
        %v3594 = vunpack.c.0.s8 %v3593
        %v3595 = vlaneseq
        %v3596 = vshrl.u32 %v3595, 7
        %v3597 = vsub.s32 %v3594, %v3596
        %v3598 = vrot.slane %v3584, %v3597
        %v3599 = vcombine.low %v3591, %v3598
        %v3600 = vcombine.low %v3458, %v3462
        %v3601 = vcombine.low %v3466, %v3470
        %v3602 = vcombine.low %v3474, %v3478
        %v3603 = vcombine.low %v3482, %v3486
        %v3605 = vunpack.c.l.s4 1966171168
        %v3606 = vunpack.c.0.s8 %v3605
        %v3607 = vlaneseq
        %v3608 = vshrl.u32 %v3607, 7
        %v3609 = vsub.s32 %v3606, %v3608
        %v3610 = vrot.slane %v3600, %v3609
        %v3612 = vunpack.c.l.s4 1966171168
        %v3613 = vunpack.c.0.s8 %v3612
        %v3614 = vlaneseq
        %v3615 = vshrl.u32 %v3614, 7
        %v3616 = vsub.s32 %v3613, %v3615
        %v3617 = vrot.slane %v3601, %v3616
        %v3619 = vunpack.c.l.s4 1966171168
        %v3620 = vunpack.c.0.s8 %v3619
        %v3621 = vlaneseq
        %v3622 = vshrl.u32 %v3621, 7
        %v3623 = vsub.s32 %v3620, %v3622
        %v3624 = vrot.slane %v3602, %v3623
        %v3626 = vunpack.c.l.s4 1966171168
        %v3627 = vunpack.c.0.s8 %v3626
        %v3628 = vlaneseq
        %v3629 = vshrl.u32 %v3628, 7
        %v3630 = vsub.s32 %v3627, %v3629
        %v3631 = vrot.slane %v3603, %v3630
        %v3632 = vcombine.low %v3610, %v3617
        %v3633 = vcombine.low %v3624, %v3631
        %v3635 = vunpack.c.l.s4 1966171168
        %v3636 = vunpack.c.0.s8 %v3635
        %v3637 = vlaneseq
        %v3638 = vshrl.u32 %v3637, 7
        %v3639 = vsub.s32 %v3636, %v3638
        %v3640 = vrot.slane %v3632, %v3639
        %v3642 = vunpack.c.l.s4 1966171168
        %v3643 = vunpack.c.0.s8 %v3642
        %v3644 = vlaneseq
        %v3645 = vshrl.u32 %v3644, 7
        %v3646 = vsub.s32 %v3643, %v3645
        %v3647 = vrot.slane %v3633, %v3646
        %v3648 = vcombine.low %v3640, %v3647
        %v3649 = vcombine.low %v3490, %v3494
        %v3650 = vcombine.low %v3498, %v3502
        %v3651 = vcombine.low %v3506, %v3510
        %v3652 = vcombine.low %v3514, %v3518
        %v3654 = vunpack.c.l.s4 1966171168
        %v3655 = vunpack.c.0.s8 %v3654
        %v3656 = vlaneseq
        %v3657 = vshrl.u32 %v3656, 7
        %v3658 = vsub.s32 %v3655, %v3657
        %v3659 = vrot.slane %v3649, %v3658
        %v3661 = vunpack.c.l.s4 1966171168
        %v3662 = vunpack.c.0.s8 %v3661
        %v3663 = vlaneseq
        %v3664 = vshrl.u32 %v3663, 7
        %v3665 = vsub.s32 %v3662, %v3664
        %v3666 = vrot.slane %v3650, %v3665
        %v3668 = vunpack.c.l.s4 1966171168
        %v3669 = vunpack.c.0.s8 %v3668
        %v3670 = vlaneseq
        %v3671 = vshrl.u32 %v3670, 7
        %v3672 = vsub.s32 %v3669, %v3671
        %v3673 = vrot.slane %v3651, %v3672
        %v3675 = vunpack.c.l.s4 1966171168
        %v3676 = vunpack.c.0.s8 %v3675
        %v3677 = vlaneseq
        %v3678 = vshrl.u32 %v3677, 7
        %v3679 = vsub.s32 %v3676, %v3678
        %v3680 = vrot.slane %v3652, %v3679
        %v3681 = vcombine.low %v3659, %v3666
        %v3682 = vcombine.low %v3673, %v3680
        %v3684 = vunpack.c.l.s4 1966171168
        %v3685 = vunpack.c.0.s8 %v3684
        %v3686 = vlaneseq
        %v3687 = vshrl.u32 %v3686, 7
        %v3688 = vsub.s32 %v3685, %v3687
        %v3689 = vrot.slane %v3681, %v3688
        %v3691 = vunpack.c.l.s4 1966171168
        %v3692 = vunpack.c.0.s8 %v3691
        %v3693 = vlaneseq
        %v3694 = vshrl.u32 %v3693, 7
        %v3695 = vsub.s32 %v3692, %v3694
        %v3696 = vrot.slane %v3682, %v3695
        %v3697 = vcombine.low %v3689, %v3696
        %v3698 = vcombine.low %v3522, %v3526
        %v3699 = vcombine.low %v3530, %v3534
        %v3700 = vcombine.low %v3538, %v3542
        %v3701 = vcombine.low %v3546, %v3550
        %v3703 = vunpack.c.l.s4 1966171168
        %v3704 = vunpack.c.0.s8 %v3703
        %v3705 = vlaneseq
        %v3706 = vshrl.u32 %v3705, 7
        %v3707 = vsub.s32 %v3704, %v3706
        %v3708 = vrot.slane %v3698, %v3707
        %v3710 = vunpack.c.l.s4 1966171168
        %v3711 = vunpack.c.0.s8 %v3710
        %v3712 = vlaneseq
        %v3713 = vshrl.u32 %v3712, 7
        %v3714 = vsub.s32 %v3711, %v3713
        %v3715 = vrot.slane %v3699, %v3714
        %v3717 = vunpack.c.l.s4 1966171168
        %v3718 = vunpack.c.0.s8 %v3717
        %v3719 = vlaneseq
        %v3720 = vshrl.u32 %v3719, 7
        %v3721 = vsub.s32 %v3718, %v3720
        %v3722 = vrot.slane %v3700, %v3721
        %v3724 = vunpack.c.l.s4 1966171168
        %v3725 = vunpack.c.0.s8 %v3724
        %v3726 = vlaneseq
        %v3727 = vshrl.u32 %v3726, 7
        %v3728 = vsub.s32 %v3725, %v3727
        %v3729 = vrot.slane %v3701, %v3728
        %v3730 = vcombine.low %v3708, %v3715
        %v3731 = vcombine.low %v3722, %v3729
        %v3733 = vunpack.c.l.s4 1966171168
        %v3734 = vunpack.c.0.s8 %v3733
        %v3735 = vlaneseq
        %v3736 = vshrl.u32 %v3735, 7
        %v3737 = vsub.s32 %v3734, %v3736
        %v3738 = vrot.slane %v3730, %v3737
        %v3740 = vunpack.c.l.s4 1966171168
        %v3741 = vunpack.c.0.s8 %v3740
        %v3742 = vlaneseq
        %v3743 = vshrl.u32 %v3742, 7
        %v3744 = vsub.s32 %v3741, %v3743
        %v3745 = vrot.slane %v3731, %v3744
        %v3746 = vcombine.low %v3738, %v3745
        %3747 = vset.pattern.permute.xlu0 0
        %3748 = vperm.xlu0 %3747, %v3599
        %v3749 = vpop.permute.xlu0 %3748
        %3750 = vset.pattern.permute.xlu0 0
        %3751 = vperm.xlu0 %3750, %v3648
        %v3752 = vpop.permute.xlu0 %3751
        %3753 = vset.pattern.permute.xlu0 0
        %3754 = vperm.xlu0 %3753, %v3697
        %v3755 = vpop.permute.xlu0 %3754
        %3756 = vset.pattern.permute.xlu0 0
        %3757 = vperm.xlu0 %3756, %v3746
        %v3758 = vpop.permute.xlu0 %3757
        %v3759 = vlaneseq
        %v3760 = vshrl.u32 %v3759, 7
        %v3761 = vsub.s32 %v781, %v3760
        %v3762 = vrot.slane %v3749, %v3761
        %v3763 = vlaneseq
        %v3764 = vshrl.u32 %v3763, 7
        %v3765 = vsub.s32 %v786, %v3764
        %v3766 = vrot.slane %v3752, %v3765
        %v3767 = vsel %vm791, %v3766, %v3762
        %v3768 = vlaneseq
        %v3769 = vshrl.u32 %v3768, 7
        %v3770 = vsub.s32 %v793, %v3769
        %v3771 = vrot.slane %v3755, %v3770
        %v3772 = vsel %vm798, %v3771, %v3767
        %v3773 = vlaneseq
        %v3774 = vshrl.u32 %v3773, 7
        %v3775 = vsub.s32 %v800, %v3774
        %v3776 = vrot.slane %v3758, %v3775
        %v3777 = vsel %vm805, %v3776, %v3772
        %v3779 = vunpack.c.l.s4 1966171168
        %v3780 = vunpack.c.0.s8 %v3779
        %v3781 = vlaneseq
        %v3782 = vshrl.u32 %v3781, 7
        %v3783 = vsub.s32 %v3780, %v3782
        %v3784 = vrot.slane %v3777, %v3783
        %v3786 = vunpack.c.l.s4 1966171168
        %v3787 = vunpack.c.0.s8 %v3786
        %v3788 = vlaneseq
        %v3789 = vshrl.u32 %v3788, 7
        %v3790 = vsub.s32 %v3787, %v3789
        %v3791 = vrot.slane %v3784, %v3790
        %v3793 = vadd.f32 %v3418, %v3791
        %3794 = vst.msk [vmem:[%s3417] sm:$0x1] %vm823, %v3793
        %s3795 = scalar_lea.vmem %s242, 56 [#allocation3]
        %v3796 = vld [vmem:[%s3795] sm:$0xff]
        %v3798 = vcombine.high %v3796, %v3796
        %v3799 = vsel %vm325, %v3796, 0
        %v3801 = vsel %vm325, %v3798, 0
        %3803 = vmatprep.subr.mxu0 %v3801
        %3804 = vmatpush1.msra.mxu0 %v3799
        %3805 = vmatprep.subr.mxu0 0.0
        %3806 = vmatpush1.msra.mxu0 0.0
        %3807 = vmatprep.subr.mxu0 0.0
        %3808 = vmatpush1.msra.mxu0 0.0
        %3809 = vmatprep.subr.mxu0 0.0
        %3810 = vmatpush1.msra.mxu0 0.0
        %3811 = vmatprep.subr.mxu0 0.0
        %3812 = vmatpush1.msra.mxu0 0.0
        %3813 = vmatprep.subr.mxu0 0.0
        %3814 = vmatpush1.msra.mxu0 0.0
        %3815 = vmatprep.subr.mxu0 0.0
        %3816 = vmatpush1.msra.mxu0 0.0
        %3817 = vmatprep.subr.mxu0 0.0
        %3818 = vmatpush1.msra.mxu0 0.0
        %3819 = vmatprep.subr.mxu0 0.0
        %3820 = vmatpush1.msra.mxu0 0.0
        %3821 = vmatprep.subr.mxu0 0.0
        %3822 = vmatpush1.msra.mxu0 0.0
        %3823 = vmatprep.subr.mxu0 0.0
        %3824 = vmatpush1.msra.mxu0 0.0
        %3825 = vmatprep.subr.mxu0 0.0
        %3826 = vmatpush1.msra.mxu0 0.0
        %3827 = vmatprep.subr.mxu0 0.0
        %3828 = vmatpush1.msra.mxu0 0.0
        %3829 = vmatprep.subr.mxu0 0.0
        %3830 = vmatpush1.msra.mxu0 0.0
        %3831 = vmatprep.subr.mxu0 0.0
        %3832 = vmatpush1.msra.mxu0 0.0
        %3833 = vmatprep.subr.mxu0 0.0
        %3834 = vmatpush1.msra.mxu0 0.0
        %3835 = vmatprep.subr.mxu0 0.0
        %3836 = vmatpush1.msra.mxu0 0.0
        %3837 = vmatprep.subr.mxu0 0.0
        %3838 = vmatpush1.msra.mxu0 0.0
        %3839 = vmatprep.subr.mxu0 0.0
        %3840 = vmatpush1.msra.mxu0 0.0
        %3841 = vmatprep.subr.mxu0 0.0
        %3842 = vmatpush1.msra.mxu0 0.0
        %3843 = vmatprep.subr.mxu0 0.0
        %3844 = vmatpush1.msra.mxu0 0.0
        %3845 = vmatprep.subr.mxu0 0.0
        %3846 = vmatpush1.msra.mxu0 0.0
        %3847 = vmatprep.subr.mxu0 0.0
        %3848 = vmatpush1.msra.mxu0 0.0
        %3849 = vmatprep.subr.mxu0 0.0
        %3850 = vmatpush1.msra.mxu0 0.0
        %3851 = vmatprep.subr.mxu0 0.0
        %3852 = vmatpush1.msra.mxu0 0.0
        %3853 = vmatprep.subr.mxu0 0.0
        %3854 = vmatpush1.msra.mxu0 0.0
        %3855 = vmatprep.subr.mxu0 0.0
        %3856 = vmatpush1.msra.mxu0 0.0
        %3857 = vmatprep.subr.mxu0 0.0
        %3858 = vmatpush1.msra.mxu0 0.0
        %3859 = vmatprep.subr.mxu0 0.0
        %3860 = vmatpush1.msra.mxu0 0.0
        %3861 = vmatprep.subr.mxu0 0.0
        %3862 = vmatpush1.msra.mxu0 0.0
        %3863 = vmatprep.subr.mxu0 0.0
        %3864 = vmatpush1.msra.mxu0 0.0
        %3865 = vmatprep.subr.mxu0 0.0
        %3866 = vmatpush1.msra.mxu0 0.0
        %3867 = vmatprep.mubr.f32.mxu0 0.0
        %3868 = vmatmul.mubr.f32.gmra.mrb[0].mxu0 %v314
        %v3869 = vpop.f32.mrb[0].mxu0
        %v3870 = vadd.f32 %v293, %v3869
        %v3871 = vpop.f32.mrb[0].mxu0
        %v3872 = vadd.f32 %v293, %v3871
        %3873 = vmatprep.mubr.f32.mxu0 0.0
        %3874 = vmatmul.mubr.f32.gmra.mrb[0].mxu0 %v317
        %v3875 = vpop.f32.mrb[0].mxu0
        %v3876 = vadd.f32 %v298, %v3875
        %v3877 = vpop.f32.mrb[0].mxu0
        %v3878 = vadd.f32 %v298, %v3877
        %3879 = vmatprep.mubr.f32.mxu0 0.0
        %3880 = vmatmul.mubr.f32.gmra.mrb[0].mxu0 %v320
        %v3881 = vpop.f32.mrb[0].mxu0
        %v3882 = vadd.f32 %v303, %v3881
        %v3883 = vpop.f32.mrb[0].mxu0
        %v3884 = vadd.f32 %v303, %v3883
        %3885 = vmatprep.mubr.f32.mxu0 0.0
        %3886 = vmatmul.mubr.f32.gmra.mrb[0].mxu0 %v323
        %v3887 = vpop.f32.mrb[0].mxu0
        %v3888 = vadd.f32 %v308, %v3887
        %v3889 = vpop.f32.mrb[0].mxu0
        %v3890 = vadd.f32 %v308, %v3889
        %3891 = vdwg.mxu0
        %v3892 = vmax.f32 %v3870, 0.0
        %v3893 = vmax.f32 %v3872, 0.0
        %v3894 = vmax.f32 %v3876, 0.0
        %v3895 = vmax.f32 %v3878, 0.0
        %v3896 = vmax.f32 %v3882, 0.0
        %v3897 = vmax.f32 %v3884, 0.0
        %v3898 = vmax.f32 %v3888, 0.0
        %v3899 = vmax.f32 %v3890, 0.0
        %v3900 = vadd.f32 %v3892, %v3893
        %3901 = vadd.xlane.f32.xlu0 %v3900
        %v3902 = vpop.xlane.xlu0 %3901
        %v3903 = vadd.f32 %v3894, %v3895
        %3904 = vadd.xlane.f32.xlu0 %v3903
        %v3905 = vpop.xlane.xlu0 %3904
        %v3906 = vadd.f32 %v3896, %v3897
        %3907 = vadd.xlane.f32.xlu0 %v3906
        %v3908 = vpop.xlane.xlu0 %3907
        %v3909 = vadd.f32 %v3898, %v3899
        %3910 = vadd.xlane.f32.xlu0 %v3909
        %v3911 = vpop.xlane.xlu0 %3910
        %s3912 = scalar_lea.vmem [#allocation2], 7
        %v3913 = vld [vmem:[%s3912] sm:$0x1]
        %v3918 = vlaneseq
        %v3919 = vshrl.u32 %v3918, 7
        %v3920 = vsub.s32 0, %v3919
        %v3921 = vrot.slane %v3902, %v3920
        %v3922 = vlaneseq
        %v3923 = vshrl.u32 %v3922, 7
        %v3924 = vsub.s32 1, %v3923
        %v3925 = vrot.slane %v3902, %v3924
        %v3926 = vlaneseq
        %v3927 = vshrl.u32 %v3926, 7
        %v3928 = vsub.s32 2, %v3927
        %v3929 = vrot.slane %v3902, %v3928
        %v3930 = vlaneseq
        %v3931 = vshrl.u32 %v3930, 7
        %v3932 = vsub.s32 3, %v3931
        %v3933 = vrot.slane %v3902, %v3932
        %v3934 = vlaneseq
        %v3935 = vshrl.u32 %v3934, 7
        %v3936 = vsub.s32 4, %v3935
        %v3937 = vrot.slane %v3902, %v3936
        %v3938 = vlaneseq
        %v3939 = vshrl.u32 %v3938, 7
        %v3940 = vsub.s32 5, %v3939
        %v3941 = vrot.slane %v3902, %v3940
        %v3942 = vlaneseq
        %v3943 = vshrl.u32 %v3942, 7
        %v3944 = vsub.s32 6, %v3943
        %v3945 = vrot.slane %v3902, %v3944
        %v3946 = vlaneseq
        %v3947 = vshrl.u32 %v3946, 7
        %v3948 = vsub.s32 7, %v3947
        %v3949 = vrot.slane %v3902, %v3948
        %v3950 = vlaneseq
        %v3951 = vshrl.u32 %v3950, 7
        %v3952 = vsub.s32 0, %v3951
        %v3953 = vrot.slane %v3905, %v3952
        %v3954 = vlaneseq
        %v3955 = vshrl.u32 %v3954, 7
        %v3956 = vsub.s32 1, %v3955
        %v3957 = vrot.slane %v3905, %v3956
        %v3958 = vlaneseq
        %v3959 = vshrl.u32 %v3958, 7
        %v3960 = vsub.s32 2, %v3959
        %v3961 = vrot.slane %v3905, %v3960
        %v3962 = vlaneseq
        %v3963 = vshrl.u32 %v3962, 7
        %v3964 = vsub.s32 3, %v3963
        %v3965 = vrot.slane %v3905, %v3964
        %v3966 = vlaneseq
        %v3967 = vshrl.u32 %v3966, 7
        %v3968 = vsub.s32 4, %v3967
        %v3969 = vrot.slane %v3905, %v3968
        %v3970 = vlaneseq
        %v3971 = vshrl.u32 %v3970, 7
        %v3972 = vsub.s32 5, %v3971
        %v3973 = vrot.slane %v3905, %v3972
        %v3974 = vlaneseq
        %v3975 = vshrl.u32 %v3974, 7
        %v3976 = vsub.s32 6, %v3975
        %v3977 = vrot.slane %v3905, %v3976
        %v3978 = vlaneseq
        %v3979 = vshrl.u32 %v3978, 7
        %v3980 = vsub.s32 7, %v3979
        %v3981 = vrot.slane %v3905, %v3980
        %v3982 = vlaneseq
        %v3983 = vshrl.u32 %v3982, 7
        %v3984 = vsub.s32 0, %v3983
        %v3985 = vrot.slane %v3908, %v3984
        %v3986 = vlaneseq
        %v3987 = vshrl.u32 %v3986, 7
        %v3988 = vsub.s32 1, %v3987
        %v3989 = vrot.slane %v3908, %v3988
        %v3990 = vlaneseq
        %v3991 = vshrl.u32 %v3990, 7
        %v3992 = vsub.s32 2, %v3991
        %v3993 = vrot.slane %v3908, %v3992
        %v3994 = vlaneseq
        %v3995 = vshrl.u32 %v3994, 7
        %v3996 = vsub.s32 3, %v3995
        %v3997 = vrot.slane %v3908, %v3996
        %v3998 = vlaneseq
        %v3999 = vshrl.u32 %v3998, 7
        %v4000 = vsub.s32 4, %v3999
        %v4001 = vrot.slane %v3908, %v4000
        %v4002 = vlaneseq
        %v4003 = vshrl.u32 %v4002, 7
        %v4004 = vsub.s32 5, %v4003
        %v4005 = vrot.slane %v3908, %v4004
        %v4006 = vlaneseq
        %v4007 = vshrl.u32 %v4006, 7
        %v4008 = vsub.s32 6, %v4007
        %v4009 = vrot.slane %v3908, %v4008
        %v4010 = vlaneseq
        %v4011 = vshrl.u32 %v4010, 7
        %v4012 = vsub.s32 7, %v4011
        %v4013 = vrot.slane %v3908, %v4012
        %v4014 = vlaneseq
        %v4015 = vshrl.u32 %v4014, 7
        %v4016 = vsub.s32 0, %v4015
        %v4017 = vrot.slane %v3911, %v4016
        %v4018 = vlaneseq
        %v4019 = vshrl.u32 %v4018, 7
        %v4020 = vsub.s32 1, %v4019
        %v4021 = vrot.slane %v3911, %v4020
        %v4022 = vlaneseq
        %v4023 = vshrl.u32 %v4022, 7
        %v4024 = vsub.s32 2, %v4023
        %v4025 = vrot.slane %v3911, %v4024
        %v4026 = vlaneseq
        %v4027 = vshrl.u32 %v4026, 7
        %v4028 = vsub.s32 3, %v4027
        %v4029 = vrot.slane %v3911, %v4028
        %v4030 = vlaneseq
        %v4031 = vshrl.u32 %v4030, 7
        %v4032 = vsub.s32 4, %v4031
        %v4033 = vrot.slane %v3911, %v4032
        %v4034 = vlaneseq
        %v4035 = vshrl.u32 %v4034, 7
        %v4036 = vsub.s32 5, %v4035
        %v4037 = vrot.slane %v3911, %v4036
        %v4038 = vlaneseq
        %v4039 = vshrl.u32 %v4038, 7
        %v4040 = vsub.s32 6, %v4039
        %v4041 = vrot.slane %v3911, %v4040
        %v4042 = vlaneseq
        %v4043 = vshrl.u32 %v4042, 7
        %v4044 = vsub.s32 7, %v4043
        %v4045 = vrot.slane %v3911, %v4044
        %v4046 = vcombine.low %v3921, %v3925
        %v4047 = vcombine.low %v3929, %v3933
        %v4048 = vcombine.low %v3937, %v3941
        %v4049 = vcombine.low %v3945, %v3949
        %v4051 = vunpack.c.l.s4 1966171168
        %v4052 = vunpack.c.0.s8 %v4051
        %v4053 = vlaneseq
        %v4054 = vshrl.u32 %v4053, 7
        %v4055 = vsub.s32 %v4052, %v4054
        %v4056 = vrot.slane %v4046, %v4055
        %v4058 = vunpack.c.l.s4 1966171168
        %v4059 = vunpack.c.0.s8 %v4058
        %v4060 = vlaneseq
        %v4061 = vshrl.u32 %v4060, 7
        %v4062 = vsub.s32 %v4059, %v4061
        %v4063 = vrot.slane %v4047, %v4062
        %v4065 = vunpack.c.l.s4 1966171168
        %v4066 = vunpack.c.0.s8 %v4065
        %v4067 = vlaneseq
        %v4068 = vshrl.u32 %v4067, 7
        %v4069 = vsub.s32 %v4066, %v4068
        %v4070 = vrot.slane %v4048, %v4069
        %v4072 = vunpack.c.l.s4 1966171168
        %v4073 = vunpack.c.0.s8 %v4072
        %v4074 = vlaneseq
        %v4075 = vshrl.u32 %v4074, 7
        %v4076 = vsub.s32 %v4073, %v4075
        %v4077 = vrot.slane %v4049, %v4076
        %v4078 = vcombine.low %v4056, %v4063
        %v4079 = vcombine.low %v4070, %v4077
        %v4081 = vunpack.c.l.s4 1966171168
        %v4082 = vunpack.c.0.s8 %v4081
        %v4083 = vlaneseq
        %v4084 = vshrl.u32 %v4083, 7
        %v4085 = vsub.s32 %v4082, %v4084
        %v4086 = vrot.slane %v4078, %v4085
        %v4088 = vunpack.c.l.s4 1966171168
        %v4089 = vunpack.c.0.s8 %v4088
        %v4090 = vlaneseq
        %v4091 = vshrl.u32 %v4090, 7
        %v4092 = vsub.s32 %v4089, %v4091
        %v4093 = vrot.slane %v4079, %v4092
        %v4094 = vcombine.low %v4086, %v4093
        %v4095 = vcombine.low %v3953, %v3957
        %v4096 = vcombine.low %v3961, %v3965
        %v4097 = vcombine.low %v3969, %v3973
        %v4098 = vcombine.low %v3977, %v3981
        %v4100 = vunpack.c.l.s4 1966171168
        %v4101 = vunpack.c.0.s8 %v4100
        %v4102 = vlaneseq
        %v4103 = vshrl.u32 %v4102, 7
        %v4104 = vsub.s32 %v4101, %v4103
        %v4105 = vrot.slane %v4095, %v4104
        %v4107 = vunpack.c.l.s4 1966171168
        %v4108 = vunpack.c.0.s8 %v4107
        %v4109 = vlaneseq
        %v4110 = vshrl.u32 %v4109, 7
        %v4111 = vsub.s32 %v4108, %v4110
        %v4112 = vrot.slane %v4096, %v4111
        %v4114 = vunpack.c.l.s4 1966171168
        %v4115 = vunpack.c.0.s8 %v4114
        %v4116 = vlaneseq
        %v4117 = vshrl.u32 %v4116, 7
        %v4118 = vsub.s32 %v4115, %v4117
        %v4119 = vrot.slane %v4097, %v4118
        %v4121 = vunpack.c.l.s4 1966171168
        %v4122 = vunpack.c.0.s8 %v4121
        %v4123 = vlaneseq
        %v4124 = vshrl.u32 %v4123, 7
        %v4125 = vsub.s32 %v4122, %v4124
        %v4126 = vrot.slane %v4098, %v4125
        %v4127 = vcombine.low %v4105, %v4112
        %v4128 = vcombine.low %v4119, %v4126
        %v4130 = vunpack.c.l.s4 1966171168
        %v4131 = vunpack.c.0.s8 %v4130
        %v4132 = vlaneseq
        %v4133 = vshrl.u32 %v4132, 7
        %v4134 = vsub.s32 %v4131, %v4133
        %v4135 = vrot.slane %v4127, %v4134
        %v4137 = vunpack.c.l.s4 1966171168
        %v4138 = vunpack.c.0.s8 %v4137
        %v4139 = vlaneseq
        %v4140 = vshrl.u32 %v4139, 7
        %v4141 = vsub.s32 %v4138, %v4140
        %v4142 = vrot.slane %v4128, %v4141
        %v4143 = vcombine.low %v4135, %v4142
        %v4144 = vcombine.low %v3985, %v3989
        %v4145 = vcombine.low %v3993, %v3997
        %v4146 = vcombine.low %v4001, %v4005
        %v4147 = vcombine.low %v4009, %v4013
        %v4149 = vunpack.c.l.s4 1966171168
        %v4150 = vunpack.c.0.s8 %v4149
        %v4151 = vlaneseq
        %v4152 = vshrl.u32 %v4151, 7
        %v4153 = vsub.s32 %v4150, %v4152
        %v4154 = vrot.slane %v4144, %v4153
        %v4156 = vunpack.c.l.s4 1966171168
        %v4157 = vunpack.c.0.s8 %v4156
        %v4158 = vlaneseq
        %v4159 = vshrl.u32 %v4158, 7
        %v4160 = vsub.s32 %v4157, %v4159
        %v4161 = vrot.slane %v4145, %v4160
        %v4163 = vunpack.c.l.s4 1966171168
        %v4164 = vunpack.c.0.s8 %v4163
        %v4165 = vlaneseq
        %v4166 = vshrl.u32 %v4165, 7
        %v4167 = vsub.s32 %v4164, %v4166
        %v4168 = vrot.slane %v4146, %v4167
        %v4170 = vunpack.c.l.s4 1966171168
        %v4171 = vunpack.c.0.s8 %v4170
        %v4172 = vlaneseq
        %v4173 = vshrl.u32 %v4172, 7
        %v4174 = vsub.s32 %v4171, %v4173
        %v4175 = vrot.slane %v4147, %v4174
        %v4176 = vcombine.low %v4154, %v4161
        %v4177 = vcombine.low %v4168, %v4175
        %v4179 = vunpack.c.l.s4 1966171168
        %v4180 = vunpack.c.0.s8 %v4179
        %v4181 = vlaneseq
        %v4182 = vshrl.u32 %v4181, 7
        %v4183 = vsub.s32 %v4180, %v4182
        %v4184 = vrot.slane %v4176, %v4183
        %v4186 = vunpack.c.l.s4 1966171168
        %v4187 = vunpack.c.0.s8 %v4186
        %v4188 = vlaneseq
        %v4189 = vshrl.u32 %v4188, 7
        %v4190 = vsub.s32 %v4187, %v4189
        %v4191 = vrot.slane %v4177, %v4190
        %v4192 = vcombine.low %v4184, %v4191
        %v4193 = vcombine.low %v4017, %v4021
        %v4194 = vcombine.low %v4025, %v4029
        %v4195 = vcombine.low %v4033, %v4037
        %v4196 = vcombine.low %v4041, %v4045
        %v4198 = vunpack.c.l.s4 1966171168
        %v4199 = vunpack.c.0.s8 %v4198
        %v4200 = vlaneseq
        %v4201 = vshrl.u32 %v4200, 7
        %v4202 = vsub.s32 %v4199, %v4201
        %v4203 = vrot.slane %v4193, %v4202
        %v4205 = vunpack.c.l.s4 1966171168
        %v4206 = vunpack.c.0.s8 %v4205
        %v4207 = vlaneseq
        %v4208 = vshrl.u32 %v4207, 7
        %v4209 = vsub.s32 %v4206, %v4208
        %v4210 = vrot.slane %v4194, %v4209
        %v4212 = vunpack.c.l.s4 1966171168
        %v4213 = vunpack.c.0.s8 %v4212
        %v4214 = vlaneseq
        %v4215 = vshrl.u32 %v4214, 7
        %v4216 = vsub.s32 %v4213, %v4215
        %v4217 = vrot.slane %v4195, %v4216
        %v4219 = vunpack.c.l.s4 1966171168
        %v4220 = vunpack.c.0.s8 %v4219
        %v4221 = vlaneseq
        %v4222 = vshrl.u32 %v4221, 7
        %v4223 = vsub.s32 %v4220, %v4222
        %v4224 = vrot.slane %v4196, %v4223
        %v4225 = vcombine.low %v4203, %v4210
        %v4226 = vcombine.low %v4217, %v4224
        %v4228 = vunpack.c.l.s4 1966171168
        %v4229 = vunpack.c.0.s8 %v4228
        %v4230 = vlaneseq
        %v4231 = vshrl.u32 %v4230, 7
        %v4232 = vsub.s32 %v4229, %v4231
        %v4233 = vrot.slane %v4225, %v4232
        %v4235 = vunpack.c.l.s4 1966171168
        %v4236 = vunpack.c.0.s8 %v4235
        %v4237 = vlaneseq
        %v4238 = vshrl.u32 %v4237, 7
        %v4239 = vsub.s32 %v4236, %v4238
        %v4240 = vrot.slane %v4226, %v4239
        %v4241 = vcombine.low %v4233, %v4240
        %4242 = vset.pattern.permute.xlu0 0
        %4243 = vperm.xlu0 %4242, %v4094
        %v4244 = vpop.permute.xlu0 %4243
        %4245 = vset.pattern.permute.xlu0 0
        %4246 = vperm.xlu0 %4245, %v4143
        %v4247 = vpop.permute.xlu0 %4246
        %4248 = vset.pattern.permute.xlu0 0
        %4249 = vperm.xlu0 %4248, %v4192
        %v4250 = vpop.permute.xlu0 %4249
        %4251 = vset.pattern.permute.xlu0 0
        %4252 = vperm.xlu0 %4251, %v4241
        %v4253 = vpop.permute.xlu0 %4252
        %v4254 = vlaneseq
        %v4255 = vshrl.u32 %v4254, 7
        %v4256 = vsub.s32 %v781, %v4255
        %v4257 = vrot.slane %v4244, %v4256
        %v4258 = vlaneseq
        %v4259 = vshrl.u32 %v4258, 7
        %v4260 = vsub.s32 %v786, %v4259
        %v4261 = vrot.slane %v4247, %v4260
        %v4262 = vsel %vm791, %v4261, %v4257
        %v4263 = vlaneseq
        %v4264 = vshrl.u32 %v4263, 7
        %v4265 = vsub.s32 %v793, %v4264
        %v4266 = vrot.slane %v4250, %v4265
        %v4267 = vsel %vm798, %v4266, %v4262
        %v4268 = vlaneseq
        %v4269 = vshrl.u32 %v4268, 7
        %v4270 = vsub.s32 %v800, %v4269
        %v4271 = vrot.slane %v4253, %v4270
        %v4272 = vsel %vm805, %v4271, %v4267
        %v4274 = vunpack.c.l.s4 1966171168
        %v4275 = vunpack.c.0.s8 %v4274
        %v4276 = vlaneseq
        %v4277 = vshrl.u32 %v4276, 7
        %v4278 = vsub.s32 %v4275, %v4277
        %v4279 = vrot.slane %v4272, %v4278
        %v4281 = vunpack.c.l.s4 1966171168
        %v4282 = vunpack.c.0.s8 %v4281
        %v4283 = vlaneseq
        %v4284 = vshrl.u32 %v4283, 7
        %v4285 = vsub.s32 %v4282, %v4284
        %v4286 = vrot.slane %v4279, %v4285
        %v4288 = vadd.f32 %v3913, %v4286
        %4289 = vst.msk [vmem:[%s3912] sm:$0x1] %vm823, %v4288
        %p4290 = scmp.eq.s32.totalorder %s26, 3
        %p4291 = pnand %p4290, %p267
        %p4292 = pneg %p4291
        // Predicated region
        $region49: #{tpu_custom_call.1} parent=39 // pred_check
          _
        $region50: #{tpu_custom_call.1} parent=39 // pred_check_branch
          %4294 = sbr.rel (%p4291) target = $region52
        $region51: #{tpu_custom_call.1} parent=39 // pred_region
          %v4295 = vld [vmem:[#allocation2] sm:$0x1]
          %v4296 = vld [vmem:[#allocation2 + $0x1] sm:$0x1]
          %v4297 = vld [vmem:[#allocation2 + $0x2] sm:$0x1]
          %v4298 = vld [vmem:[#allocation2 + $0x3] sm:$0x1]
          %v4299 = vld [vmem:[#allocation2 + $0x4] sm:$0x1]
          %v4300 = vld [vmem:[#allocation2 + $0x5] sm:$0x1]
          %v4301 = vld [vmem:[#allocation2 + $0x6] sm:$0x1]
          %v4302 = vld [vmem:[#allocation2 + $0x7] sm:$0x1]
          %v4303 = vmul.f32 %v4295, 0.0009765625
          %v4304 = vmul.f32 %v4296, 0.0009765625
          %v4305 = vmul.f32 %v4297, 0.0009765625
          %v4306 = vmul.f32 %v4298, 0.0009765625
          %v4307 = vmul.f32 %v4299, 0.0009765625
          %v4308 = vmul.f32 %v4300, 0.0009765625
          %v4309 = vmul.f32 %v4301, 0.0009765625
          %v4310 = vmul.f32 %v4302, 0.0009765625
          %v4311 = vld [vmem:[%s3] sm:$0xff]
          %v4312 = vld [vmem:[%s3 + $0x8] sm:$0xff]
          %v4313 = vld [vmem:[%s3 + $0x10] sm:$0xff]
          %v4314 = vld [vmem:[%s3 + $0x18] sm:$0xff]
          %v4315 = vld [vmem:[%s4] sm:$0x1]
          %v4317 = vlaneseq
          %v4318 = vshrl.u32 %v4317, 7
          %v4319 = vsub.s32 0, %v4318
          %v4320 = vrot.slane %v4315, %v4319
          %v4330 = vcombine.low %v4303, %v4304
          %v4331 = vcombine.low %v4305, %v4306
          %v4332 = vcombine.low %v4307, %v4308
          %v4333 = vcombine.low %v4309, %v4310
          %v4335 = vunpack.c.l.s4 1966171168
          %v4336 = vunpack.c.0.s8 %v4335
          %v4337 = vlaneseq
          %v4338 = vshrl.u32 %v4337, 7
          %v4339 = vsub.s32 %v4336, %v4338
          %v4340 = vrot.slane %v4330, %v4339
          %v4342 = vunpack.c.l.s4 1966171168
          %v4343 = vunpack.c.0.s8 %v4342
          %v4344 = vlaneseq
          %v4345 = vshrl.u32 %v4344, 7
          %v4346 = vsub.s32 %v4343, %v4345
          %v4347 = vrot.slane %v4331, %v4346
          %v4349 = vunpack.c.l.s4 1966171168
          %v4350 = vunpack.c.0.s8 %v4349
          %v4351 = vlaneseq
          %v4352 = vshrl.u32 %v4351, 7
          %v4353 = vsub.s32 %v4350, %v4352
          %v4354 = vrot.slane %v4332, %v4353
          %v4356 = vunpack.c.l.s4 1966171168
          %v4357 = vunpack.c.0.s8 %v4356
          %v4358 = vlaneseq
          %v4359 = vshrl.u32 %v4358, 7
          %v4360 = vsub.s32 %v4357, %v4359
          %v4361 = vrot.slane %v4333, %v4360
          %v4362 = vcombine.low %v4340, %v4347
          %v4363 = vcombine.low %v4354, %v4361
          %v4365 = vunpack.c.l.s4 1966171168
          %v4366 = vunpack.c.0.s8 %v4365
          %v4367 = vlaneseq
          %v4368 = vshrl.u32 %v4367, 7
          %v4369 = vsub.s32 %v4366, %v4368
          %v4370 = vrot.slane %v4362, %v4369
          %v4372 = vunpack.c.l.s4 1966171168
          %v4373 = vunpack.c.0.s8 %v4372
          %v4374 = vlaneseq
          %v4375 = vshrl.u32 %v4374, 7
          %v4376 = vsub.s32 %v4373, %v4375
          %v4377 = vrot.slane %v4363, %v4376
          %v4378 = vcombine.low %v4370, %v4377
          %vm4379 = vcmask 261120
          %v4380 = vsel %vm4379, %v4378, 0
          %4382 = vmatprep.subr.mxu0 0.0
          %4383 = vmatpush1.msra.mxu0 %v4311
          %4384 = vmatprep.subr.mxu0 0.0
          %4385 = vmatpush1.msra.mxu0 %v4312
          %4386 = vmatprep.subr.mxu0 0.0
          %4387 = vmatpush1.msra.mxu0 %v4313
          %4388 = vmatprep.subr.mxu0 0.0
          %4389 = vmatpush1.msra.mxu0 %v4314
          %4390 = vmatprep.subr.mxu0 0.0
          %4391 = vmatpush1.msra.mxu0 0.0
          %4392 = vmatprep.subr.mxu0 0.0
          %4393 = vmatpush1.msra.mxu0 0.0
          %4394 = vmatprep.subr.mxu0 0.0
          %4395 = vmatpush1.msra.mxu0 0.0
          %4396 = vmatprep.subr.mxu0 0.0
          %4397 = vmatpush1.msra.mxu0 0.0
          %4398 = vmatprep.subr.mxu0 0.0
          %4399 = vmatpush1.msra.mxu0 0.0
          %4400 = vmatprep.subr.mxu0 0.0
          %4401 = vmatpush1.msra.mxu0 0.0
          %4402 = vmatprep.subr.mxu0 0.0
          %4403 = vmatpush1.msra.mxu0 0.0
          %4404 = vmatprep.subr.mxu0 0.0
          %4405 = vmatpush1.msra.mxu0 0.0
          %4406 = vmatprep.subr.mxu0 0.0
          %4407 = vmatpush1.msra.mxu0 0.0
          %4408 = vmatprep.subr.mxu0 0.0
          %4409 = vmatpush1.msra.mxu0 0.0
          %4410 = vmatprep.subr.mxu0 0.0
          %4411 = vmatpush1.msra.mxu0 0.0
          %4412 = vmatprep.subr.mxu0 0.0
          %4413 = vmatpush1.msra.mxu0 0.0
          %4414 = vmatprep.subr.mxu0 0.0
          %4415 = vmatpush1.msra.mxu0 0.0
          %4416 = vmatprep.subr.mxu0 0.0
          %4417 = vmatpush1.msra.mxu0 0.0
          %4418 = vmatprep.subr.mxu0 0.0
          %4419 = vmatpush1.msra.mxu0 0.0
          %4420 = vmatprep.subr.mxu0 0.0
          %4421 = vmatpush1.msra.mxu0 0.0
          %4422 = vmatprep.subr.mxu0 0.0
          %4423 = vmatpush1.msra.mxu0 0.0
          %4424 = vmatprep.subr.mxu0 0.0
          %4425 = vmatpush1.msra.mxu0 0.0
          %4426 = vmatprep.subr.mxu0 0.0
          %4427 = vmatpush1.msra.mxu0 0.0
          %4428 = vmatprep.subr.mxu0 0.0
          %4429 = vmatpush1.msra.mxu0 0.0
          %4430 = vmatprep.subr.mxu0 0.0
          %4431 = vmatpush1.msra.mxu0 0.0
          %4432 = vmatprep.subr.mxu0 0.0
          %4433 = vmatpush1.msra.mxu0 0.0
          %4434 = vmatprep.subr.mxu0 0.0
          %4435 = vmatpush1.msra.mxu0 0.0
          %4436 = vmatprep.subr.mxu0 0.0
          %4437 = vmatpush1.msra.mxu0 0.0
          %4438 = vmatprep.subr.mxu0 0.0
          %4439 = vmatpush1.msra.mxu0 0.0
          %4440 = vmatprep.subr.mxu0 0.0
          %4441 = vmatpush1.msra.mxu0 0.0
          %4442 = vmatprep.subr.mxu0 0.0
          %4443 = vmatpush1.msra.mxu0 0.0
          %4444 = vmatprep.subr.mxu0 0.0
          %4445 = vmatpush1.msra.mxu0 0.0
          %4446 = vmatprep.mubr.f32.mxu0 0.0
          %4447 = vmatmul.mubr.f32.gmra.mrb[0].mxu0 %v4380
          %v4448 = vpop.f32.mrb[0].mxu0
          %v4449 = vadd.f32 %v4320, %v4448
          %v4450 = vpop.f32.mrb[0].mxu0
          %4451 = vdwg.mxu0
          %4452 = vmax.xlane.f32.xlu0 %v4449
          %v4453 = vpop.xlane.xlu0 %4452
          %v4454 = vsub.f32 %v4449, %v4453
          %v4455 = vmul.f32 %v4454, 1.442695
          %v4456 = vpow.pop %v4455
          %4457 = vadd.xlane.f32.xlu0 %v4456
          %v4458 = vpop.xlane.xlu0 %4457
          %v4459 = vrcp.pop %v4458
          %v4460 = vmul.f32 %v4456, %v4459
          %4461 = vst [vmem:[#allocation6] sm:$0xff] %v4460
        $region52: #{tpu_custom_call.1} parent=39 // pred_fallthru
          _
        // Predicated region
        $region53: #{tpu_custom_call.1} parent=39 // pred_check
          %p4462 = pneg %p171
        $region54: #{tpu_custom_call.1} parent=39 // pred_check_branch
          %4464 = sbr.rel (%p4462) target = $region56
        $region55: #{tpu_custom_call.1} parent=39 // pred_region
          %s4466 = ssub.s32 128, 128
          %4467 = vsyncadd [#allocation5], %s4466
          %s4468 = smul.addr %s25, 128
          %s4469 = scalar_lea.hbm %s5, %s4468
          %s4471 = sshll.u32 [#allocation6], 4
          %s4472 = int_to_ptr.vmem [resolvable:$true] %s4471
          %4474 = dma.vmem_to_hbm [thread:$0]  %s4472, 128, %s4469, [#allocation5]
        $region56: #{tpu_custom_call.1} parent=39 // pred_fallthru
          _
        // Predicated region
        $region57: #{tpu_custom_call.1} parent=39 // pred_check
          %p4475 = pneg %p171
        $region58: #{tpu_custom_call.1} parent=39 // pred_check_branch
          %4477 = sbr.rel (%p4475) target = $region60
        $region59: #{tpu_custom_call.1} parent=39 // pred_region
          %4478 = dma.done [#allocation5], 128
        $region60: #{tpu_custom_call.1} parent=39 // pred_fallthru
          _
      $region40: #{tpu_custom_call.1} parent=5 // pred_fallthru
        _
      %p4479 = scmp.le.s32.totalorder 2, %s15
      // Predicated region
      $region61: #{tpu_custom_call.1} parent=5 // pred_check
        %p4480 = pneg %p4479
      $region62: #{tpu_custom_call.1} parent=5 // pred_check_branch
        %4482 = sbr.rel (%p4480) target = $region64
      $region63: #{tpu_custom_call.1} parent=5 // pred_region
        %s4483 = ssub.s32 %s15, 2
      $region64: #{tpu_custom_call.1} parent=5 // pred_fallthru
        _
    $region6: #{tpu_custom_call.1} parent=1 // loop_footer
      %s19 = sadd.s32 1, %s15
    $region7: #{tpu_custom_call.1} parent=1 // loop_footer_branch
      %14 = sbr.rel target = $region3
    $region8: #{tpu_custom_call.1} parent=1 // loop_exit
      _
    %4484 = vsyncpa [#allocation4], 1
    %s4485 = scalar_lea.sflag [#allocation4], 1
    %4486 = vsyncpa %s4485, 1
    %4487 = vsyncpa [#allocation5], 1
    %s4488 = scalar_lea.sflag [#allocation5], 1
    %4489 = vsyncpa %s4488, 1

</llo_original>
